<compile_context>
chip_gen: v6e
topology: v6e:2x2x1
jax: 0.10.0
libtpu: 0.0.40
codegen_flags: <defaults>
</compile_context>

<pallas_src>
import functools

import jax
import jax.numpy as jnp
from jax.experimental import pallas as pl
from jax.experimental.pallas import tpu as pltpu

EMB_DIM = 32
NUM_LAYERS = 5
BN_EPS = 1e-5


def _round_up(v, m):
    return (v + m - 1) // m * m


def _fused_gnn_kernel(a_ref, h0_ref, mask_ref, w1_ref, b1_ref, w2_ref, b2_ref,
                      gamma_ref, beta_ref, p_ref, o_ref, *, num_layers):
    n_pad, d = h0_ref.shape
    mask = mask_ref[...]                                          # [Np, 1] f32
    # Hoisted out of the unrolled layer loop (JAX does not CSE broadcast_in_dim).
    mask_b = jnp.broadcast_to(mask, (n_pad, d))                   # [Np, D]
    inv_n = 1.0 / jnp.maximum(jnp.sum(mask, keepdims=True), 1.0)  # [1, 1]

    h = h0_ref[...]                                               # [Np, D] f32, VMEM-resident

    for l in range(num_layers):
        # Reassociated GIN layer: (A @ h) @ W1 == A @ (h @ W1).  bf16 on the MXU,
        # f32 accumulation.  A (edge counts + self loops) is exact in bf16.
        hw = jnp.dot(h.astype(jnp.bfloat16), w1_ref[l],
                     preferred_element_type=jnp.float32)           # [Np, 2D]
        z = jnp.dot(a_ref[...], hw.astype(jnp.bfloat16),
                    preferred_element_type=jnp.float32) + b1_ref[l]
        z = jnp.maximum(z, 0.0)
        y = jnp.dot(z.astype(jnp.bfloat16), w2_ref[l],
                    preferred_element_type=jnp.float32) + b2_ref[l]

        # BatchNorm1d, training-mode forward: biased batch stats over VALID nodes
        # only.  Single mask multiply reused for both reductions (f32 throughout).
        ym = y * mask_b                                             # [Np, D]
        mean = jnp.sum(ym, axis=0, keepdims=True) * inv_n           # [1, D]
        ex2 = jnp.sum(ym * y, axis=0, keepdims=True) * inv_n        # [1, D]
        var = jnp.maximum(ex2 - mean * mean, 0.0)
        y = (y - mean) * jax.lax.rsqrt(var + BN_EPS) * gamma_ref[l] + beta_ref[l]
        if l != num_layers - 1:
            y = jnp.maximum(y, 0.0)
        # dropout has p=0.0 here -> identity
        h = y

    # global mean pool: o[g] = (1/|g|) * sum_{n in g} h[n].  P rows are
    # pre-normalized, padded node columns are zero.  Tiny matmul, kept in f32.
    o_ref[...] = jnp.dot(p_ref[...], h, preferred_element_type=jnp.float32)


def fused_gnn_graphpred(a, h0, mask, w1, b1, w2, b2, gamma, beta, p, num_layers):
    n_pad, d = h0.shape
    g = p.shape[0]
    inputs = (a, h0, mask, w1, b1, w2, b2, gamma, beta, p)

    # Per-generation scoped-VMEM budget: query physical capacity (128 MiB on
    # v5e/v6e, 64 MiB per TensorCore on v7x) and reserve ~18% headroom for
    # Mosaic's internal scratch / IO staging.  Whole-array VMEM specs with no
    # grid are single-buffered, so the need estimate is not doubled.
    try:
        vmem_cap = int(pltpu.get_tpu_info().vmem_capacity_bytes)
    except Exception:
        vmem_cap = 64 << 20   # conservative fallback (v7x physical)
    in_bytes = sum(int(t.size) * t.dtype.itemsize for t in inputs)
    out_bytes = g * d * 4
    interm_bytes = 6 * n_pad * (2 * d) * 4       # live f32 intermediates per layer
    need = in_bytes + out_bytes + interm_bytes + (8 << 20)
    vmem_limit = int(min(max(need, 32 << 20), int(vmem_cap * 0.82)))

    # Advisory cost so XLA overlaps the surrounding glue (embedding gathers,
    # adjacency scatter, one-hot pooling matrix) with the custom call.
    flops_layer = (2 * n_pad * d * (2 * d)            # h @ W1
                   + 2 * n_pad * n_pad * (2 * d)      # A @ (h @ W1)
                   + 2 * n_pad * (2 * d) * d)         # z @ W2
    cost = pl.CostEstimate(
        flops=num_layers * flops_layer + 2 * g * n_pad * d,
        transcendentals=num_layers * d,               # rsqrt per BN channel
        bytes_accessed=in_bytes + out_bytes,
    )

    vmem = pl.BlockSpec(memory_space=pltpu.MemorySpace.VMEM)
    kernel = functools.partial(_fused_gnn_kernel, num_layers=num_layers)
    return pl.pallas_call(
        kernel,
        out_shape=jax.ShapeDtypeStruct((g, d), jnp.float32),
        in_specs=[vmem] * len(inputs),
        out_specs=vmem,
        compiler_params=pltpu.CompilerParams(vmem_limit_bytes=vmem_limit),
        cost_estimate=cost,
    )(*inputs)


def init_params(key, emb_dim=EMB_DIM, num_layers=NUM_LAYERS):
    ks = jax.random.split(key, 2 + 4 * num_layers)
    params = {
        # atom embedding tables: Embedding(120, D) and Embedding(3, D)
        "x_emb1": jax.random.normal(ks[0], (120, emb_dim), jnp.float32) * 0.1,
        "x_emb2": jax.random.normal(ks[1], (3, emb_dim), jnp.float32) * 0.1,
        "layers": [],
    }
    for l in range(num_layers):
        k1, k2 = ks[2 + 4 * l], ks[3 + 4 * l]
        params["layers"].append(dict(
            w1=jax.random.normal(k1, (emb_dim, 2 * emb_dim), jnp.float32) * 0.1,
            b1=jnp.zeros((1, 2 * emb_dim), jnp.float32),
            w2=jax.random.normal(k2, (2 * emb_dim, emb_dim), jnp.float32) * 0.1,
            b2=jnp.zeros((1, emb_dim), jnp.float32),
            gamma=jnp.ones((1, emb_dim), jnp.float32),   # BatchNorm weight
            beta=jnp.zeros((1, emb_dim), jnp.float32),   # BatchNorm bias
        ))
    return params


def gnn_graphpred_forward(params, x, edge_index, batch, num_graphs):
    n = x.shape[0]
    num_layers = len(params["layers"])
    # Pad the node axis to a multiple of 128: Np is the lane dim of A and P and
    # the MXU contraction dim, and bf16 A packs sublanes in pairs.
    n_pad = max(_round_up(n, 128), 128)

    # atom embedding lookup (gather glue stays in plain JAX)
    h0 = (params["x_emb1"][x[:, 0]] + params["x_emb2"][x[:, 1]]).astype(jnp.float32)
    h0 = jnp.pad(h0, ((0, n_pad - n), (0, 0)))

    # dense adjacency with self loops (glue); edge_attr is None -> edge embeddings
    # are zero and the GIN message is just x_j, i.e. plain scatter-add.
    a = jnp.zeros((n_pad, n_pad), jnp.float32)
    a = a.at[edge_index[1], edge_index[0]].add(1.0)
    a = a + jnp.eye(n_pad, dtype=jnp.float32)
    a = a.astype(jnp.bfloat16)   # small integer edge counts -> exact in bf16

    # validity mask so padded rows never pollute the BatchNorm statistics
    mask = (jnp.arange(n_pad) < n).astype(jnp.float32)[:, None]

    # global mean pool via normalized assignment matrix (padded columns are zero)
    one_hot = (batch[None, :] == jnp.arange(num_graphs)[:, None]).astype(jnp.float32)
    counts = jnp.maximum(one_hot.sum(axis=1, keepdims=True), 1.0)
    p = jnp.pad(one_hot / counts, ((0, 0), (0, n_pad - n)))

    # stacked per-layer parameters, loaded into VMEM once; matmul weights in bf16
    w1 = jnp.stack([lp["w1"] for lp in params["layers"]]).astype(jnp.bfloat16)
    b1 = jnp.stack([lp["b1"] for lp in params["layers"]])
    w2 = jnp.stack([lp["w2"] for lp in params["layers"]]).astype(jnp.bfloat16)
    b2 = jnp.stack([lp["b2"] for lp in params["layers"]])
    gamma = jnp.stack([lp["gamma"] for lp in params["layers"]])
    beta = jnp.stack([lp["beta"] for lp in params["layers"]])

    return fused_gnn_graphpred(a, h0, mask, w1, b1, w2, b2, gamma, beta, p,
                               num_layers)


if __name__ == "__main__":
    key = jax.random.PRNGKey(0)
    k_param, k_x0, k_x1, k_e = jax.random.split(key, 4)

    N, E, G = 16, 24, 2  # nodes, edges, graphs
    params = init_params(k_param)

    # node features: [N, 2] ints (atom type in [0,120), chirality in [0,3))
    x = jnp.stack([
        jax.random.randint(k_x0, (N,), 0, 120, dtype=jnp.int32),
        jax.random.randint(k_x1, (N,), 0, 3, dtype=jnp.int32),
    ], axis=1)
    # edge_index: [2, E] ints in [0, N)
    edge_index = jax.random.randint(k_e, (2, E), 0, N, dtype=jnp.int32)
    # batch assignment: first half of nodes -> graph 0, second half -> graph 1
    batch = jnp.concatenate([jnp.zeros((N // 2,), jnp.int32),
                             jnp.ones((N - N // 2,), jnp.int32)])

    out = gnn_graphpred_forward(params, x, edge_index, batch, G)
    out = jax.block_until_ready(out)
    assert out.shape == (G, EMB_DIM)
    assert bool(jnp.all(jnp.isfinite(out)))
    print("KERNEL_OK")
</pallas_src>

<mosaic_0001>
module attributes {stable_mosaic.version = 11 : i64} {
  func.func @_fused_gnn_kernel(%arg0: memref<128x128xbf16, #tpu.memory_space<vmem>>, %arg1: memref<128x32xf32, #tpu.memory_space<vmem>>, %arg2: memref<128x1xf32, #tpu.memory_space<vmem>>, %arg3: memref<5x32x64xbf16, #tpu.memory_space<vmem>>, %arg4: memref<5x1x64xf32, #tpu.memory_space<vmem>>, %arg5: memref<5x64x32xbf16, #tpu.memory_space<vmem>>, %arg6: memref<5x1x32xf32, #tpu.memory_space<vmem>>, %arg7: memref<5x1x32xf32, #tpu.memory_space<vmem>>, %arg8: memref<5x1x32xf32, #tpu.memory_space<vmem>>, %arg9: memref<2x128xf32, #tpu.memory_space<vmem>>, %arg10: memref<2x32xf32, #tpu.memory_space<vmem>>) attributes {dimension_semantics = [], scalar_prefetch = 0 : i64, scratch_operands = 0 : i64, tpu.core_type = #tpu.core_type<tc>} {
    %c0 = arith.constant 0 : index
    %c0_0 = arith.constant 0 : index
    %0 = vector.load %arg2[%c0, %c0_0] : memref<128x1xf32, #tpu.memory_space<vmem>>, vector<128x1xf32>
    %1 = vector.shape_cast %0 : vector<128x1xf32> to vector<128x1xf32>
    %2 = vector.broadcast %1 : vector<128x1xf32> to vector<128x32xf32>
    %3 = vector.shape_cast %0 : vector<128x1xf32> to vector<1x128x1xf32>
    %cst = arith.constant dense<0.000000e+00> : vector<1xf32>
    %4 = vector.multi_reduction <add>, %3, %cst [1, 2] : vector<1x128x1xf32> to vector<1xf32>
    %5 = vector.shape_cast %4 : vector<1xf32> to vector<1x1x1xf32>
    %6 = vector.extract %5[0, 0, 0] : f32 from vector<1x1x1xf32>
    %7 = vector.broadcast %6 : f32 to vector<1x1xf32>
    %cst_1 = arith.constant 1.000000e+00 : f32
    %8 = vector.broadcast %cst_1 : f32 to vector<1x1xf32>
    %9 = arith.maximumf %7, %8 : vector<1x1xf32>
    %cst_2 = arith.constant 1.000000e+00 : f32
    %10 = vector.broadcast %cst_2 : f32 to vector<1x1xf32>
    %11 = arith.divf %10, %9 : vector<1x1xf32>
    %c0_3 = arith.constant 0 : index
    %c0_4 = arith.constant 0 : index
    %12 = vector.load %arg1[%c0_3, %c0_4] : memref<128x32xf32, #tpu.memory_space<vmem>>, vector<128x32xf32>
    %13 = arith.truncf %12 : vector<128x32xf32> to vector<128x32xbf16>
    %c0_5 = arith.constant 0 : index
    %c0_6 = arith.constant 0 : index
    %c0_7 = arith.constant 0 : index
    %14 = vector.load %arg3[%c0_5, %c0_6, %c0_7] : memref<5x32x64xbf16, #tpu.memory_space<vmem>>, vector<1x32x64xbf16>
    %15 = vector.shape_cast %14 : vector<1x32x64xbf16> to vector<32x64xbf16>
    %cst_8 = arith.constant dense<0.000000e+00> : vector<128x64xf32>
    %16 = tpu.matmul %13, %15, %cst_8 {dimension_numbers = #tpu.dot_dimension_numbers<[1], [0], [0], [1], [0, 0, 1, 1], [], []>} : vector<128x32xbf16>, vector<32x64xbf16>, vector<128x64xf32> -> vector<128x64xf32>
    %c0_9 = arith.constant 0 : index
    %c0_10 = arith.constant 0 : index
    %17 = vector.load %arg0[%c0_9, %c0_10] : memref<128x128xbf16, #tpu.memory_space<vmem>>, vector<128x128xbf16>
    %18 = arith.truncf %16 : vector<128x64xf32> to vector<128x64xbf16>
    %cst_11 = arith.constant dense<0.000000e+00> : vector<128x64xf32>
    %19 = tpu.matmul %17, %18, %cst_11 {dimension_numbers = #tpu.dot_dimension_numbers<[1], [0], [0], [1], [0, 0, 1, 1], [], []>} : vector<128x128xbf16>, vector<128x64xbf16>, vector<128x64xf32> -> vector<128x64xf32>
    %c0_12 = arith.constant 0 : index
    %c0_13 = arith.constant 0 : index
    %c0_14 = arith.constant 0 : index
    %20 = vector.load %arg4[%c0_12, %c0_13, %c0_14] : memref<5x1x64xf32, #tpu.memory_space<vmem>>, vector<1x1x64xf32>
    %21 = vector.shape_cast %20 : vector<1x1x64xf32> to vector<1x64xf32>
    %22 = vector.broadcast %21 : vector<1x64xf32> to vector<128x64xf32>
    %23 = arith.addf %19, %22 : vector<128x64xf32>
    %cst_15 = arith.constant 0.000000e+00 : f32
    %24 = vector.broadcast %cst_15 : f32 to vector<128x64xf32>
    %25 = arith.maximumf %23, %24 : vector<128x64xf32>
    %26 = arith.truncf %25 : vector<128x64xf32> to vector<128x64xbf16>
    %c0_16 = arith.constant 0 : index
    %c0_17 = arith.constant 0 : index
    %c0_18 = arith.constant 0 : index
    %27 = vector.load %arg5[%c0_16, %c0_17, %c0_18] : memref<5x64x32xbf16, #tpu.memory_space<vmem>>, vector<1x64x32xbf16>
    %28 = vector.shape_cast %27 : vector<1x64x32xbf16> to vector<64x32xbf16>
    %cst_19 = arith.constant dense<0.000000e+00> : vector<128x32xf32>
    %29 = tpu.matmul %26, %28, %cst_19 {dimension_numbers = #tpu.dot_dimension_numbers<[1], [0], [0], [1], [0, 0, 1, 1], [], []>} : vector<128x64xbf16>, vector<64x32xbf16>, vector<128x32xf32> -> vector<128x32xf32>
    %c0_20 = arith.constant 0 : index
    %c0_21 = arith.constant 0 : index
    %c0_22 = arith.constant 0 : index
    %30 = vector.load %arg6[%c0_20, %c0_21, %c0_22] : memref<5x1x32xf32, #tpu.memory_space<vmem>>, vector<1x1x32xf32>
    %31 = vector.shape_cast %30 : vector<1x1x32xf32> to vector<1x32xf32>
    %32 = vector.broadcast %31 : vector<1x32xf32> to vector<128x32xf32>
    %33 = arith.addf %29, %32 : vector<128x32xf32>
    %34 = arith.mulf %33, %2 : vector<128x32xf32>
    %cst_23 = arith.constant dense<0.000000e+00> : vector<32xf32>
    %35 = vector.multi_reduction <add>, %34, %cst_23 [0] : vector<128x32xf32> to vector<32xf32>
    %36 = vector.shape_cast %35 : vector<32xf32> to vector<1x32xf32>
    %37 = vector.broadcast %11 : vector<1x1xf32> to vector<1x32xf32>
    %38 = arith.mulf %36, %37 : vector<1x32xf32>
    %39 = arith.mulf %34, %33 : vector<128x32xf32>
    %cst_24 = arith.constant dense<0.000000e+00> : vector<32xf32>
    %40 = vector.multi_reduction <add>, %39, %cst_24 [0] : vector<128x32xf32> to vector<32xf32>
    %41 = vector.shape_cast %40 : vector<32xf32> to vector<1x32xf32>
    %42 = vector.broadcast %11 : vector<1x1xf32> to vector<1x32xf32>
    %43 = arith.mulf %41, %42 : vector<1x32xf32>
    %44 = arith.mulf %38, %38 : vector<1x32xf32>
    %45 = arith.subf %43, %44 : vector<1x32xf32>
    %cst_25 = arith.constant 0.000000e+00 : f32
    %46 = vector.broadcast %cst_25 : f32 to vector<1x32xf32>
    %47 = arith.maximumf %45, %46 : vector<1x32xf32>
    %48 = vector.broadcast %38 : vector<1x32xf32> to vector<128x32xf32>
    %49 = arith.subf %33, %48 : vector<128x32xf32>
    %cst_26 = arith.constant 9.99999974E-6 : f32
    %50 = vector.broadcast %cst_26 : f32 to vector<1x32xf32>
    %51 = arith.addf %47, %50 : vector<1x32xf32>
    %52 = math.rsqrt %51 : vector<1x32xf32>
    %53 = vector.broadcast %52 : vector<1x32xf32> to vector<128x32xf32>
    %54 = arith.mulf %49, %53 : vector<128x32xf32>
    %c0_27 = arith.constant 0 : index
    %c0_28 = arith.constant 0 : index
    %c0_29 = arith.constant 0 : index
    %55 = vector.load %arg7[%c0_27, %c0_28, %c0_29] : memref<5x1x32xf32, #tpu.memory_space<vmem>>, vector<1x1x32xf32>
    %56 = vector.shape_cast %55 : vector<1x1x32xf32> to vector<1x32xf32>
    %57 = vector.broadcast %56 : vector<1x32xf32> to vector<128x32xf32>
    %58 = arith.mulf %54, %57 : vector<128x32xf32>
    %c0_30 = arith.constant 0 : index
    %c0_31 = arith.constant 0 : index
    %c0_32 = arith.constant 0 : index
    %59 = vector.load %arg8[%c0_30, %c0_31, %c0_32] : memref<5x1x32xf32, #tpu.memory_space<vmem>>, vector<1x1x32xf32>
    %60 = vector.shape_cast %59 : vector<1x1x32xf32> to vector<1x32xf32>
    %61 = vector.broadcast %60 : vector<1x32xf32> to vector<128x32xf32>
    %62 = arith.addf %58, %61 : vector<128x32xf32>
    %cst_33 = arith.constant 0.000000e+00 : f32
    %63 = vector.broadcast %cst_33 : f32 to vector<128x32xf32>
    %64 = arith.maximumf %62, %63 : vector<128x32xf32>
    %65 = arith.truncf %64 : vector<128x32xf32> to vector<128x32xbf16>
    %c1 = arith.constant 1 : index
    %c0_34 = arith.constant 0 : index
    %c0_35 = arith.constant 0 : index
    %66 = vector.load %arg3[%c1, %c0_34, %c0_35] : memref<5x32x64xbf16, #tpu.memory_space<vmem>>, vector<1x32x64xbf16>
    %67 = vector.shape_cast %66 : vector<1x32x64xbf16> to vector<32x64xbf16>
    %cst_36 = arith.constant dense<0.000000e+00> : vector<128x64xf32>
    %68 = tpu.matmul %65, %67, %cst_36 {dimension_numbers = #tpu.dot_dimension_numbers<[1], [0], [0], [1], [0, 0, 1, 1], [], []>} : vector<128x32xbf16>, vector<32x64xbf16>, vector<128x64xf32> -> vector<128x64xf32>
    %c0_37 = arith.constant 0 : index
    %c0_38 = arith.constant 0 : index
    %69 = vector.load %arg0[%c0_37, %c0_38] : memref<128x128xbf16, #tpu.memory_space<vmem>>, vector<128x128xbf16>
    %70 = arith.truncf %68 : vector<128x64xf32> to vector<128x64xbf16>
    %cst_39 = arith.constant dense<0.000000e+00> : vector<128x64xf32>
    %71 = tpu.matmul %69, %70, %cst_39 {dimension_numbers = #tpu.dot_dimension_numbers<[1], [0], [0], [1], [0, 0, 1, 1], [], []>} : vector<128x128xbf16>, vector<128x64xbf16>, vector<128x64xf32> -> vector<128x64xf32>
    %c1_40 = arith.constant 1 : index
    %c0_41 = arith.constant 0 : index
    %c0_42 = arith.constant 0 : index
    %72 = vector.load %arg4[%c1_40, %c0_41, %c0_42] : memref<5x1x64xf32, #tpu.memory_space<vmem>>, vector<1x1x64xf32>
    %73 = vector.shape_cast %72 : vector<1x1x64xf32> to vector<1x64xf32>
    %74 = vector.broadcast %73 : vector<1x64xf32> to vector<128x64xf32>
    %75 = arith.addf %71, %74 : vector<128x64xf32>
    %cst_43 = arith.constant 0.000000e+00 : f32
    %76 = vector.broadcast %cst_43 : f32 to vector<128x64xf32>
    %77 = arith.maximumf %75, %76 : vector<128x64xf32>
    %78 = arith.truncf %77 : vector<128x64xf32> to vector<128x64xbf16>
    %c1_44 = arith.constant 1 : index
    %c0_45 = arith.constant 0 : index
    %c0_46 = arith.constant 0 : index
    %79 = vector.load %arg5[%c1_44, %c0_45, %c0_46] : memref<5x64x32xbf16, #tpu.memory_space<vmem>>, vector<1x64x32xbf16>
    %80 = vector.shape_cast %79 : vector<1x64x32xbf16> to vector<64x32xbf16>
    %cst_47 = arith.constant dense<0.000000e+00> : vector<128x32xf32>
    %81 = tpu.matmul %78, %80, %cst_47 {dimension_numbers = #tpu.dot_dimension_numbers<[1], [0], [0], [1], [0, 0, 1, 1], [], []>} : vector<128x64xbf16>, vector<64x32xbf16>, vector<128x32xf32> -> vector<128x32xf32>
    %c1_48 = arith.constant 1 : index
    %c0_49 = arith.constant 0 : index
    %c0_50 = arith.constant 0 : index
    %82 = vector.load %arg6[%c1_48, %c0_49, %c0_50] : memref<5x1x32xf32, #tpu.memory_space<vmem>>, vector<1x1x32xf32>
    %83 = vector.shape_cast %82 : vector<1x1x32xf32> to vector<1x32xf32>
    %84 = vector.broadcast %83 : vector<1x32xf32> to vector<128x32xf32>
    %85 = arith.addf %81, %84 : vector<128x32xf32>
    %86 = arith.mulf %85, %2 : vector<128x32xf32>
    %cst_51 = arith.constant dense<0.000000e+00> : vector<32xf32>
    %87 = vector.multi_reduction <add>, %86, %cst_51 [0] : vector<128x32xf32> to vector<32xf32>
    %88 = vector.shape_cast %87 : vector<32xf32> to vector<1x32xf32>
    %89 = vector.broadcast %11 : vector<1x1xf32> to vector<1x32xf32>
    %90 = arith.mulf %88, %89 : vector<1x32xf32>
    %91 = arith.mulf %86, %85 : vector<128x32xf32>
    %cst_52 = arith.constant dense<0.000000e+00> : vector<32xf32>
    %92 = vector.multi_reduction <add>, %91, %cst_52 [0] : vector<128x32xf32> to vector<32xf32>
    %93 = vector.shape_cast %92 : vector<32xf32> to vector<1x32xf32>
    %94 = vector.broadcast %11 : vector<1x1xf32> to vector<1x32xf32>
    %95 = arith.mulf %93, %94 : vector<1x32xf32>
    %96 = arith.mulf %90, %90 : vector<1x32xf32>
    %97 = arith.subf %95, %96 : vector<1x32xf32>
    %cst_53 = arith.constant 0.000000e+00 : f32
    %98 = vector.broadcast %cst_53 : f32 to vector<1x32xf32>
    %99 = arith.maximumf %97, %98 : vector<1x32xf32>
    %100 = vector.broadcast %90 : vector<1x32xf32> to vector<128x32xf32>
    %101 = arith.subf %85, %100 : vector<128x32xf32>
    %cst_54 = arith.constant 9.99999974E-6 : f32
    %102 = vector.broadcast %cst_54 : f32 to vector<1x32xf32>
    %103 = arith.addf %99, %102 : vector<1x32xf32>
    %104 = math.rsqrt %103 : vector<1x32xf32>
    %105 = vector.broadcast %104 : vector<1x32xf32> to vector<128x32xf32>
    %106 = arith.mulf %101, %105 : vector<128x32xf32>
    %c1_55 = arith.constant 1 : index
    %c0_56 = arith.constant 0 : index
    %c0_57 = arith.constant 0 : index
    %107 = vector.load %arg7[%c1_55, %c0_56, %c0_57] : memref<5x1x32xf32, #tpu.memory_space<vmem>>, vector<1x1x32xf32>
    %108 = vector.shape_cast %107 : vector<1x1x32xf32> to vector<1x32xf32>
    %109 = vector.broadcast %108 : vector<1x32xf32> to vector<128x32xf32>
    %110 = arith.mulf %106, %109 : vector<128x32xf32>
    %c1_58 = arith.constant 1 : index
    %c0_59 = arith.constant 0 : index
    %c0_60 = arith.constant 0 : index
    %111 = vector.load %arg8[%c1_58, %c0_59, %c0_60] : memref<5x1x32xf32, #tpu.memory_space<vmem>>, vector<1x1x32xf32>
    %112 = vector.shape_cast %111 : vector<1x1x32xf32> to vector<1x32xf32>
    %113 = vector.broadcast %112 : vector<1x32xf32> to vector<128x32xf32>
    %114 = arith.addf %110, %113 : vector<128x32xf32>
    %cst_61 = arith.constant 0.000000e+00 : f32
    %115 = vector.broadcast %cst_61 : f32 to vector<128x32xf32>
    %116 = arith.maximumf %114, %115 : vector<128x32xf32>
    %117 = arith.truncf %116 : vector<128x32xf32> to vector<128x32xbf16>
    %c2 = arith.constant 2 : index
    %c0_62 = arith.constant 0 : index
    %c0_63 = arith.constant 0 : index
    %118 = vector.load %arg3[%c2, %c0_62, %c0_63] : memref<5x32x64xbf16, #tpu.memory_space<vmem>>, vector<1x32x64xbf16>
    %119 = vector.shape_cast %118 : vector<1x32x64xbf16> to vector<32x64xbf16>
    %cst_64 = arith.constant dense<0.000000e+00> : vector<128x64xf32>
    %120 = tpu.matmul %117, %119, %cst_64 {dimension_numbers = #tpu.dot_dimension_numbers<[1], [0], [0], [1], [0, 0, 1, 1], [], []>} : vector<128x32xbf16>, vector<32x64xbf16>, vector<128x64xf32> -> vector<128x64xf32>
    %c0_65 = arith.constant 0 : index
    %c0_66 = arith.constant 0 : index
    %121 = vector.load %arg0[%c0_65, %c0_66] : memref<128x128xbf16, #tpu.memory_space<vmem>>, vector<128x128xbf16>
    %122 = arith.truncf %120 : vector<128x64xf32> to vector<128x64xbf16>
    %cst_67 = arith.constant dense<0.000000e+00> : vector<128x64xf32>
    %123 = tpu.matmul %121, %122, %cst_67 {dimension_numbers = #tpu.dot_dimension_numbers<[1], [0], [0], [1], [0, 0, 1, 1], [], []>} : vector<128x128xbf16>, vector<128x64xbf16>, vector<128x64xf32> -> vector<128x64xf32>
    %c2_68 = arith.constant 2 : index
    %c0_69 = arith.constant 0 : index
    %c0_70 = arith.constant 0 : index
    %124 = vector.load %arg4[%c2_68, %c0_69, %c0_70] : memref<5x1x64xf32, #tpu.memory_space<vmem>>, vector<1x1x64xf32>
    %125 = vector.shape_cast %124 : vector<1x1x64xf32> to vector<1x64xf32>
    %126 = vector.broadcast %125 : vector<1x64xf32> to vector<128x64xf32>
    %127 = arith.addf %123, %126 : vector<128x64xf32>
    %cst_71 = arith.constant 0.000000e+00 : f32
    %128 = vector.broadcast %cst_71 : f32 to vector<128x64xf32>
    %129 = arith.maximumf %127, %128 : vector<128x64xf32>
    %130 = arith.truncf %129 : vector<128x64xf32> to vector<128x64xbf16>
    %c2_72 = arith.constant 2 : index
    %c0_73 = arith.constant 0 : index
    %c0_74 = arith.constant 0 : index
    %131 = vector.load %arg5[%c2_72, %c0_73, %c0_74] : memref<5x64x32xbf16, #tpu.memory_space<vmem>>, vector<1x64x32xbf16>
    %132 = vector.shape_cast %131 : vector<1x64x32xbf16> to vector<64x32xbf16>
    %cst_75 = arith.constant dense<0.000000e+00> : vector<128x32xf32>
    %133 = tpu.matmul %130, %132, %cst_75 {dimension_numbers = #tpu.dot_dimension_numbers<[1], [0], [0], [1], [0, 0, 1, 1], [], []>} : vector<128x64xbf16>, vector<64x32xbf16>, vector<128x32xf32> -> vector<128x32xf32>
    %c2_76 = arith.constant 2 : index
    %c0_77 = arith.constant 0 : index
    %c0_78 = arith.constant 0 : index
    %134 = vector.load %arg6[%c2_76, %c0_77, %c0_78] : memref<5x1x32xf32, #tpu.memory_space<vmem>>, vector<1x1x32xf32>
    %135 = vector.shape_cast %134 : vector<1x1x32xf32> to vector<1x32xf32>
    %136 = vector.broadcast %135 : vector<1x32xf32> to vector<128x32xf32>
    %137 = arith.addf %133, %136 : vector<128x32xf32>
    %138 = arith.mulf %137, %2 : vector<128x32xf32>
    %cst_79 = arith.constant dense<0.000000e+00> : vector<32xf32>
    %139 = vector.multi_reduction <add>, %138, %cst_79 [0] : vector<128x32xf32> to vector<32xf32>
    %140 = vector.shape_cast %139 : vector<32xf32> to vector<1x32xf32>
    %141 = vector.broadcast %11 : vector<1x1xf32> to vector<1x32xf32>
    %142 = arith.mulf %140, %141 : vector<1x32xf32>
    %143 = arith.mulf %138, %137 : vector<128x32xf32>
    %cst_80 = arith.constant dense<0.000000e+00> : vector<32xf32>
    %144 = vector.multi_reduction <add>, %143, %cst_80 [0] : vector<128x32xf32> to vector<32xf32>
    %145 = vector.shape_cast %144 : vector<32xf32> to vector<1x32xf32>
    %146 = vector.broadcast %11 : vector<1x1xf32> to vector<1x32xf32>
    %147 = arith.mulf %145, %146 : vector<1x32xf32>
    %148 = arith.mulf %142, %142 : vector<1x32xf32>
    %149 = arith.subf %147, %148 : vector<1x32xf32>
    %cst_81 = arith.constant 0.000000e+00 : f32
    %150 = vector.broadcast %cst_81 : f32 to vector<1x32xf32>
    %151 = arith.maximumf %149, %150 : vector<1x32xf32>
    %152 = vector.broadcast %142 : vector<1x32xf32> to vector<128x32xf32>
    %153 = arith.subf %137, %152 : vector<128x32xf32>
    %cst_82 = arith.constant 9.99999974E-6 : f32
    %154 = vector.broadcast %cst_82 : f32 to vector<1x32xf32>
    %155 = arith.addf %151, %154 : vector<1x32xf32>
    %156 = math.rsqrt %155 : vector<1x32xf32>
    %157 = vector.broadcast %156 : vector<1x32xf32> to vector<128x32xf32>
    %158 = arith.mulf %153, %157 : vector<128x32xf32>
    %c2_83 = arith.constant 2 : index
    %c0_84 = arith.constant 0 : index
    %c0_85 = arith.constant 0 : index
    %159 = vector.load %arg7[%c2_83, %c0_84, %c0_85] : memref<5x1x32xf32, #tpu.memory_space<vmem>>, vector<1x1x32xf32>
    %160 = vector.shape_cast %159 : vector<1x1x32xf32> to vector<1x32xf32>
    %161 = vector.broadcast %160 : vector<1x32xf32> to vector<128x32xf32>
    %162 = arith.mulf %158, %161 : vector<128x32xf32>
    %c2_86 = arith.constant 2 : index
    %c0_87 = arith.constant 0 : index
    %c0_88 = arith.constant 0 : index
    %163 = vector.load %arg8[%c2_86, %c0_87, %c0_88] : memref<5x1x32xf32, #tpu.memory_space<vmem>>, vector<1x1x32xf32>
    %164 = vector.shape_cast %163 : vector<1x1x32xf32> to vector<1x32xf32>
    %165 = vector.broadcast %164 : vector<1x32xf32> to vector<128x32xf32>
    %166 = arith.addf %162, %165 : vector<128x32xf32>
    %cst_89 = arith.constant 0.000000e+00 : f32
    %167 = vector.broadcast %cst_89 : f32 to vector<128x32xf32>
    %168 = arith.maximumf %166, %167 : vector<128x32xf32>
    %169 = arith.truncf %168 : vector<128x32xf32> to vector<128x32xbf16>
    %c3 = arith.constant 3 : index
    %c0_90 = arith.constant 0 : index
    %c0_91 = arith.constant 0 : index
    %170 = vector.load %arg3[%c3, %c0_90, %c0_91] : memref<5x32x64xbf16, #tpu.memory_space<vmem>>, vector<1x32x64xbf16>
    %171 = vector.shape_cast %170 : vector<1x32x64xbf16> to vector<32x64xbf16>
    %cst_92 = arith.constant dense<0.000000e+00> : vector<128x64xf32>
    %172 = tpu.matmul %169, %171, %cst_92 {dimension_numbers = #tpu.dot_dimension_numbers<[1], [0], [0], [1], [0, 0, 1, 1], [], []>} : vector<128x32xbf16>, vector<32x64xbf16>, vector<128x64xf32> -> vector<128x64xf32>
    %c0_93 = arith.constant 0 : index
    %c0_94 = arith.constant 0 : index
    %173 = vector.load %arg0[%c0_93, %c0_94] : memref<128x128xbf16, #tpu.memory_space<vmem>>, vector<128x128xbf16>
    %174 = arith.truncf %172 : vector<128x64xf32> to vector<128x64xbf16>
    %cst_95 = arith.constant dense<0.000000e+00> : vector<128x64xf32>
    %175 = tpu.matmul %173, %174, %cst_95 {dimension_numbers = #tpu.dot_dimension_numbers<[1], [0], [0], [1], [0, 0, 1, 1], [], []>} : vector<128x128xbf16>, vector<128x64xbf16>, vector<128x64xf32> -> vector<128x64xf32>
    %c3_96 = arith.constant 3 : index
    %c0_97 = arith.constant 0 : index
    %c0_98 = arith.constant 0 : index
    %176 = vector.load %arg4[%c3_96, %c0_97, %c0_98] : memref<5x1x64xf32, #tpu.memory_space<vmem>>, vector<1x1x64xf32>
    %177 = vector.shape_cast %176 : vector<1x1x64xf32> to vector<1x64xf32>
    %178 = vector.broadcast %177 : vector<1x64xf32> to vector<128x64xf32>
    %179 = arith.addf %175, %178 : vector<128x64xf32>
    %cst_99 = arith.constant 0.000000e+00 : f32
    %180 = vector.broadcast %cst_99 : f32 to vector<128x64xf32>
    %181 = arith.maximumf %179, %180 : vector<128x64xf32>
    %182 = arith.truncf %181 : vector<128x64xf32> to vector<128x64xbf16>
    %c3_100 = arith.constant 3 : index
    %c0_101 = arith.constant 0 : index
    %c0_102 = arith.constant 0 : index
    %183 = vector.load %arg5[%c3_100, %c0_101, %c0_102] : memref<5x64x32xbf16, #tpu.memory_space<vmem>>, vector<1x64x32xbf16>
    %184 = vector.shape_cast %183 : vector<1x64x32xbf16> to vector<64x32xbf16>
    %cst_103 = arith.constant dense<0.000000e+00> : vector<128x32xf32>
    %185 = tpu.matmul %182, %184, %cst_103 {dimension_numbers = #tpu.dot_dimension_numbers<[1], [0], [0], [1], [0, 0, 1, 1], [], []>} : vector<128x64xbf16>, vector<64x32xbf16>, vector<128x32xf32> -> vector<128x32xf32>
    %c3_104 = arith.constant 3 : index
    %c0_105 = arith.constant 0 : index
    %c0_106 = arith.constant 0 : index
    %186 = vector.load %arg6[%c3_104, %c0_105, %c0_106] : memref<5x1x32xf32, #tpu.memory_space<vmem>>, vector<1x1x32xf32>
    %187 = vector.shape_cast %186 : vector<1x1x32xf32> to vector<1x32xf32>
    %188 = vector.broadcast %187 : vector<1x32xf32> to vector<128x32xf32>
    %189 = arith.addf %185, %188 : vector<128x32xf32>
    %190 = arith.mulf %189, %2 : vector<128x32xf32>
    %cst_107 = arith.constant dense<0.000000e+00> : vector<32xf32>
    %191 = vector.multi_reduction <add>, %190, %cst_107 [0] : vector<128x32xf32> to vector<32xf32>
    %192 = vector.shape_cast %191 : vector<32xf32> to vector<1x32xf32>
    %193 = vector.broadcast %11 : vector<1x1xf32> to vector<1x32xf32>
    %194 = arith.mulf %192, %193 : vector<1x32xf32>
    %195 = arith.mulf %190, %189 : vector<128x32xf32>
    %cst_108 = arith.constant dense<0.000000e+00> : vector<32xf32>
    %196 = vector.multi_reduction <add>, %195, %cst_108 [0] : vector<128x32xf32> to vector<32xf32>
    %197 = vector.shape_cast %196 : vector<32xf32> to vector<1x32xf32>
    %198 = vector.broadcast %11 : vector<1x1xf32> to vector<1x32xf32>
    %199 = arith.mulf %197, %198 : vector<1x32xf32>
    %200 = arith.mulf %194, %194 : vector<1x32xf32>
    %201 = arith.subf %199, %200 : vector<1x32xf32>
    %cst_109 = arith.constant 0.000000e+00 : f32
    %202 = vector.broadcast %cst_109 : f32 to vector<1x32xf32>
    %203 = arith.maximumf %201, %202 : vector<1x32xf32>
    %204 = vector.broadcast %194 : vector<1x32xf32> to vector<128x32xf32>
    %205 = arith.subf %189, %204 : vector<128x32xf32>
    %cst_110 = arith.constant 9.99999974E-6 : f32
    %206 = vector.broadcast %cst_110 : f32 to vector<1x32xf32>
    %207 = arith.addf %203, %206 : vector<1x32xf32>
    %208 = math.rsqrt %207 : vector<1x32xf32>
    %209 = vector.broadcast %208 : vector<1x32xf32> to vector<128x32xf32>
    %210 = arith.mulf %205, %209 : vector<128x32xf32>
    %c3_111 = arith.constant 3 : index
    %c0_112 = arith.constant 0 : index
    %c0_113 = arith.constant 0 : index
    %211 = vector.load %arg7[%c3_111, %c0_112, %c0_113] : memref<5x1x32xf32, #tpu.memory_space<vmem>>, vector<1x1x32xf32>
    %212 = vector.shape_cast %211 : vector<1x1x32xf32> to vector<1x32xf32>
    %213 = vector.broadcast %212 : vector<1x32xf32> to vector<128x32xf32>
    %214 = arith.mulf %210, %213 : vector<128x32xf32>
    %c3_114 = arith.constant 3 : index
    %c0_115 = arith.constant 0 : index
    %c0_116 = arith.constant 0 : index
    %215 = vector.load %arg8[%c3_114, %c0_115, %c0_116] : memref<5x1x32xf32, #tpu.memory_space<vmem>>, vector<1x1x32xf32>
    %216 = vector.shape_cast %215 : vector<1x1x32xf32> to vector<1x32xf32>
    %217 = vector.broadcast %216 : vector<1x32xf32> to vector<128x32xf32>
    %218 = arith.addf %214, %217 : vector<128x32xf32>
    %cst_117 = arith.constant 0.000000e+00 : f32
    %219 = vector.broadcast %cst_117 : f32 to vector<128x32xf32>
    %220 = arith.maximumf %218, %219 : vector<128x32xf32>
    %221 = arith.truncf %220 : vector<128x32xf32> to vector<128x32xbf16>
    %c4 = arith.constant 4 : index
    %c0_118 = arith.constant 0 : index
    %c0_119 = arith.constant 0 : index
    %222 = vector.load %arg3[%c4, %c0_118, %c0_119] : memref<5x32x64xbf16, #tpu.memory_space<vmem>>, vector<1x32x64xbf16>
    %223 = vector.shape_cast %222 : vector<1x32x64xbf16> to vector<32x64xbf16>
    %cst_120 = arith.constant dense<0.000000e+00> : vector<128x64xf32>
    %224 = tpu.matmul %221, %223, %cst_120 {dimension_numbers = #tpu.dot_dimension_numbers<[1], [0], [0], [1], [0, 0, 1, 1], [], []>} : vector<128x32xbf16>, vector<32x64xbf16>, vector<128x64xf32> -> vector<128x64xf32>
    %c0_121 = arith.constant 0 : index
    %c0_122 = arith.constant 0 : index
    %225 = vector.load %arg0[%c0_121, %c0_122] : memref<128x128xbf16, #tpu.memory_space<vmem>>, vector<128x128xbf16>
    %226 = arith.truncf %224 : vector<128x64xf32> to vector<128x64xbf16>
    %cst_123 = arith.constant dense<0.000000e+00> : vector<128x64xf32>
    %227 = tpu.matmul %225, %226, %cst_123 {dimension_numbers = #tpu.dot_dimension_numbers<[1], [0], [0], [1], [0, 0, 1, 1], [], []>} : vector<128x128xbf16>, vector<128x64xbf16>, vector<128x64xf32> -> vector<128x64xf32>
    %c4_124 = arith.constant 4 : index
    %c0_125 = arith.constant 0 : index
    %c0_126 = arith.constant 0 : index
    %228 = vector.load %arg4[%c4_124, %c0_125, %c0_126] : memref<5x1x64xf32, #tpu.memory_space<vmem>>, vector<1x1x64xf32>
    %229 = vector.shape_cast %228 : vector<1x1x64xf32> to vector<1x64xf32>
    %230 = vector.broadcast %229 : vector<1x64xf32> to vector<128x64xf32>
    %231 = arith.addf %227, %230 : vector<128x64xf32>
    %cst_127 = arith.constant 0.000000e+00 : f32
    %232 = vector.broadcast %cst_127 : f32 to vector<128x64xf32>
    %233 = arith.maximumf %231, %232 : vector<128x64xf32>
    %234 = arith.truncf %233 : vector<128x64xf32> to vector<128x64xbf16>
    %c4_128 = arith.constant 4 : index
    %c0_129 = arith.constant 0 : index
    %c0_130 = arith.constant 0 : index
    %235 = vector.load %arg5[%c4_128, %c0_129, %c0_130] : memref<5x64x32xbf16, #tpu.memory_space<vmem>>, vector<1x64x32xbf16>
    %236 = vector.shape_cast %235 : vector<1x64x32xbf16> to vector<64x32xbf16>
    %cst_131 = arith.constant dense<0.000000e+00> : vector<128x32xf32>
    %237 = tpu.matmul %234, %236, %cst_131 {dimension_numbers = #tpu.dot_dimension_numbers<[1], [0], [0], [1], [0, 0, 1, 1], [], []>} : vector<128x64xbf16>, vector<64x32xbf16>, vector<128x32xf32> -> vector<128x32xf32>
    %c4_132 = arith.constant 4 : index
    %c0_133 = arith.constant 0 : index
    %c0_134 = arith.constant 0 : index
    %238 = vector.load %arg6[%c4_132, %c0_133, %c0_134] : memref<5x1x32xf32, #tpu.memory_space<vmem>>, vector<1x1x32xf32>
    %239 = vector.shape_cast %238 : vector<1x1x32xf32> to vector<1x32xf32>
    %240 = vector.broadcast %239 : vector<1x32xf32> to vector<128x32xf32>
    %241 = arith.addf %237, %240 : vector<128x32xf32>
    %242 = arith.mulf %241, %2 : vector<128x32xf32>
    %cst_135 = arith.constant dense<0.000000e+00> : vector<32xf32>
    %243 = vector.multi_reduction <add>, %242, %cst_135 [0] : vector<128x32xf32> to vector<32xf32>
    %244 = vector.shape_cast %243 : vector<32xf32> to vector<1x32xf32>
    %245 = vector.broadcast %11 : vector<1x1xf32> to vector<1x32xf32>
    %246 = arith.mulf %244, %245 : vector<1x32xf32>
    %247 = arith.mulf %242, %241 : vector<128x32xf32>
    %cst_136 = arith.constant dense<0.000000e+00> : vector<32xf32>
    %248 = vector.multi_reduction <add>, %247, %cst_136 [0] : vector<128x32xf32> to vector<32xf32>
    %249 = vector.shape_cast %248 : vector<32xf32> to vector<1x32xf32>
    %250 = vector.broadcast %11 : vector<1x1xf32> to vector<1x32xf32>
    %251 = arith.mulf %249, %250 : vector<1x32xf32>
    %252 = arith.mulf %246, %246 : vector<1x32xf32>
    %253 = arith.subf %251, %252 : vector<1x32xf32>
    %cst_137 = arith.constant 0.000000e+00 : f32
    %254 = vector.broadcast %cst_137 : f32 to vector<1x32xf32>
    %255 = arith.maximumf %253, %254 : vector<1x32xf32>
    %256 = vector.broadcast %246 : vector<1x32xf32> to vector<128x32xf32>
    %257 = arith.subf %241, %256 : vector<128x32xf32>
    %cst_138 = arith.constant 9.99999974E-6 : f32
    %258 = vector.broadcast %cst_138 : f32 to vector<1x32xf32>
    %259 = arith.addf %255, %258 : vector<1x32xf32>
    %260 = math.rsqrt %259 : vector<1x32xf32>
    %261 = vector.broadcast %260 : vector<1x32xf32> to vector<128x32xf32>
    %262 = arith.mulf %257, %261 : vector<128x32xf32>
    %c4_139 = arith.constant 4 : index
    %c0_140 = arith.constant 0 : index
    %c0_141 = arith.constant 0 : index
    %263 = vector.load %arg7[%c4_139, %c0_140, %c0_141] : memref<5x1x32xf32, #tpu.memory_space<vmem>>, vector<1x1x32xf32>
    %264 = vector.shape_cast %263 : vector<1x1x32xf32> to vector<1x32xf32>
    %265 = vector.broadcast %264 : vector<1x32xf32> to vector<128x32xf32>
    %266 = arith.mulf %262, %265 : vector<128x32xf32>
    %c4_142 = arith.constant 4 : index
    %c0_143 = arith.constant 0 : index
    %c0_144 = arith.constant 0 : index
    %267 = vector.load %arg8[%c4_142, %c0_143, %c0_144] : memref<5x1x32xf32, #tpu.memory_space<vmem>>, vector<1x1x32xf32>
    %268 = vector.shape_cast %267 : vector<1x1x32xf32> to vector<1x32xf32>
    %269 = vector.broadcast %268 : vector<1x32xf32> to vector<128x32xf32>
    %270 = arith.addf %266, %269 : vector<128x32xf32>
    %c0_145 = arith.constant 0 : index
    %c0_146 = arith.constant 0 : index
    %271 = vector.load %arg9[%c0_145, %c0_146] : memref<2x128xf32, #tpu.memory_space<vmem>>, vector<2x128xf32>
    %cst_147 = arith.constant dense<0.000000e+00> : vector<2x32xf32>
    %272 = tpu.matmul %271, %270, %cst_147 {dimension_numbers = #tpu.dot_dimension_numbers<[1], [0], [0], [1], [0, 0, 1, 1], [], []>} : vector<2x128xf32>, vector<128x32xf32>, vector<2x32xf32> -> vector<2x32xf32>
    %c0_148 = arith.constant 0 : index
    %c0_149 = arith.constant 0 : index
    %273 = vector.load %arg10[%c0_148, %c0_149] : memref<2x32xf32, #tpu.memory_space<vmem>>, vector<2x32xf32>
    tpu.vector_store %arg10[%c0_148, %c0_149], %272 {strides = array<i32>} : memref<2x32xf32, #tpu.memory_space<vmem>>, vector<2x32xf32>,
    return
  }
}

</mosaic_0001>

<llo_original>
// kernel: tpu_custom_call.1
$region0: #{tpu_custom_call.1}
  #allocation0 [shape = 'u32[]', space=smem, size = 0x4, offset = 0x4, fixed_abs, tag = 'smem constant byte address 0x4 - core index']
  #allocation1 [shape = 'u32[144,128]{1,0:T(1,128)}', space=vmem, size = 0x12000, scoped, tag = 'internal scratch']
  %s0 = inlined_call_operand.vmem [shape: bf16[128,128], index: 0, kind: input, shape index: {}]
  %s1 = inlined_call_operand.vmem [shape: f32[128,32], index: 1, kind: input, shape index: {}]
  %s2 = inlined_call_operand.vmem [shape: f32[128,1], index: 2, kind: input, shape index: {}]
  %s3 = inlined_call_operand.vmem [shape: bf16[5,32,64], index: 3, kind: input, shape index: {}]
  %s4 = inlined_call_operand.vmem [shape: f32[5,1,64], index: 4, kind: input, shape index: {}]
  %s5 = inlined_call_operand.vmem [shape: bf16[5,64,32], index: 5, kind: input, shape index: {}]
  %s6 = inlined_call_operand.vmem [shape: f32[5,1,32], index: 6, kind: input, shape index: {}]
  %s7 = inlined_call_operand.vmem [shape: f32[5,1,32], index: 7, kind: input, shape index: {}]
  %s8 = inlined_call_operand.vmem [shape: f32[5,1,32], index: 8, kind: input, shape index: {}]
  %s9 = inlined_call_operand.vmem [shape: f32[2,128], index: 9, kind: input, shape index: {}]
  %s10 = inlined_call_operand.hbm [shape: f32[2,32], index: 10, kind: output, shape index: {}]
  %s11 = sld [smem:[#allocation0]]
  $region50: #{tpu_custom_call.1} parent=0
    _
  %s13 = ssub.s32 1, %s11
  %s14 = scalar_select 0, %s13, %s11
  $region1: #{tpu_custom_call.1} parent=0
    #allocation2 [shape = 'u8[1024]{0}', space=vmem, size = 0x400, scoped, tag = 'output window, operand 0, single buffered']
    #allocation3 [shape = 's32[1]{0}', space=sflag, size = 0x4, scoped, tag = 'scoped memory for tpu_custom_call.1']
    %15 = vsyncpa [#allocation3], 0
    // Predicated region
    $region2: #{tpu_custom_call.1} parent=1 // pred_check
      _
    $region3: #{tpu_custom_call.1} parent=1 // pred_check_branch
      %17 = sbr.rel (0) target = $region5
    $region4: #{tpu_custom_call.1} parent=1 // pred_region
      _
    $region5: #{tpu_custom_call.1} parent=1 // pred_fallthru
      _
    // Predicated region
    $region6: #{tpu_custom_call.1} parent=1 // pred_check
      _
    $region7: #{tpu_custom_call.1} parent=1 // pred_check_branch
      %19 = sbr.rel (0) target = $region9
    $region8: #{tpu_custom_call.1} parent=1 // pred_region
      _
    $region9: #{tpu_custom_call.1} parent=1 // pred_fallthru
      _
    // Predicated region
    $region10: #{tpu_custom_call.1} parent=1 // pred_check
      _
    $region11: #{tpu_custom_call.1} parent=1 // pred_check_branch
      %21 = sbr.rel (0) target = $region13
    $region12: #{tpu_custom_call.1} parent=1 // pred_region
      _
    $region13: #{tpu_custom_call.1} parent=1 // pred_fallthru
      _
    // Predicated region
    $region14: #{tpu_custom_call.1} parent=1 // pred_check
      _
    $region15: #{tpu_custom_call.1} parent=1 // pred_check_branch
      %23 = sbr.rel (0) target = $region17
    $region16: #{tpu_custom_call.1} parent=1 // pred_region
      _
    $region17: #{tpu_custom_call.1} parent=1 // pred_fallthru
      _
    // Predicated region
    $region18: #{tpu_custom_call.1} parent=1 // pred_check
      _
    $region19: #{tpu_custom_call.1} parent=1 // pred_check_branch
      %25 = sbr.rel (0) target = $region21
    $region20: #{tpu_custom_call.1} parent=1 // pred_region
      _
    $region21: #{tpu_custom_call.1} parent=1 // pred_fallthru
      _
    // Predicated region
    $region22: #{tpu_custom_call.1} parent=1 // pred_check
      _
    $region23: #{tpu_custom_call.1} parent=1 // pred_check_branch
      %27 = sbr.rel (0) target = $region25
    $region24: #{tpu_custom_call.1} parent=1 // pred_region
      _
    $region25: #{tpu_custom_call.1} parent=1 // pred_fallthru
      _
    // Predicated region
    $region26: #{tpu_custom_call.1} parent=1 // pred_check
      _
    $region27: #{tpu_custom_call.1} parent=1 // pred_check_branch
      %29 = sbr.rel (0) target = $region29
    $region28: #{tpu_custom_call.1} parent=1 // pred_region
      _
    $region29: #{tpu_custom_call.1} parent=1 // pred_fallthru
      _
    // Predicated region
    $region30: #{tpu_custom_call.1} parent=1 // pred_check
      _
    $region31: #{tpu_custom_call.1} parent=1 // pred_check_branch
      %31 = sbr.rel (0) target = $region33
    $region32: #{tpu_custom_call.1} parent=1 // pred_region
      _
    $region33: #{tpu_custom_call.1} parent=1 // pred_fallthru
      _
    // Predicated region
    $region34: #{tpu_custom_call.1} parent=1 // pred_check
      _
    $region35: #{tpu_custom_call.1} parent=1 // pred_check_branch
      %33 = sbr.rel (0) target = $region37
    $region36: #{tpu_custom_call.1} parent=1 // pred_region
      _
    $region37: #{tpu_custom_call.1} parent=1 // pred_fallthru
      _
    // Predicated region
    $region38: #{tpu_custom_call.1} parent=1 // pred_check
      _
    $region39: #{tpu_custom_call.1} parent=1 // pred_check_branch
      %35 = sbr.rel (0) target = $region41
    $region40: #{tpu_custom_call.1} parent=1 // pred_region
      _
    $region41: #{tpu_custom_call.1} parent=1 // pred_fallthru
      _
    %v37 = vld [vmem:[%s2] sm:$0xff]
    %v38 = vld [vmem:[%s2 + $0x8] sm:$0xff]
    %v39 = vld [vmem:[%s2 + $0x10] sm:$0xff]
    %v40 = vld [vmem:[%s2 + $0x18] sm:$0xff]
    %v41 = vld [vmem:[%s2 + $0x20] sm:$0xff]
    %v42 = vld [vmem:[%s2 + $0x28] sm:$0xff]
    %v43 = vld [vmem:[%s2 + $0x30] sm:$0xff]
    %v44 = vld [vmem:[%s2 + $0x38] sm:$0xff]
    %v45 = vld [vmem:[%s2 + $0x40] sm:$0xff]
    %v46 = vld [vmem:[%s2 + $0x48] sm:$0xff]
    %v47 = vld [vmem:[%s2 + $0x50] sm:$0xff]
    %v48 = vld [vmem:[%s2 + $0x58] sm:$0xff]
    %v49 = vld [vmem:[%s2 + $0x60] sm:$0xff]
    %v50 = vld [vmem:[%s2 + $0x68] sm:$0xff]
    %v51 = vld [vmem:[%s2 + $0x70] sm:$0xff]
    %v52 = vld [vmem:[%s2 + $0x78] sm:$0xff]
    %54 = vset.pattern.permute.xlu0 0
    %55 = vperm.xlu0 %54, %v37
    %v56 = vpop.permute.xlu0 %55
    %59 = vset.pattern.permute.xlu0 0
    %60 = vperm.xlu0 %59, %v38
    %v61 = vpop.permute.xlu0 %60
    %64 = vset.pattern.permute.xlu0 0
    %65 = vperm.xlu0 %64, %v39
    %v66 = vpop.permute.xlu0 %65
    %69 = vset.pattern.permute.xlu0 0
    %70 = vperm.xlu0 %69, %v40
    %v71 = vpop.permute.xlu0 %70
    %74 = vset.pattern.permute.xlu0 0
    %75 = vperm.xlu0 %74, %v41
    %v76 = vpop.permute.xlu0 %75
    %79 = vset.pattern.permute.xlu0 0
    %80 = vperm.xlu0 %79, %v42
    %v81 = vpop.permute.xlu0 %80
    %84 = vset.pattern.permute.xlu0 0
    %85 = vperm.xlu0 %84, %v43
    %v86 = vpop.permute.xlu0 %85
    %89 = vset.pattern.permute.xlu0 0
    %90 = vperm.xlu0 %89, %v44
    %v91 = vpop.permute.xlu0 %90
    %94 = vset.pattern.permute.xlu0 0
    %95 = vperm.xlu0 %94, %v45
    %v96 = vpop.permute.xlu0 %95
    %99 = vset.pattern.permute.xlu0 0
    %100 = vperm.xlu0 %99, %v46
    %v101 = vpop.permute.xlu0 %100
    %104 = vset.pattern.permute.xlu0 0
    %105 = vperm.xlu0 %104, %v47
    %v106 = vpop.permute.xlu0 %105
    %109 = vset.pattern.permute.xlu0 0
    %110 = vperm.xlu0 %109, %v48
    %v111 = vpop.permute.xlu0 %110
    %114 = vset.pattern.permute.xlu0 0
    %115 = vperm.xlu0 %114, %v49
    %v116 = vpop.permute.xlu0 %115
    %119 = vset.pattern.permute.xlu0 0
    %120 = vperm.xlu0 %119, %v50
    %v121 = vpop.permute.xlu0 %120
    %124 = vset.pattern.permute.xlu0 0
    %125 = vperm.xlu0 %124, %v51
    %v126 = vpop.permute.xlu0 %125
    %129 = vset.pattern.permute.xlu0 0
    %130 = vperm.xlu0 %129, %v52
    %v131 = vpop.permute.xlu0 %130
    %vm133 = vcmask 7168
    %v134 = vsel %vm133, %v37, 0.0
    %v135 = vsel %vm133, %v38, 0.0
    %v136 = vadd.f32 %v134, %v135
    %v137 = vsel %vm133, %v39, 0.0
    %v138 = vadd.f32 %v136, %v137
    %v139 = vsel %vm133, %v40, 0.0
    %v140 = vadd.f32 %v138, %v139
    %v141 = vsel %vm133, %v41, 0.0
    %v142 = vadd.f32 %v140, %v141
    %v143 = vsel %vm133, %v42, 0.0
    %v144 = vadd.f32 %v142, %v143
    %v145 = vsel %vm133, %v43, 0.0
    %v146 = vadd.f32 %v144, %v145
    %v147 = vsel %vm133, %v44, 0.0
    %v148 = vadd.f32 %v146, %v147
    %v149 = vsel %vm133, %v45, 0.0
    %v150 = vadd.f32 %v148, %v149
    %v151 = vsel %vm133, %v46, 0.0
    %v152 = vadd.f32 %v150, %v151
    %v153 = vsel %vm133, %v47, 0.0
    %v154 = vadd.f32 %v152, %v153
    %v155 = vsel %vm133, %v48, 0.0
    %v156 = vadd.f32 %v154, %v155
    %v157 = vsel %vm133, %v49, 0.0
    %v158 = vadd.f32 %v156, %v157
    %v159 = vsel %vm133, %v50, 0.0
    %v160 = vadd.f32 %v158, %v159
    %v161 = vsel %vm133, %v51, 0.0
    %v162 = vadd.f32 %v160, %v161
    %v163 = vsel %vm133, %v52, 0.0
    %v164 = vadd.f32 %v162, %v163
    %165 = vadd.xlane.f32.xlu0 %v164
    %v166 = vpop.xlane.xlu0 %165
    %v167 = vrot.slane %v166, 4
    %v168 = vadd.f32 %v166, %v167
    %v169 = vrot.slane %v168, 2
    %v170 = vadd.f32 %v168, %v169
    %v171 = vrot.slane %v170, 1
    %v172 = vadd.f32 %v170, %v171
    %s173 = vtos %v172
    %v174 = vstv %s173
    %v175 = vmax.f32 %v174, 1.0
    %v176 = vrcp.pop %v175
    %v177 = vmul.f32 1.0, %v176
    %v178 = vld [vmem:[%s1] sm:$0xff]
    %v179 = vld [vmem:[%s1 + $0x8] sm:$0xff]
    %v180 = vld [vmem:[%s1 + $0x10] sm:$0xff]
    %v181 = vld [vmem:[%s1 + $0x18] sm:$0xff]
    %v182 = vld [vmem:[%s1 + $0x20] sm:$0xff]
    %v183 = vld [vmem:[%s1 + $0x28] sm:$0xff]
    %v184 = vld [vmem:[%s1 + $0x30] sm:$0xff]
    %v185 = vld [vmem:[%s1 + $0x38] sm:$0xff]
    %v186 = vld [vmem:[%s1 + $0x40] sm:$0xff]
    %v187 = vld [vmem:[%s1 + $0x48] sm:$0xff]
    %v188 = vld [vmem:[%s1 + $0x50] sm:$0xff]
    %v189 = vld [vmem:[%s1 + $0x58] sm:$0xff]
    %v190 = vld [vmem:[%s1 + $0x60] sm:$0xff]
    %v191 = vld [vmem:[%s1 + $0x68] sm:$0xff]
    %v192 = vld [vmem:[%s1 + $0x70] sm:$0xff]
    %v193 = vld [vmem:[%s1 + $0x78] sm:$0xff]
    %v194 = vpack.c.bf16 %v179, %v178
    %v195 = vpack.c.bf16 %v181, %v180
    %v196 = vpack.c.bf16 %v183, %v182
    %v197 = vpack.c.bf16 %v185, %v184
    %v198 = vpack.c.bf16 %v187, %v186
    %v199 = vpack.c.bf16 %v189, %v188
    %v200 = vpack.c.bf16 %v191, %v190
    %v201 = vpack.c.bf16 %v193, %v192
    %v202 = vld [vmem:[%s3] sm:$0xf]
    %v203 = vld [vmem:[%s3 + $0x4] sm:$0xf]
    %v204 = vld [vmem:[%s3 + $0x8] sm:$0xf]
    %v205 = vld [vmem:[%s3 + $0xc] sm:$0xf]
    %v210 = vunpack.c.l.b16 %v202
    %v211 = vunpack.c.l.b16 %v203
    %v212 = vunpack.c.l.b16 %v204
    %v213 = vunpack.c.l.b16 %v205
    %v214 = vpack.c.b16 %v211, %v210
    %v215 = vpack.c.b16 %v213, %v212
    %vm218 = vcmask 261120
    %v220 = vsel %vm218, %v194, 0
    %v223 = vsel %vm218, %v195, 0
    %v226 = vsel %vm218, %v196, 0
    %v229 = vsel %vm218, %v197, 0
    %v232 = vsel %vm218, %v198, 0
    %v235 = vsel %vm218, %v199, 0
    %v238 = vsel %vm218, %v200, 0
    %v241 = vsel %vm218, %v201, 0
    %243 = vmatprep.subr.bf16.mxu0 0
    %244 = vmatpush1.bf16.msra.mxu0 0
    %245 = vmatprep.subr.bf16.mxu0 0
    %246 = vmatpush1.bf16.msra.mxu0 0
    %247 = vmatprep.subr.bf16.mxu0 0
    %248 = vmatpush1.bf16.msra.mxu0 0
    %249 = vmatprep.subr.bf16.mxu0 0
    %250 = vmatpush1.bf16.msra.mxu0 0
    %251 = vmatprep.subr.bf16.mxu0 0
    %252 = vmatpush1.bf16.msra.mxu0 0
    %253 = vmatprep.subr.bf16.mxu0 0
    %254 = vmatpush1.bf16.msra.mxu0 0
    %255 = vmatprep.subr.bf16.mxu0 0
    %256 = vmatpush1.bf16.msra.mxu0 %v215
    %257 = vmatprep.subr.bf16.mxu0 0
    %258 = vmatpush1.bf16.msra.mxu0 %v214
    %259 = vmatprep.subr.bf16.mxu0 0
    %260 = vmatpush2.bf16.msra.mxu0 0
    %261 = vmatprep.subr.bf16.mxu0 0
    %262 = vmatpush2.bf16.msra.mxu0 0
    %263 = vmatprep.subr.bf16.mxu0 0
    %264 = vmatpush2.bf16.msra.mxu0 0
    %265 = vmatprep.subr.bf16.mxu0 0
    %266 = vmatpush2.bf16.msra.mxu0 0
    %267 = vmatprep.subr.bf16.mxu0 0
    %268 = vmatpush2.bf16.msra.mxu0 0
    %269 = vmatprep.subr.bf16.mxu0 0
    %270 = vmatpush2.bf16.msra.mxu0 0
    %271 = vmatprep.subr.bf16.mxu0 0
    %272 = vmatpush2.bf16.msra.mxu0 0
    %273 = vmatprep.subr.bf16.mxu0 0
    %274 = vmatpush2.bf16.msra.mxu0 0
    %275 = vmatprep.mubr.bf16.mxu0 0
    %276 = vmatmul.mubr.bf16.gmra.mxu0 %v220
    %v277 = vpop.f32.mrf.mxu0
    %v278 = vadd.f32 0.0, %v277
    %v279 = vpop.f32.mrf.mxu0
    %v280 = vpop.f32.mrf.mxu0
    %v281 = vadd.f32 0.0, %v280
    %v282 = vpop.f32.mrf.mxu0
    %283 = vmatprep.mubr.bf16.mxu0 0
    %284 = vmatmul.mubr.bf16.gmra.mxu0 %v223
    %v285 = vpop.f32.mrf.mxu0
    %v286 = vadd.f32 0.0, %v285
    %v287 = vpop.f32.mrf.mxu0
    %v288 = vpop.f32.mrf.mxu0
    %v289 = vadd.f32 0.0, %v288
    %v290 = vpop.f32.mrf.mxu0
    %291 = vmatprep.mubr.bf16.mxu0 0
    %292 = vmatmul.mubr.bf16.gmra.mxu0 %v226
    %v293 = vpop.f32.mrf.mxu0
    %v294 = vadd.f32 0.0, %v293
    %v295 = vpop.f32.mrf.mxu0
    %v296 = vpop.f32.mrf.mxu0
    %v297 = vadd.f32 0.0, %v296
    %v298 = vpop.f32.mrf.mxu0
    %299 = vmatprep.mubr.bf16.mxu0 0
    %300 = vmatmul.mubr.bf16.gmra.mxu0 %v229
    %v301 = vpop.f32.mrf.mxu0
    %v302 = vadd.f32 0.0, %v301
    %v303 = vpop.f32.mrf.mxu0
    %v304 = vpop.f32.mrf.mxu0
    %v305 = vadd.f32 0.0, %v304
    %v306 = vpop.f32.mrf.mxu0
    %307 = vmatprep.mubr.bf16.mxu0 0
    %308 = vmatmul.mubr.bf16.gmra.mxu0 %v232
    %v309 = vpop.f32.mrf.mxu0
    %v310 = vadd.f32 0.0, %v309
    %v311 = vpop.f32.mrf.mxu0
    %v312 = vpop.f32.mrf.mxu0
    %v313 = vadd.f32 0.0, %v312
    %v314 = vpop.f32.mrf.mxu0
    %315 = vmatprep.mubr.bf16.mxu0 0
    %316 = vmatmul.mubr.bf16.gmra.mxu0 %v235
    %v317 = vpop.f32.mrf.mxu0
    %v318 = vadd.f32 0.0, %v317
    %v319 = vpop.f32.mrf.mxu0
    %v320 = vpop.f32.mrf.mxu0
    %v321 = vadd.f32 0.0, %v320
    %v322 = vpop.f32.mrf.mxu0
    %323 = vmatprep.mubr.bf16.mxu0 0
    %324 = vmatmul.mubr.bf16.gmra.mxu0 %v238
    %v325 = vpop.f32.mrf.mxu0
    %v326 = vadd.f32 0.0, %v325
    %v327 = vpop.f32.mrf.mxu0
    %v328 = vpop.f32.mrf.mxu0
    %v329 = vadd.f32 0.0, %v328
    %v330 = vpop.f32.mrf.mxu0
    %331 = vmatprep.mubr.bf16.mxu0 0
    %332 = vmatmul.mubr.bf16.gmra.mxu0 %v241
    %v333 = vpop.f32.mrf.mxu0
    %v334 = vadd.f32 0.0, %v333
    %v335 = vpop.f32.mrf.mxu0
    %v336 = vpop.f32.mrf.mxu0
    %v337 = vadd.f32 0.0, %v336
    %v338 = vpop.f32.mrf.mxu0
    %339 = vdwg.mxu0
    %v340 = vld [vmem:[%s0] sm:$0xf]
    %v341 = vld [vmem:[%s0 + $0x4] sm:$0xf]
    %v342 = vld [vmem:[%s0 + $0x8] sm:$0xf]
    %v343 = vld [vmem:[%s0 + $0xc] sm:$0xf]
    %v344 = vld [vmem:[%s0 + $0x10] sm:$0xf]
    %v345 = vld [vmem:[%s0 + $0x14] sm:$0xf]
    %v346 = vld [vmem:[%s0 + $0x18] sm:$0xf]
    %v347 = vld [vmem:[%s0 + $0x1c] sm:$0xf]
    %v348 = vld [vmem:[%s0 + $0x20] sm:$0xf]
    %v349 = vld [vmem:[%s0 + $0x24] sm:$0xf]
    %v350 = vld [vmem:[%s0 + $0x28] sm:$0xf]
    %v351 = vld [vmem:[%s0 + $0x2c] sm:$0xf]
    %v352 = vld [vmem:[%s0 + $0x30] sm:$0xf]
    %v353 = vld [vmem:[%s0 + $0x34] sm:$0xf]
    %v354 = vld [vmem:[%s0 + $0x38] sm:$0xf]
    %v355 = vld [vmem:[%s0 + $0x3c] sm:$0xf]
    %v356 = vpack.c.bf16 %v281, %v278
    %v357 = vpack.c.bf16 %v289, %v286
    %v358 = vpack.c.bf16 %v297, %v294
    %v359 = vpack.c.bf16 %v305, %v302
    %v360 = vpack.c.bf16 %v313, %v310
    %v361 = vpack.c.bf16 %v321, %v318
    %v362 = vpack.c.bf16 %v329, %v326
    %v363 = vpack.c.bf16 %v337, %v334
    %v364 = vld [vmem:[%s4] sm:$0x1]
    %v366 = vlaneseq
    %v367 = vshrl.u32 %v366, 7
    %v368 = vsub.s32 0, %v367
    %v369 = vrot.slane %v364, %v368
    %v387 = vunpack.c.l.b16 %v340
    %v388 = vunpack.c.l.b16 %v341
    %v389 = vunpack.c.l.b16 %v342
    %v390 = vunpack.c.l.b16 %v343
    %v391 = vunpack.c.l.b16 %v344
    %v392 = vunpack.c.l.b16 %v345
    %v393 = vunpack.c.l.b16 %v346
    %v394 = vunpack.c.l.b16 %v347
    %v395 = vunpack.c.l.b16 %v348
    %v396 = vunpack.c.l.b16 %v349
    %v397 = vunpack.c.l.b16 %v350
    %v398 = vunpack.c.l.b16 %v351
    %v399 = vunpack.c.l.b16 %v352
    %v400 = vunpack.c.l.b16 %v353
    %v401 = vunpack.c.l.b16 %v354
    %v402 = vunpack.c.l.b16 %v355
    %v403 = vpack.c.b16 %v388, %v387
    %v404 = vpack.c.b16 %v390, %v389
    %v405 = vpack.c.b16 %v392, %v391
    %v406 = vpack.c.b16 %v394, %v393
    %v407 = vpack.c.b16 %v396, %v395
    %v408 = vpack.c.b16 %v398, %v397
    %v409 = vpack.c.b16 %v400, %v399
    %v410 = vpack.c.b16 %v402, %v401
    %419 = vmatprep.subr.bf16.mxu0 0
    %420 = vmatpush1.bf16.msra.mxu0 %v363
    %421 = vmatprep.subr.bf16.mxu0 0
    %422 = vmatpush1.bf16.msra.mxu0 %v362
    %423 = vmatprep.subr.bf16.mxu0 0
    %424 = vmatpush1.bf16.msra.mxu0 %v361
    %425 = vmatprep.subr.bf16.mxu0 0
    %426 = vmatpush1.bf16.msra.mxu0 %v360
    %427 = vmatprep.subr.bf16.mxu0 0
    %428 = vmatpush1.bf16.msra.mxu0 %v359
    %429 = vmatprep.subr.bf16.mxu0 0
    %430 = vmatpush1.bf16.msra.mxu0 %v358
    %431 = vmatprep.subr.bf16.mxu0 0
    %432 = vmatpush1.bf16.msra.mxu0 %v357
    %433 = vmatprep.subr.bf16.mxu0 0
    %434 = vmatpush1.bf16.msra.mxu0 %v356
    %435 = vmatprep.subr.bf16.mxu0 0
    %436 = vmatpush2.bf16.msra.mxu0 0
    %437 = vmatprep.subr.bf16.mxu0 0
    %438 = vmatpush2.bf16.msra.mxu0 0
    %439 = vmatprep.subr.bf16.mxu0 0
    %440 = vmatpush2.bf16.msra.mxu0 0
    %441 = vmatprep.subr.bf16.mxu0 0
    %442 = vmatpush2.bf16.msra.mxu0 0
    %443 = vmatprep.subr.bf16.mxu0 0
    %444 = vmatpush2.bf16.msra.mxu0 0
    %445 = vmatprep.subr.bf16.mxu0 0
    %446 = vmatpush2.bf16.msra.mxu0 0
    %447 = vmatprep.subr.bf16.mxu0 0
    %448 = vmatpush2.bf16.msra.mxu0 0
    %449 = vmatprep.subr.bf16.mxu0 0
    %450 = vmatpush2.bf16.msra.mxu0 0
    %451 = vmatprep.mubr.bf16.mxu0 0
    %452 = vmatmul.mubr.bf16.gmra.mxu0 %v403
    %v453 = vpop.f32.mrf.mxu0
    %v454 = vadd.f32 %v369, %v453
    %v455 = vpop.f32.mrf.mxu0
    %v456 = vpop.f32.mrf.mxu0
    %v457 = vadd.f32 %v369, %v456
    %v458 = vpop.f32.mrf.mxu0
    %459 = vmatprep.mubr.bf16.mxu0 0
    %460 = vmatmul.mubr.bf16.gmra.mxu0 %v404
    %v461 = vpop.f32.mrf.mxu0
    %v462 = vadd.f32 %v369, %v461
    %v463 = vpop.f32.mrf.mxu0
    %v464 = vpop.f32.mrf.mxu0
    %v465 = vadd.f32 %v369, %v464
    %v466 = vpop.f32.mrf.mxu0
    %467 = vmatprep.mubr.bf16.mxu0 0
    %468 = vmatmul.mubr.bf16.gmra.mxu0 %v405
    %v469 = vpop.f32.mrf.mxu0
    %v470 = vadd.f32 %v369, %v469
    %v471 = vpop.f32.mrf.mxu0
    %v472 = vpop.f32.mrf.mxu0
    %v473 = vadd.f32 %v369, %v472
    %v474 = vpop.f32.mrf.mxu0
    %475 = vmatprep.mubr.bf16.mxu0 0
    %476 = vmatmul.mubr.bf16.gmra.mxu0 %v406
    %v477 = vpop.f32.mrf.mxu0
    %v478 = vadd.f32 %v369, %v477
    %v479 = vpop.f32.mrf.mxu0
    %v480 = vpop.f32.mrf.mxu0
    %v481 = vadd.f32 %v369, %v480
    %v482 = vpop.f32.mrf.mxu0
    %483 = vmatprep.mubr.bf16.mxu0 0
    %484 = vmatmul.mubr.bf16.gmra.mxu0 %v407
    %v485 = vpop.f32.mrf.mxu0
    %v486 = vadd.f32 %v369, %v485
    %v487 = vpop.f32.mrf.mxu0
    %v488 = vpop.f32.mrf.mxu0
    %v489 = vadd.f32 %v369, %v488
    %v490 = vpop.f32.mrf.mxu0
    %491 = vmatprep.mubr.bf16.mxu0 0
    %492 = vmatmul.mubr.bf16.gmra.mxu0 %v408
    %v493 = vpop.f32.mrf.mxu0
    %v494 = vadd.f32 %v369, %v493
    %v495 = vpop.f32.mrf.mxu0
    %v496 = vpop.f32.mrf.mxu0
    %v497 = vadd.f32 %v369, %v496
    %v498 = vpop.f32.mrf.mxu0
    %499 = vmatprep.mubr.bf16.mxu0 0
    %500 = vmatmul.mubr.bf16.gmra.mxu0 %v409
    %v501 = vpop.f32.mrf.mxu0
    %v502 = vadd.f32 %v369, %v501
    %v503 = vpop.f32.mrf.mxu0
    %v504 = vpop.f32.mrf.mxu0
    %v505 = vadd.f32 %v369, %v504
    %v506 = vpop.f32.mrf.mxu0
    %507 = vmatprep.mubr.bf16.mxu0 0
    %508 = vmatmul.mubr.bf16.gmra.mxu0 %v410
    %v509 = vpop.f32.mrf.mxu0
    %v510 = vadd.f32 %v369, %v509
    %v511 = vpop.f32.mrf.mxu0
    %v512 = vpop.f32.mrf.mxu0
    %v513 = vadd.f32 %v369, %v512
    %v514 = vpop.f32.mrf.mxu0
    %515 = vdwg.mxu0
    %v516 = vmax.f32 %v454, 0.0
    %v517 = vmax.f32 %v457, 0.0
    %v518 = vmax.f32 %v462, 0.0
    %v519 = vmax.f32 %v465, 0.0
    %v520 = vmax.f32 %v470, 0.0
    %v521 = vmax.f32 %v473, 0.0
    %v522 = vmax.f32 %v478, 0.0
    %v523 = vmax.f32 %v481, 0.0
    %v524 = vmax.f32 %v486, 0.0
    %v525 = vmax.f32 %v489, 0.0
    %v526 = vmax.f32 %v494, 0.0
    %v527 = vmax.f32 %v497, 0.0
    %v528 = vmax.f32 %v502, 0.0
    %v529 = vmax.f32 %v505, 0.0
    %v530 = vmax.f32 %v510, 0.0
    %v531 = vmax.f32 %v513, 0.0
    %v532 = vpack.c.bf16 %v517, %v516
    %v533 = vpack.c.bf16 %v519, %v518
    %v534 = vpack.c.bf16 %v521, %v520
    %v535 = vpack.c.bf16 %v523, %v522
    %v536 = vpack.c.bf16 %v525, %v524
    %v537 = vpack.c.bf16 %v527, %v526
    %v538 = vpack.c.bf16 %v529, %v528
    %v539 = vpack.c.bf16 %v531, %v530
    %v540 = vld [vmem:[%s5] sm:$0xf]
    %v541 = vld [vmem:[%s5 + $0x4] sm:$0xf]
    %v542 = vld [vmem:[%s5 + $0x8] sm:$0xf]
    %v543 = vld [vmem:[%s5 + $0xc] sm:$0xf]
    %v544 = vld [vmem:[%s5 + $0x10] sm:$0xf]
    %v545 = vld [vmem:[%s5 + $0x14] sm:$0xf]
    %v546 = vld [vmem:[%s5 + $0x18] sm:$0xf]
    %v547 = vld [vmem:[%s5 + $0x1c] sm:$0xf]
    %v548 = vld [vmem:[%s6] sm:$0x1]
    %v550 = vlaneseq
    %v551 = vshrl.u32 %v550, 7
    %v552 = vsub.s32 0, %v551
    %v553 = vrot.slane %v548, %v552
    %v563 = vunpack.c.l.b16 %v540
    %v564 = vunpack.c.l.b16 %v541
    %v565 = vunpack.c.l.b16 %v542
    %v566 = vunpack.c.l.b16 %v543
    %v567 = vunpack.c.l.b16 %v544
    %v568 = vunpack.c.l.b16 %v545
    %v569 = vunpack.c.l.b16 %v546
    %v570 = vunpack.c.l.b16 %v547
    %v571 = vpack.c.b16 %v564, %v563
    %v572 = vpack.c.b16 %v566, %v565
    %v573 = vpack.c.b16 %v568, %v567
    %v574 = vpack.c.b16 %v570, %v569
    %vm579 = vcmask 523264
    %v581 = vsel %vm579, %v532, 0
    %v584 = vsel %vm579, %v533, 0
    %v587 = vsel %vm579, %v534, 0
    %v590 = vsel %vm579, %v535, 0
    %v593 = vsel %vm579, %v536, 0
    %v596 = vsel %vm579, %v537, 0
    %v599 = vsel %vm579, %v538, 0
    %v602 = vsel %vm579, %v539, 0
    %604 = vmatprep.subr.bf16.mxu0 0
    %605 = vmatpush1.bf16.msra.mxu0 0
    %606 = vmatprep.subr.bf16.mxu0 0
    %607 = vmatpush1.bf16.msra.mxu0 0
    %608 = vmatprep.subr.bf16.mxu0 0
    %609 = vmatpush1.bf16.msra.mxu0 0
    %610 = vmatprep.subr.bf16.mxu0 0
    %611 = vmatpush1.bf16.msra.mxu0 0
    %612 = vmatprep.subr.bf16.mxu0 0
    %613 = vmatpush1.bf16.msra.mxu0 %v574
    %614 = vmatprep.subr.bf16.mxu0 0
    %615 = vmatpush1.bf16.msra.mxu0 %v573
    %616 = vmatprep.subr.bf16.mxu0 0
    %617 = vmatpush1.bf16.msra.mxu0 %v572
    %618 = vmatprep.subr.bf16.mxu0 0
    %619 = vmatpush1.bf16.msra.mxu0 %v571
    %620 = vmatprep.subr.bf16.mxu0 0
    %621 = vmatpush2.bf16.msra.mxu0 0
    %622 = vmatprep.subr.bf16.mxu0 0
    %623 = vmatpush2.bf16.msra.mxu0 0
    %624 = vmatprep.subr.bf16.mxu0 0
    %625 = vmatpush2.bf16.msra.mxu0 0
    %626 = vmatprep.subr.bf16.mxu0 0
    %627 = vmatpush2.bf16.msra.mxu0 0
    %628 = vmatprep.subr.bf16.mxu0 0
    %629 = vmatpush2.bf16.msra.mxu0 0
    %630 = vmatprep.subr.bf16.mxu0 0
    %631 = vmatpush2.bf16.msra.mxu0 0
    %632 = vmatprep.subr.bf16.mxu0 0
    %633 = vmatpush2.bf16.msra.mxu0 0
    %634 = vmatprep.subr.bf16.mxu0 0
    %635 = vmatpush2.bf16.msra.mxu0 0
    %636 = vmatprep.mubr.bf16.mxu0 0
    %637 = vmatmul.mubr.bf16.gmra.mxu0 %v581
    %v638 = vpop.f32.mrf.mxu0
    %v639 = vadd.f32 %v553, %v638
    %v640 = vpop.f32.mrf.mxu0
    %v641 = vpop.f32.mrf.mxu0
    %v642 = vadd.f32 %v553, %v641
    %v643 = vpop.f32.mrf.mxu0
    %644 = vmatprep.mubr.bf16.mxu0 0
    %645 = vmatmul.mubr.bf16.gmra.mxu0 %v584
    %v646 = vpop.f32.mrf.mxu0
    %v647 = vadd.f32 %v553, %v646
    %v648 = vpop.f32.mrf.mxu0
    %v649 = vpop.f32.mrf.mxu0
    %v650 = vadd.f32 %v553, %v649
    %v651 = vpop.f32.mrf.mxu0
    %652 = vmatprep.mubr.bf16.mxu0 0
    %653 = vmatmul.mubr.bf16.gmra.mxu0 %v587
    %v654 = vpop.f32.mrf.mxu0
    %v655 = vadd.f32 %v553, %v654
    %v656 = vpop.f32.mrf.mxu0
    %v657 = vpop.f32.mrf.mxu0
    %v658 = vadd.f32 %v553, %v657
    %v659 = vpop.f32.mrf.mxu0
    %660 = vmatprep.mubr.bf16.mxu0 0
    %661 = vmatmul.mubr.bf16.gmra.mxu0 %v590
    %v662 = vpop.f32.mrf.mxu0
    %v663 = vadd.f32 %v553, %v662
    %v664 = vpop.f32.mrf.mxu0
    %v665 = vpop.f32.mrf.mxu0
    %v666 = vadd.f32 %v553, %v665
    %v667 = vpop.f32.mrf.mxu0
    %668 = vmatprep.mubr.bf16.mxu0 0
    %669 = vmatmul.mubr.bf16.gmra.mxu0 %v593
    %v670 = vpop.f32.mrf.mxu0
    %v671 = vadd.f32 %v553, %v670
    %v672 = vpop.f32.mrf.mxu0
    %v673 = vpop.f32.mrf.mxu0
    %v674 = vadd.f32 %v553, %v673
    %v675 = vpop.f32.mrf.mxu0
    %676 = vmatprep.mubr.bf16.mxu0 0
    %677 = vmatmul.mubr.bf16.gmra.mxu0 %v596
    %v678 = vpop.f32.mrf.mxu0
    %v679 = vadd.f32 %v553, %v678
    %v680 = vpop.f32.mrf.mxu0
    %v681 = vpop.f32.mrf.mxu0
    %v682 = vadd.f32 %v553, %v681
    %v683 = vpop.f32.mrf.mxu0
    %684 = vmatprep.mubr.bf16.mxu0 0
    %685 = vmatmul.mubr.bf16.gmra.mxu0 %v599
    %v686 = vpop.f32.mrf.mxu0
    %v687 = vadd.f32 %v553, %v686
    %v688 = vpop.f32.mrf.mxu0
    %v689 = vpop.f32.mrf.mxu0
    %v690 = vadd.f32 %v553, %v689
    %v691 = vpop.f32.mrf.mxu0
    %692 = vmatprep.mubr.bf16.mxu0 0
    %693 = vmatmul.mubr.bf16.gmra.mxu0 %v602
    %v694 = vpop.f32.mrf.mxu0
    %v695 = vadd.f32 %v553, %v694
    %v696 = vpop.f32.mrf.mxu0
    %v697 = vpop.f32.mrf.mxu0
    %v698 = vadd.f32 %v553, %v697
    %v699 = vpop.f32.mrf.mxu0
    %700 = vdwg.mxu0
    %v701 = vmul.f32 %v639, %v56
    %v702 = vmul.f32 %v642, %v61
    %v703 = vmul.f32 %v647, %v66
    %v704 = vmul.f32 %v650, %v71
    %v705 = vmul.f32 %v655, %v76
    %v706 = vmul.f32 %v658, %v81
    %v707 = vmul.f32 %v663, %v86
    %v708 = vmul.f32 %v666, %v91
    %v709 = vmul.f32 %v671, %v96
    %v710 = vmul.f32 %v674, %v101
    %v711 = vmul.f32 %v679, %v106
    %v712 = vmul.f32 %v682, %v111
    %v713 = vmul.f32 %v687, %v116
    %v714 = vmul.f32 %v690, %v121
    %v715 = vmul.f32 %v695, %v126
    %v716 = vmul.f32 %v698, %v131
    %v717 = vsel %vm218, %v701, 0.0
    %v718 = vsel %vm218, %v702, 0.0
    %v719 = vadd.f32 %v717, %v718
    %v720 = vsel %vm218, %v703, 0.0
    %v721 = vadd.f32 %v719, %v720
    %v722 = vsel %vm218, %v704, 0.0
    %v723 = vadd.f32 %v721, %v722
    %v724 = vsel %vm218, %v705, 0.0
    %v725 = vadd.f32 %v723, %v724
    %v726 = vsel %vm218, %v706, 0.0
    %v727 = vadd.f32 %v725, %v726
    %v728 = vsel %vm218, %v707, 0.0
    %v729 = vadd.f32 %v727, %v728
    %v730 = vsel %vm218, %v708, 0.0
    %v731 = vadd.f32 %v729, %v730
    %v732 = vsel %vm218, %v709, 0.0
    %v733 = vadd.f32 %v731, %v732
    %v734 = vsel %vm218, %v710, 0.0
    %v735 = vadd.f32 %v733, %v734
    %v736 = vsel %vm218, %v711, 0.0
    %v737 = vadd.f32 %v735, %v736
    %v738 = vsel %vm218, %v712, 0.0
    %v739 = vadd.f32 %v737, %v738
    %v740 = vsel %vm218, %v713, 0.0
    %v741 = vadd.f32 %v739, %v740
    %v742 = vsel %vm218, %v714, 0.0
    %v743 = vadd.f32 %v741, %v742
    %v744 = vsel %vm218, %v715, 0.0
    %v745 = vadd.f32 %v743, %v744
    %v746 = vsel %vm218, %v716, 0.0
    %v747 = vadd.f32 %v745, %v746
    %v748 = vrot.slane %v747, 4
    %v749 = vadd.f32 %v747, %v748
    %v750 = vrot.slane %v749, 2
    %v751 = vadd.f32 %v749, %v750
    %v752 = vrot.slane %v751, 1
    %v753 = vadd.f32 %v751, %v752
    %v754 = vmul.f32 %v753, %v177
    %v755 = vmul.f32 %v701, %v639
    %v756 = vmul.f32 %v702, %v642
    %v757 = vmul.f32 %v703, %v647
    %v758 = vmul.f32 %v704, %v650
    %v759 = vmul.f32 %v705, %v655
    %v760 = vmul.f32 %v706, %v658
    %v761 = vmul.f32 %v707, %v663
    %v762 = vmul.f32 %v708, %v666
    %v763 = vmul.f32 %v709, %v671
    %v764 = vmul.f32 %v710, %v674
    %v765 = vmul.f32 %v711, %v679
    %v766 = vmul.f32 %v712, %v682
    %v767 = vmul.f32 %v713, %v687
    %v768 = vmul.f32 %v714, %v690
    %v769 = vmul.f32 %v715, %v695
    %v770 = vmul.f32 %v716, %v698
    %v771 = vsel %vm218, %v755, 0.0
    %v772 = vsel %vm218, %v756, 0.0
    %v773 = vadd.f32 %v771, %v772
    %v774 = vsel %vm218, %v757, 0.0
    %v775 = vadd.f32 %v773, %v774
    %v776 = vsel %vm218, %v758, 0.0
    %v777 = vadd.f32 %v775, %v776
    %v778 = vsel %vm218, %v759, 0.0
    %v779 = vadd.f32 %v777, %v778
    %v780 = vsel %vm218, %v760, 0.0
    %v781 = vadd.f32 %v779, %v780
    %v782 = vsel %vm218, %v761, 0.0
    %v783 = vadd.f32 %v781, %v782
    %v784 = vsel %vm218, %v762, 0.0
    %v785 = vadd.f32 %v783, %v784
    %v786 = vsel %vm218, %v763, 0.0
    %v787 = vadd.f32 %v785, %v786
    %v788 = vsel %vm218, %v764, 0.0
    %v789 = vadd.f32 %v787, %v788
    %v790 = vsel %vm218, %v765, 0.0
    %v791 = vadd.f32 %v789, %v790
    %v792 = vsel %vm218, %v766, 0.0
    %v793 = vadd.f32 %v791, %v792
    %v794 = vsel %vm218, %v767, 0.0
    %v795 = vadd.f32 %v793, %v794
    %v796 = vsel %vm218, %v768, 0.0
    %v797 = vadd.f32 %v795, %v796
    %v798 = vsel %vm218, %v769, 0.0
    %v799 = vadd.f32 %v797, %v798
    %v800 = vsel %vm218, %v770, 0.0
    %v801 = vadd.f32 %v799, %v800
    %v802 = vrot.slane %v801, 4
    %v803 = vadd.f32 %v801, %v802
    %v804 = vrot.slane %v803, 2
    %v805 = vadd.f32 %v803, %v804
    %v806 = vrot.slane %v805, 1
    %v807 = vadd.f32 %v805, %v806
    %v808 = vmul.f32 %v807, %v177
    %v809 = vmul.f32 %v754, %v754
    %v810 = vsub.f32 %v808, %v809
    %v811 = vmax.f32 %v810, 0.0
    %v812 = vsub.f32 %v639, %v754
    %v813 = vsub.f32 %v642, %v754
    %v814 = vsub.f32 %v647, %v754
    %v815 = vsub.f32 %v650, %v754
    %v816 = vsub.f32 %v655, %v754
    %v817 = vsub.f32 %v658, %v754
    %v818 = vsub.f32 %v663, %v754
    %v819 = vsub.f32 %v666, %v754
    %v820 = vsub.f32 %v671, %v754
    %v821 = vsub.f32 %v674, %v754
    %v822 = vsub.f32 %v679, %v754
    %v823 = vsub.f32 %v682, %v754
    %v824 = vsub.f32 %v687, %v754
    %v825 = vsub.f32 %v690, %v754
    %v826 = vsub.f32 %v695, %v754
    %v827 = vsub.f32 %v698, %v754
    %v828 = vadd.f32 %v811, 1e-05
    %v829 = vrsqrt.pop %v828
    %v830 = vmul.f32 %v812, %v829
    %v831 = vmul.f32 %v813, %v829
    %v832 = vmul.f32 %v814, %v829
    %v833 = vmul.f32 %v815, %v829
    %v834 = vmul.f32 %v816, %v829
    %v835 = vmul.f32 %v817, %v829
    %v836 = vmul.f32 %v818, %v829
    %v837 = vmul.f32 %v819, %v829
    %v838 = vmul.f32 %v820, %v829
    %v839 = vmul.f32 %v821, %v829
    %v840 = vmul.f32 %v822, %v829
    %v841 = vmul.f32 %v823, %v829
    %v842 = vmul.f32 %v824, %v829
    %v843 = vmul.f32 %v825, %v829
    %v844 = vmul.f32 %v826, %v829
    %v845 = vmul.f32 %v827, %v829
    %v846 = vld [vmem:[%s7] sm:$0x1]
    %v848 = vlaneseq
    %v849 = vshrl.u32 %v848, 7
    %v850 = vsub.s32 0, %v849
    %v851 = vrot.slane %v846, %v850
    %v853 = vmul.f32 %v830, %v851
    %v854 = vmul.f32 %v831, %v851
    %v855 = vmul.f32 %v832, %v851
    %v856 = vmul.f32 %v833, %v851
    %v857 = vmul.f32 %v834, %v851
    %v858 = vmul.f32 %v835, %v851
    %v859 = vmul.f32 %v836, %v851
    %v860 = vmul.f32 %v837, %v851
    %v861 = vmul.f32 %v838, %v851
    %v862 = vmul.f32 %v839, %v851
    %v863 = vmul.f32 %v840, %v851
    %v864 = vmul.f32 %v841, %v851
    %v865 = vmul.f32 %v842, %v851
    %v866 = vmul.f32 %v843, %v851
    %v867 = vmul.f32 %v844, %v851
    %v868 = vmul.f32 %v845, %v851
    %v869 = vld [vmem:[%s8] sm:$0x1]
    %v871 = vlaneseq
    %v872 = vshrl.u32 %v871, 7
    %v873 = vsub.s32 0, %v872
    %v874 = vrot.slane %v869, %v873
    %v876 = vadd.f32 %v853, %v874
    %v877 = vadd.f32 %v854, %v874
    %v878 = vadd.f32 %v855, %v874
    %v879 = vadd.f32 %v856, %v874
    %v880 = vadd.f32 %v857, %v874
    %v881 = vadd.f32 %v858, %v874
    %v882 = vadd.f32 %v859, %v874
    %v883 = vadd.f32 %v860, %v874
    %v884 = vadd.f32 %v861, %v874
    %v885 = vadd.f32 %v862, %v874
    %v886 = vadd.f32 %v863, %v874
    %v887 = vadd.f32 %v864, %v874
    %v888 = vadd.f32 %v865, %v874
    %v889 = vadd.f32 %v866, %v874
    %v890 = vadd.f32 %v867, %v874
    %v891 = vadd.f32 %v868, %v874
    %v892 = vmax.f32 %v876, 0.0
    %v893 = vmax.f32 %v877, 0.0
    %v894 = vmax.f32 %v878, 0.0
    %v895 = vmax.f32 %v879, 0.0
    %v896 = vmax.f32 %v880, 0.0
    %v897 = vmax.f32 %v881, 0.0
    %v898 = vmax.f32 %v882, 0.0
    %v899 = vmax.f32 %v883, 0.0
    %v900 = vmax.f32 %v884, 0.0
    %v901 = vmax.f32 %v885, 0.0
    %v902 = vmax.f32 %v886, 0.0
    %v903 = vmax.f32 %v887, 0.0
    %v904 = vmax.f32 %v888, 0.0
    %v905 = vmax.f32 %v889, 0.0
    %v906 = vmax.f32 %v890, 0.0
    %v907 = vmax.f32 %v891, 0.0
    %v908 = vpack.c.bf16 %v893, %v892
    %v909 = vpack.c.bf16 %v895, %v894
    %v910 = vpack.c.bf16 %v897, %v896
    %v911 = vpack.c.bf16 %v899, %v898
    %v912 = vpack.c.bf16 %v901, %v900
    %v913 = vpack.c.bf16 %v903, %v902
    %v914 = vpack.c.bf16 %v905, %v904
    %v915 = vpack.c.bf16 %v907, %v906
    %s916 = scalar_lea.vmem %s3, 16
    %v917 = vld [vmem:[%s916] sm:$0xf]
    %v918 = vld [vmem:[%s916 + $0x4] sm:$0xf]
    %v919 = vld [vmem:[%s916 + $0x8] sm:$0xf]
    %v920 = vld [vmem:[%s916 + $0xc] sm:$0xf]
    %v925 = vunpack.c.l.b16 %v917
    %v926 = vunpack.c.l.b16 %v918
    %v927 = vunpack.c.l.b16 %v919
    %v928 = vunpack.c.l.b16 %v920
    %v929 = vpack.c.b16 %v926, %v925
    %v930 = vpack.c.b16 %v928, %v927
    %v934 = vsel %vm218, %v908, 0
    %v937 = vsel %vm218, %v909, 0
    %v940 = vsel %vm218, %v910, 0
    %v943 = vsel %vm218, %v911, 0
    %v946 = vsel %vm218, %v912, 0
    %v949 = vsel %vm218, %v913, 0
    %v952 = vsel %vm218, %v914, 0
    %v955 = vsel %vm218, %v915, 0
    %957 = vmatprep.subr.bf16.mxu0 0
    %958 = vmatpush1.bf16.msra.mxu0 0
    %959 = vmatprep.subr.bf16.mxu0 0
    %960 = vmatpush1.bf16.msra.mxu0 0
    %961 = vmatprep.subr.bf16.mxu0 0
    %962 = vmatpush1.bf16.msra.mxu0 0
    %963 = vmatprep.subr.bf16.mxu0 0
    %964 = vmatpush1.bf16.msra.mxu0 0
    %965 = vmatprep.subr.bf16.mxu0 0
    %966 = vmatpush1.bf16.msra.mxu0 0
    %967 = vmatprep.subr.bf16.mxu0 0
    %968 = vmatpush1.bf16.msra.mxu0 0
    %969 = vmatprep.subr.bf16.mxu0 0
    %970 = vmatpush1.bf16.msra.mxu0 %v930
    %971 = vmatprep.subr.bf16.mxu0 0
    %972 = vmatpush1.bf16.msra.mxu0 %v929
    %973 = vmatprep.subr.bf16.mxu0 0
    %974 = vmatpush2.bf16.msra.mxu0 0
    %975 = vmatprep.subr.bf16.mxu0 0
    %976 = vmatpush2.bf16.msra.mxu0 0
    %977 = vmatprep.subr.bf16.mxu0 0
    %978 = vmatpush2.bf16.msra.mxu0 0
    %979 = vmatprep.subr.bf16.mxu0 0
    %980 = vmatpush2.bf16.msra.mxu0 0
    %981 = vmatprep.subr.bf16.mxu0 0
    %982 = vmatpush2.bf16.msra.mxu0 0
    %983 = vmatprep.subr.bf16.mxu0 0
    %984 = vmatpush2.bf16.msra.mxu0 0
    %985 = vmatprep.subr.bf16.mxu0 0
    %986 = vmatpush2.bf16.msra.mxu0 0
    %987 = vmatprep.subr.bf16.mxu0 0
    %988 = vmatpush2.bf16.msra.mxu0 0
    %989 = vmatprep.mubr.bf16.mxu0 0
    %990 = vmatmul.mubr.bf16.gmra.mxu0 %v934
    %v991 = vpop.f32.mrf.mxu0
    %v992 = vadd.f32 0.0, %v991
    %v993 = vpop.f32.mrf.mxu0
    %v994 = vpop.f32.mrf.mxu0
    %v995 = vadd.f32 0.0, %v994
    %v996 = vpop.f32.mrf.mxu0
    %997 = vmatprep.mubr.bf16.mxu0 0
    %998 = vmatmul.mubr.bf16.gmra.mxu0 %v937
    %v999 = vpop.f32.mrf.mxu0
    %v1000 = vadd.f32 0.0, %v999
    %v1001 = vpop.f32.mrf.mxu0
    %v1002 = vpop.f32.mrf.mxu0
    %v1003 = vadd.f32 0.0, %v1002
    %v1004 = vpop.f32.mrf.mxu0
    %1005 = vmatprep.mubr.bf16.mxu0 0
    %1006 = vmatmul.mubr.bf16.gmra.mxu0 %v940
    %v1007 = vpop.f32.mrf.mxu0
    %v1008 = vadd.f32 0.0, %v1007
    %v1009 = vpop.f32.mrf.mxu0
    %v1010 = vpop.f32.mrf.mxu0
    %v1011 = vadd.f32 0.0, %v1010
    %v1012 = vpop.f32.mrf.mxu0
    %1013 = vmatprep.mubr.bf16.mxu0 0
    %1014 = vmatmul.mubr.bf16.gmra.mxu0 %v943
    %v1015 = vpop.f32.mrf.mxu0
    %v1016 = vadd.f32 0.0, %v1015
    %v1017 = vpop.f32.mrf.mxu0
    %v1018 = vpop.f32.mrf.mxu0
    %v1019 = vadd.f32 0.0, %v1018
    %v1020 = vpop.f32.mrf.mxu0
    %1021 = vmatprep.mubr.bf16.mxu0 0
    %1022 = vmatmul.mubr.bf16.gmra.mxu0 %v946
    %v1023 = vpop.f32.mrf.mxu0
    %v1024 = vadd.f32 0.0, %v1023
    %v1025 = vpop.f32.mrf.mxu0
    %v1026 = vpop.f32.mrf.mxu0
    %v1027 = vadd.f32 0.0, %v1026
    %v1028 = vpop.f32.mrf.mxu0
    %1029 = vmatprep.mubr.bf16.mxu0 0
    %1030 = vmatmul.mubr.bf16.gmra.mxu0 %v949
    %v1031 = vpop.f32.mrf.mxu0
    %v1032 = vadd.f32 0.0, %v1031
    %v1033 = vpop.f32.mrf.mxu0
    %v1034 = vpop.f32.mrf.mxu0
    %v1035 = vadd.f32 0.0, %v1034
    %v1036 = vpop.f32.mrf.mxu0
    %1037 = vmatprep.mubr.bf16.mxu0 0
    %1038 = vmatmul.mubr.bf16.gmra.mxu0 %v952
    %v1039 = vpop.f32.mrf.mxu0
    %v1040 = vadd.f32 0.0, %v1039
    %v1041 = vpop.f32.mrf.mxu0
    %v1042 = vpop.f32.mrf.mxu0
    %v1043 = vadd.f32 0.0, %v1042
    %v1044 = vpop.f32.mrf.mxu0
    %1045 = vmatprep.mubr.bf16.mxu0 0
    %1046 = vmatmul.mubr.bf16.gmra.mxu0 %v955
    %v1047 = vpop.f32.mrf.mxu0
    %v1048 = vadd.f32 0.0, %v1047
    %v1049 = vpop.f32.mrf.mxu0
    %v1050 = vpop.f32.mrf.mxu0
    %v1051 = vadd.f32 0.0, %v1050
    %v1052 = vpop.f32.mrf.mxu0
    %1053 = vdwg.mxu0
    %v1054 = vpack.c.bf16 %v995, %v992
    %v1055 = vpack.c.bf16 %v1003, %v1000
    %v1056 = vpack.c.bf16 %v1011, %v1008
    %v1057 = vpack.c.bf16 %v1019, %v1016
    %v1058 = vpack.c.bf16 %v1027, %v1024
    %v1059 = vpack.c.bf16 %v1035, %v1032
    %v1060 = vpack.c.bf16 %v1043, %v1040
    %v1061 = vpack.c.bf16 %v1051, %v1048
    %s1062 = scalar_lea.vmem %s4, 1
    %v1063 = vld [vmem:[%s1062] sm:$0x1]
    %v1065 = vlaneseq
    %v1066 = vshrl.u32 %v1065, 7
    %v1067 = vsub.s32 0, %v1066
    %v1068 = vrot.slane %v1063, %v1067
    %1070 = vmatprep.subr.bf16.mxu0 0
    %1071 = vmatpush1.bf16.msra.mxu0 %v1061
    %1072 = vmatprep.subr.bf16.mxu0 0
    %1073 = vmatpush1.bf16.msra.mxu0 %v1060
    %1074 = vmatprep.subr.bf16.mxu0 0
    %1075 = vmatpush1.bf16.msra.mxu0 %v1059
    %1076 = vmatprep.subr.bf16.mxu0 0
    %1077 = vmatpush1.bf16.msra.mxu0 %v1058
    %1078 = vmatprep.subr.bf16.mxu0 0
    %1079 = vmatpush1.bf16.msra.mxu0 %v1057
    %1080 = vmatprep.subr.bf16.mxu0 0
    %1081 = vmatpush1.bf16.msra.mxu0 %v1056
    %1082 = vmatprep.subr.bf16.mxu0 0
    %1083 = vmatpush1.bf16.msra.mxu0 %v1055
    %1084 = vmatprep.subr.bf16.mxu0 0
    %1085 = vmatpush1.bf16.msra.mxu0 %v1054
    %1086 = vmatprep.subr.bf16.mxu0 0
    %1087 = vmatpush2.bf16.msra.mxu0 0
    %1088 = vmatprep.subr.bf16.mxu0 0
    %1089 = vmatpush2.bf16.msra.mxu0 0
    %1090 = vmatprep.subr.bf16.mxu0 0
    %1091 = vmatpush2.bf16.msra.mxu0 0
    %1092 = vmatprep.subr.bf16.mxu0 0
    %1093 = vmatpush2.bf16.msra.mxu0 0
    %1094 = vmatprep.subr.bf16.mxu0 0
    %1095 = vmatpush2.bf16.msra.mxu0 0
    %1096 = vmatprep.subr.bf16.mxu0 0
    %1097 = vmatpush2.bf16.msra.mxu0 0
    %1098 = vmatprep.subr.bf16.mxu0 0
    %1099 = vmatpush2.bf16.msra.mxu0 0
    %1100 = vmatprep.subr.bf16.mxu0 0
    %1101 = vmatpush2.bf16.msra.mxu0 0
    %1102 = vmatprep.mubr.bf16.mxu0 0
    %1103 = vmatmul.mubr.bf16.gmra.mxu0 %v403
    %v1104 = vpop.f32.mrf.mxu0
    %v1105 = vadd.f32 %v1068, %v1104
    %v1106 = vpop.f32.mrf.mxu0
    %v1107 = vpop.f32.mrf.mxu0
    %v1108 = vadd.f32 %v1068, %v1107
    %v1109 = vpop.f32.mrf.mxu0
    %1110 = vmatprep.mubr.bf16.mxu0 0
    %1111 = vmatmul.mubr.bf16.gmra.mxu0 %v404
    %v1112 = vpop.f32.mrf.mxu0
    %v1113 = vadd.f32 %v1068, %v1112
    %v1114 = vpop.f32.mrf.mxu0
    %v1115 = vpop.f32.mrf.mxu0
    %v1116 = vadd.f32 %v1068, %v1115
    %v1117 = vpop.f32.mrf.mxu0
    %1118 = vmatprep.mubr.bf16.mxu0 0
    %1119 = vmatmul.mubr.bf16.gmra.mxu0 %v405
    %v1120 = vpop.f32.mrf.mxu0
    %v1121 = vadd.f32 %v1068, %v1120
    %v1122 = vpop.f32.mrf.mxu0
    %v1123 = vpop.f32.mrf.mxu0
    %v1124 = vadd.f32 %v1068, %v1123
    %v1125 = vpop.f32.mrf.mxu0
    %1126 = vmatprep.mubr.bf16.mxu0 0
    %1127 = vmatmul.mubr.bf16.gmra.mxu0 %v406
    %v1128 = vpop.f32.mrf.mxu0
    %v1129 = vadd.f32 %v1068, %v1128
    %v1130 = vpop.f32.mrf.mxu0
    %v1131 = vpop.f32.mrf.mxu0
    %v1132 = vadd.f32 %v1068, %v1131
    %v1133 = vpop.f32.mrf.mxu0
    %1134 = vmatprep.mubr.bf16.mxu0 0
    %1135 = vmatmul.mubr.bf16.gmra.mxu0 %v407
    %v1136 = vpop.f32.mrf.mxu0
    %v1137 = vadd.f32 %v1068, %v1136
    %v1138 = vpop.f32.mrf.mxu0
    %v1139 = vpop.f32.mrf.mxu0
    %v1140 = vadd.f32 %v1068, %v1139
    %v1141 = vpop.f32.mrf.mxu0
    %1142 = vmatprep.mubr.bf16.mxu0 0
    %1143 = vmatmul.mubr.bf16.gmra.mxu0 %v408
    %v1144 = vpop.f32.mrf.mxu0
    %v1145 = vadd.f32 %v1068, %v1144
    %v1146 = vpop.f32.mrf.mxu0
    %v1147 = vpop.f32.mrf.mxu0
    %v1148 = vadd.f32 %v1068, %v1147
    %v1149 = vpop.f32.mrf.mxu0
    %1150 = vmatprep.mubr.bf16.mxu0 0
    %1151 = vmatmul.mubr.bf16.gmra.mxu0 %v409
    %v1152 = vpop.f32.mrf.mxu0
    %v1153 = vadd.f32 %v1068, %v1152
    %v1154 = vpop.f32.mrf.mxu0
    %v1155 = vpop.f32.mrf.mxu0
    %v1156 = vadd.f32 %v1068, %v1155
    %v1157 = vpop.f32.mrf.mxu0
    %1158 = vmatprep.mubr.bf16.mxu0 0
    %1159 = vmatmul.mubr.bf16.gmra.mxu0 %v410
    %v1160 = vpop.f32.mrf.mxu0
    %v1161 = vadd.f32 %v1068, %v1160
    %v1162 = vpop.f32.mrf.mxu0
    %v1163 = vpop.f32.mrf.mxu0
    %v1164 = vadd.f32 %v1068, %v1163
    %v1165 = vpop.f32.mrf.mxu0
    %1166 = vdwg.mxu0
    %v1167 = vmax.f32 %v1105, 0.0
    %v1168 = vmax.f32 %v1108, 0.0
    %v1169 = vmax.f32 %v1113, 0.0
    %v1170 = vmax.f32 %v1116, 0.0
    %v1171 = vmax.f32 %v1121, 0.0
    %v1172 = vmax.f32 %v1124, 0.0
    %v1173 = vmax.f32 %v1129, 0.0
    %v1174 = vmax.f32 %v1132, 0.0
    %v1175 = vmax.f32 %v1137, 0.0
    %v1176 = vmax.f32 %v1140, 0.0
    %v1177 = vmax.f32 %v1145, 0.0
    %v1178 = vmax.f32 %v1148, 0.0
    %v1179 = vmax.f32 %v1153, 0.0
    %v1180 = vmax.f32 %v1156, 0.0
    %v1181 = vmax.f32 %v1161, 0.0
    %v1182 = vmax.f32 %v1164, 0.0
    %v1183 = vpack.c.bf16 %v1168, %v1167
    %v1184 = vpack.c.bf16 %v1170, %v1169
    %v1185 = vpack.c.bf16 %v1172, %v1171
    %v1186 = vpack.c.bf16 %v1174, %v1173
    %v1187 = vpack.c.bf16 %v1176, %v1175
    %v1188 = vpack.c.bf16 %v1178, %v1177
    %v1189 = vpack.c.bf16 %v1180, %v1179
    %v1190 = vpack.c.bf16 %v1182, %v1181
    %s1191 = scalar_lea.vmem %s5, 32
    %v1192 = vld [vmem:[%s1191] sm:$0xf]
    %v1193 = vld [vmem:[%s1191 + $0x4] sm:$0xf]
    %v1194 = vld [vmem:[%s1191 + $0x8] sm:$0xf]
    %v1195 = vld [vmem:[%s1191 + $0xc] sm:$0xf]
    %v1196 = vld [vmem:[%s1191 + $0x10] sm:$0xf]
    %v1197 = vld [vmem:[%s1191 + $0x14] sm:$0xf]
    %v1198 = vld [vmem:[%s1191 + $0x18] sm:$0xf]
    %v1199 = vld [vmem:[%s1191 + $0x1c] sm:$0xf]
    %s1200 = scalar_lea.vmem %s6, 1
    %v1201 = vld [vmem:[%s1200] sm:$0x1]
    %v1203 = vlaneseq
    %v1204 = vshrl.u32 %v1203, 7
    %v1205 = vsub.s32 0, %v1204
    %v1206 = vrot.slane %v1201, %v1205
    %v1216 = vunpack.c.l.b16 %v1192
    %v1217 = vunpack.c.l.b16 %v1193
    %v1218 = vunpack.c.l.b16 %v1194
    %v1219 = vunpack.c.l.b16 %v1195
    %v1220 = vunpack.c.l.b16 %v1196
    %v1221 = vunpack.c.l.b16 %v1197
    %v1222 = vunpack.c.l.b16 %v1198
    %v1223 = vunpack.c.l.b16 %v1199
    %v1224 = vpack.c.b16 %v1217, %v1216
    %v1225 = vpack.c.b16 %v1219, %v1218
    %v1226 = vpack.c.b16 %v1221, %v1220
    %v1227 = vpack.c.b16 %v1223, %v1222
    %v1233 = vsel %vm579, %v1183, 0
    %v1236 = vsel %vm579, %v1184, 0
    %v1239 = vsel %vm579, %v1185, 0
    %v1242 = vsel %vm579, %v1186, 0
    %v1245 = vsel %vm579, %v1187, 0
    %v1248 = vsel %vm579, %v1188, 0
    %v1251 = vsel %vm579, %v1189, 0
    %v1254 = vsel %vm579, %v1190, 0
    %1256 = vmatprep.subr.bf16.mxu0 0
    %1257 = vmatpush1.bf16.msra.mxu0 0
    %1258 = vmatprep.subr.bf16.mxu0 0
    %1259 = vmatpush1.bf16.msra.mxu0 0
    %1260 = vmatprep.subr.bf16.mxu0 0
    %1261 = vmatpush1.bf16.msra.mxu0 0
    %1262 = vmatprep.subr.bf16.mxu0 0
    %1263 = vmatpush1.bf16.msra.mxu0 0
    %1264 = vmatprep.subr.bf16.mxu0 0
    %1265 = vmatpush1.bf16.msra.mxu0 %v1227
    %1266 = vmatprep.subr.bf16.mxu0 0
    %1267 = vmatpush1.bf16.msra.mxu0 %v1226
    %1268 = vmatprep.subr.bf16.mxu0 0
    %1269 = vmatpush1.bf16.msra.mxu0 %v1225
    %1270 = vmatprep.subr.bf16.mxu0 0
    %1271 = vmatpush1.bf16.msra.mxu0 %v1224
    %1272 = vmatprep.subr.bf16.mxu0 0
    %1273 = vmatpush2.bf16.msra.mxu0 0
    %1274 = vmatprep.subr.bf16.mxu0 0
    %1275 = vmatpush2.bf16.msra.mxu0 0
    %1276 = vmatprep.subr.bf16.mxu0 0
    %1277 = vmatpush2.bf16.msra.mxu0 0
    %1278 = vmatprep.subr.bf16.mxu0 0
    %1279 = vmatpush2.bf16.msra.mxu0 0
    %1280 = vmatprep.subr.bf16.mxu0 0
    %1281 = vmatpush2.bf16.msra.mxu0 0
    %1282 = vmatprep.subr.bf16.mxu0 0
    %1283 = vmatpush2.bf16.msra.mxu0 0
    %1284 = vmatprep.subr.bf16.mxu0 0
    %1285 = vmatpush2.bf16.msra.mxu0 0
    %1286 = vmatprep.subr.bf16.mxu0 0
    %1287 = vmatpush2.bf16.msra.mxu0 0
    %1288 = vmatprep.mubr.bf16.mxu0 0
    %1289 = vmatmul.mubr.bf16.gmra.mxu0 %v1233
    %v1290 = vpop.f32.mrf.mxu0
    %v1291 = vadd.f32 %v1206, %v1290
    %v1292 = vpop.f32.mrf.mxu0
    %v1293 = vpop.f32.mrf.mxu0
    %v1294 = vadd.f32 %v1206, %v1293
    %v1295 = vpop.f32.mrf.mxu0
    %1296 = vmatprep.mubr.bf16.mxu0 0
    %1297 = vmatmul.mubr.bf16.gmra.mxu0 %v1236
    %v1298 = vpop.f32.mrf.mxu0
    %v1299 = vadd.f32 %v1206, %v1298
    %v1300 = vpop.f32.mrf.mxu0
    %v1301 = vpop.f32.mrf.mxu0
    %v1302 = vadd.f32 %v1206, %v1301
    %v1303 = vpop.f32.mrf.mxu0
    %1304 = vmatprep.mubr.bf16.mxu0 0
    %1305 = vmatmul.mubr.bf16.gmra.mxu0 %v1239
    %v1306 = vpop.f32.mrf.mxu0
    %v1307 = vadd.f32 %v1206, %v1306
    %v1308 = vpop.f32.mrf.mxu0
    %v1309 = vpop.f32.mrf.mxu0
    %v1310 = vadd.f32 %v1206, %v1309
    %v1311 = vpop.f32.mrf.mxu0
    %1312 = vmatprep.mubr.bf16.mxu0 0
    %1313 = vmatmul.mubr.bf16.gmra.mxu0 %v1242
    %v1314 = vpop.f32.mrf.mxu0
    %v1315 = vadd.f32 %v1206, %v1314
    %v1316 = vpop.f32.mrf.mxu0
    %v1317 = vpop.f32.mrf.mxu0
    %v1318 = vadd.f32 %v1206, %v1317
    %v1319 = vpop.f32.mrf.mxu0
    %1320 = vmatprep.mubr.bf16.mxu0 0
    %1321 = vmatmul.mubr.bf16.gmra.mxu0 %v1245
    %v1322 = vpop.f32.mrf.mxu0
    %v1323 = vadd.f32 %v1206, %v1322
    %v1324 = vpop.f32.mrf.mxu0
    %v1325 = vpop.f32.mrf.mxu0
    %v1326 = vadd.f32 %v1206, %v1325
    %v1327 = vpop.f32.mrf.mxu0
    %1328 = vmatprep.mubr.bf16.mxu0 0
    %1329 = vmatmul.mubr.bf16.gmra.mxu0 %v1248
    %v1330 = vpop.f32.mrf.mxu0
    %v1331 = vadd.f32 %v1206, %v1330
    %v1332 = vpop.f32.mrf.mxu0
    %v1333 = vpop.f32.mrf.mxu0
    %v1334 = vadd.f32 %v1206, %v1333
    %v1335 = vpop.f32.mrf.mxu0
    %1336 = vmatprep.mubr.bf16.mxu0 0
    %1337 = vmatmul.mubr.bf16.gmra.mxu0 %v1251
    %v1338 = vpop.f32.mrf.mxu0
    %v1339 = vadd.f32 %v1206, %v1338
    %v1340 = vpop.f32.mrf.mxu0
    %v1341 = vpop.f32.mrf.mxu0
    %v1342 = vadd.f32 %v1206, %v1341
    %v1343 = vpop.f32.mrf.mxu0
    %1344 = vmatprep.mubr.bf16.mxu0 0
    %1345 = vmatmul.mubr.bf16.gmra.mxu0 %v1254
    %v1346 = vpop.f32.mrf.mxu0
    %v1347 = vadd.f32 %v1206, %v1346
    %v1348 = vpop.f32.mrf.mxu0
    %v1349 = vpop.f32.mrf.mxu0
    %v1350 = vadd.f32 %v1206, %v1349
    %v1351 = vpop.f32.mrf.mxu0
    %1352 = vdwg.mxu0
    %v1353 = vmul.f32 %v1291, %v56
    %v1354 = vmul.f32 %v1294, %v61
    %v1355 = vmul.f32 %v1299, %v66
    %v1356 = vmul.f32 %v1302, %v71
    %v1357 = vmul.f32 %v1307, %v76
    %v1358 = vmul.f32 %v1310, %v81
    %v1359 = vmul.f32 %v1315, %v86
    %v1360 = vmul.f32 %v1318, %v91
    %v1361 = vmul.f32 %v1323, %v96
    %v1362 = vmul.f32 %v1326, %v101
    %v1363 = vmul.f32 %v1331, %v106
    %v1364 = vmul.f32 %v1334, %v111
    %v1365 = vmul.f32 %v1339, %v116
    %v1366 = vmul.f32 %v1342, %v121
    %v1367 = vmul.f32 %v1347, %v126
    %v1368 = vmul.f32 %v1350, %v131
    %v1369 = vsel %vm218, %v1353, 0.0
    %v1370 = vsel %vm218, %v1354, 0.0
    %v1371 = vadd.f32 %v1369, %v1370
    %v1372 = vsel %vm218, %v1355, 0.0
    %v1373 = vadd.f32 %v1371, %v1372
    %v1374 = vsel %vm218, %v1356, 0.0
    %v1375 = vadd.f32 %v1373, %v1374
    %v1376 = vsel %vm218, %v1357, 0.0
    %v1377 = vadd.f32 %v1375, %v1376
    %v1378 = vsel %vm218, %v1358, 0.0
    %v1379 = vadd.f32 %v1377, %v1378
    %v1380 = vsel %vm218, %v1359, 0.0
    %v1381 = vadd.f32 %v1379, %v1380
    %v1382 = vsel %vm218, %v1360, 0.0
    %v1383 = vadd.f32 %v1381, %v1382
    %v1384 = vsel %vm218, %v1361, 0.0
    %v1385 = vadd.f32 %v1383, %v1384
    %v1386 = vsel %vm218, %v1362, 0.0
    %v1387 = vadd.f32 %v1385, %v1386
    %v1388 = vsel %vm218, %v1363, 0.0
    %v1389 = vadd.f32 %v1387, %v1388
    %v1390 = vsel %vm218, %v1364, 0.0
    %v1391 = vadd.f32 %v1389, %v1390
    %v1392 = vsel %vm218, %v1365, 0.0
    %v1393 = vadd.f32 %v1391, %v1392
    %v1394 = vsel %vm218, %v1366, 0.0
    %v1395 = vadd.f32 %v1393, %v1394
    %v1396 = vsel %vm218, %v1367, 0.0
    %v1397 = vadd.f32 %v1395, %v1396
    %v1398 = vsel %vm218, %v1368, 0.0
    %v1399 = vadd.f32 %v1397, %v1398
    %v1400 = vrot.slane %v1399, 4
    %v1401 = vadd.f32 %v1399, %v1400
    %v1402 = vrot.slane %v1401, 2
    %v1403 = vadd.f32 %v1401, %v1402
    %v1404 = vrot.slane %v1403, 1
    %v1405 = vadd.f32 %v1403, %v1404
    %v1406 = vmul.f32 %v1405, %v177
    %v1407 = vmul.f32 %v1353, %v1291
    %v1408 = vmul.f32 %v1354, %v1294
    %v1409 = vmul.f32 %v1355, %v1299
    %v1410 = vmul.f32 %v1356, %v1302
    %v1411 = vmul.f32 %v1357, %v1307
    %v1412 = vmul.f32 %v1358, %v1310
    %v1413 = vmul.f32 %v1359, %v1315
    %v1414 = vmul.f32 %v1360, %v1318
    %v1415 = vmul.f32 %v1361, %v1323
    %v1416 = vmul.f32 %v1362, %v1326
    %v1417 = vmul.f32 %v1363, %v1331
    %v1418 = vmul.f32 %v1364, %v1334
    %v1419 = vmul.f32 %v1365, %v1339
    %v1420 = vmul.f32 %v1366, %v1342
    %v1421 = vmul.f32 %v1367, %v1347
    %v1422 = vmul.f32 %v1368, %v1350
    %v1423 = vsel %vm218, %v1407, 0.0
    %v1424 = vsel %vm218, %v1408, 0.0
    %v1425 = vadd.f32 %v1423, %v1424
    %v1426 = vsel %vm218, %v1409, 0.0
    %v1427 = vadd.f32 %v1425, %v1426
    %v1428 = vsel %vm218, %v1410, 0.0
    %v1429 = vadd.f32 %v1427, %v1428
    %v1430 = vsel %vm218, %v1411, 0.0
    %v1431 = vadd.f32 %v1429, %v1430
    %v1432 = vsel %vm218, %v1412, 0.0
    %v1433 = vadd.f32 %v1431, %v1432
    %v1434 = vsel %vm218, %v1413, 0.0
    %v1435 = vadd.f32 %v1433, %v1434
    %v1436 = vsel %vm218, %v1414, 0.0
    %v1437 = vadd.f32 %v1435, %v1436
    %v1438 = vsel %vm218, %v1415, 0.0
    %v1439 = vadd.f32 %v1437, %v1438
    %v1440 = vsel %vm218, %v1416, 0.0
    %v1441 = vadd.f32 %v1439, %v1440
    %v1442 = vsel %vm218, %v1417, 0.0
    %v1443 = vadd.f32 %v1441, %v1442
    %v1444 = vsel %vm218, %v1418, 0.0
    %v1445 = vadd.f32 %v1443, %v1444
    %v1446 = vsel %vm218, %v1419, 0.0
    %v1447 = vadd.f32 %v1445, %v1446
    %v1448 = vsel %vm218, %v1420, 0.0
    %v1449 = vadd.f32 %v1447, %v1448
    %v1450 = vsel %vm218, %v1421, 0.0
    %v1451 = vadd.f32 %v1449, %v1450
    %v1452 = vsel %vm218, %v1422, 0.0
    %v1453 = vadd.f32 %v1451, %v1452
    %v1454 = vrot.slane %v1453, 4
    %v1455 = vadd.f32 %v1453, %v1454
    %v1456 = vrot.slane %v1455, 2
    %v1457 = vadd.f32 %v1455, %v1456
    %v1458 = vrot.slane %v1457, 1
    %v1459 = vadd.f32 %v1457, %v1458
    %v1460 = vmul.f32 %v1459, %v177
    %v1461 = vmul.f32 %v1406, %v1406
    %v1462 = vsub.f32 %v1460, %v1461
    %v1463 = vmax.f32 %v1462, 0.0
    %v1464 = vsub.f32 %v1291, %v1406
    %v1465 = vsub.f32 %v1294, %v1406
    %v1466 = vsub.f32 %v1299, %v1406
    %v1467 = vsub.f32 %v1302, %v1406
    %v1468 = vsub.f32 %v1307, %v1406
    %v1469 = vsub.f32 %v1310, %v1406
    %v1470 = vsub.f32 %v1315, %v1406
    %v1471 = vsub.f32 %v1318, %v1406
    %v1472 = vsub.f32 %v1323, %v1406
    %v1473 = vsub.f32 %v1326, %v1406
    %v1474 = vsub.f32 %v1331, %v1406
    %v1475 = vsub.f32 %v1334, %v1406
    %v1476 = vsub.f32 %v1339, %v1406
    %v1477 = vsub.f32 %v1342, %v1406
    %v1478 = vsub.f32 %v1347, %v1406
    %v1479 = vsub.f32 %v1350, %v1406
    %v1480 = vadd.f32 %v1463, 1e-05
    %v1481 = vrsqrt.pop %v1480
    %v1482 = vmul.f32 %v1464, %v1481
    %v1483 = vmul.f32 %v1465, %v1481
    %v1484 = vmul.f32 %v1466, %v1481
    %v1485 = vmul.f32 %v1467, %v1481
    %v1486 = vmul.f32 %v1468, %v1481
    %v1487 = vmul.f32 %v1469, %v1481
    %v1488 = vmul.f32 %v1470, %v1481
    %v1489 = vmul.f32 %v1471, %v1481
    %v1490 = vmul.f32 %v1472, %v1481
    %v1491 = vmul.f32 %v1473, %v1481
    %v1492 = vmul.f32 %v1474, %v1481
    %v1493 = vmul.f32 %v1475, %v1481
    %v1494 = vmul.f32 %v1476, %v1481
    %v1495 = vmul.f32 %v1477, %v1481
    %v1496 = vmul.f32 %v1478, %v1481
    %v1497 = vmul.f32 %v1479, %v1481
    %s1498 = scalar_lea.vmem %s7, 1
    %v1499 = vld [vmem:[%s1498] sm:$0x1]
    %v1501 = vlaneseq
    %v1502 = vshrl.u32 %v1501, 7
    %v1503 = vsub.s32 0, %v1502
    %v1504 = vrot.slane %v1499, %v1503
    %v1506 = vmul.f32 %v1482, %v1504
    %v1507 = vmul.f32 %v1483, %v1504
    %v1508 = vmul.f32 %v1484, %v1504
    %v1509 = vmul.f32 %v1485, %v1504
    %v1510 = vmul.f32 %v1486, %v1504
    %v1511 = vmul.f32 %v1487, %v1504
    %v1512 = vmul.f32 %v1488, %v1504
    %v1513 = vmul.f32 %v1489, %v1504
    %v1514 = vmul.f32 %v1490, %v1504
    %v1515 = vmul.f32 %v1491, %v1504
    %v1516 = vmul.f32 %v1492, %v1504
    %v1517 = vmul.f32 %v1493, %v1504
    %v1518 = vmul.f32 %v1494, %v1504
    %v1519 = vmul.f32 %v1495, %v1504
    %v1520 = vmul.f32 %v1496, %v1504
    %v1521 = vmul.f32 %v1497, %v1504
    %s1522 = scalar_lea.vmem %s8, 1
    %v1523 = vld [vmem:[%s1522] sm:$0x1]
    %v1525 = vlaneseq
    %v1526 = vshrl.u32 %v1525, 7
    %v1527 = vsub.s32 0, %v1526
    %v1528 = vrot.slane %v1523, %v1527
    %v1530 = vadd.f32 %v1506, %v1528
    %v1531 = vadd.f32 %v1507, %v1528
    %v1532 = vadd.f32 %v1508, %v1528
    %v1533 = vadd.f32 %v1509, %v1528
    %v1534 = vadd.f32 %v1510, %v1528
    %v1535 = vadd.f32 %v1511, %v1528
    %v1536 = vadd.f32 %v1512, %v1528
    %v1537 = vadd.f32 %v1513, %v1528
    %v1538 = vadd.f32 %v1514, %v1528
    %v1539 = vadd.f32 %v1515, %v1528
    %v1540 = vadd.f32 %v1516, %v1528
    %v1541 = vadd.f32 %v1517, %v1528
    %v1542 = vadd.f32 %v1518, %v1528
    %v1543 = vadd.f32 %v1519, %v1528
    %v1544 = vadd.f32 %v1520, %v1528
    %v1545 = vadd.f32 %v1521, %v1528
    %v1546 = vmax.f32 %v1530, 0.0
    %v1547 = vmax.f32 %v1531, 0.0
    %v1548 = vmax.f32 %v1532, 0.0
    %v1549 = vmax.f32 %v1533, 0.0
    %v1550 = vmax.f32 %v1534, 0.0
    %v1551 = vmax.f32 %v1535, 0.0
    %v1552 = vmax.f32 %v1536, 0.0
    %v1553 = vmax.f32 %v1537, 0.0
    %v1554 = vmax.f32 %v1538, 0.0
    %v1555 = vmax.f32 %v1539, 0.0
    %v1556 = vmax.f32 %v1540, 0.0
    %v1557 = vmax.f32 %v1541, 0.0
    %v1558 = vmax.f32 %v1542, 0.0
    %v1559 = vmax.f32 %v1543, 0.0
    %v1560 = vmax.f32 %v1544, 0.0
    %v1561 = vmax.f32 %v1545, 0.0
    %v1562 = vpack.c.bf16 %v1547, %v1546
    %v1563 = vpack.c.bf16 %v1549, %v1548
    %v1564 = vpack.c.bf16 %v1551, %v1550
    %v1565 = vpack.c.bf16 %v1553, %v1552
    %v1566 = vpack.c.bf16 %v1555, %v1554
    %v1567 = vpack.c.bf16 %v1557, %v1556
    %v1568 = vpack.c.bf16 %v1559, %v1558
    %v1569 = vpack.c.bf16 %v1561, %v1560
    %s1570 = scalar_lea.vmem %s3, 32
    %v1571 = vld [vmem:[%s1570] sm:$0xf]
    %v1572 = vld [vmem:[%s1570 + $0x4] sm:$0xf]
    %v1573 = vld [vmem:[%s1570 + $0x8] sm:$0xf]
    %v1574 = vld [vmem:[%s1570 + $0xc] sm:$0xf]
    %v1579 = vunpack.c.l.b16 %v1571
    %v1580 = vunpack.c.l.b16 %v1572
    %v1581 = vunpack.c.l.b16 %v1573
    %v1582 = vunpack.c.l.b16 %v1574
    %v1583 = vpack.c.b16 %v1580, %v1579
    %v1584 = vpack.c.b16 %v1582, %v1581
    %v1588 = vsel %vm218, %v1562, 0
    %v1591 = vsel %vm218, %v1563, 0
    %v1594 = vsel %vm218, %v1564, 0
    %v1597 = vsel %vm218, %v1565, 0
    %v1600 = vsel %vm218, %v1566, 0
    %v1603 = vsel %vm218, %v1567, 0
    %v1606 = vsel %vm218, %v1568, 0
    %v1609 = vsel %vm218, %v1569, 0
    %1611 = vmatprep.subr.bf16.mxu0 0
    %1612 = vmatpush1.bf16.msra.mxu0 0
    %1613 = vmatprep.subr.bf16.mxu0 0
    %1614 = vmatpush1.bf16.msra.mxu0 0
    %1615 = vmatprep.subr.bf16.mxu0 0
    %1616 = vmatpush1.bf16.msra.mxu0 0
    %1617 = vmatprep.subr.bf16.mxu0 0
    %1618 = vmatpush1.bf16.msra.mxu0 0
    %1619 = vmatprep.subr.bf16.mxu0 0
    %1620 = vmatpush1.bf16.msra.mxu0 0
    %1621 = vmatprep.subr.bf16.mxu0 0
    %1622 = vmatpush1.bf16.msra.mxu0 0
    %1623 = vmatprep.subr.bf16.mxu0 0
    %1624 = vmatpush1.bf16.msra.mxu0 %v1584
    %1625 = vmatprep.subr.bf16.mxu0 0
    %1626 = vmatpush1.bf16.msra.mxu0 %v1583
    %1627 = vmatprep.subr.bf16.mxu0 0
    %1628 = vmatpush2.bf16.msra.mxu0 0
    %1629 = vmatprep.subr.bf16.mxu0 0
    %1630 = vmatpush2.bf16.msra.mxu0 0
    %1631 = vmatprep.subr.bf16.mxu0 0
    %1632 = vmatpush2.bf16.msra.mxu0 0
    %1633 = vmatprep.subr.bf16.mxu0 0
    %1634 = vmatpush2.bf16.msra.mxu0 0
    %1635 = vmatprep.subr.bf16.mxu0 0
    %1636 = vmatpush2.bf16.msra.mxu0 0
    %1637 = vmatprep.subr.bf16.mxu0 0
    %1638 = vmatpush2.bf16.msra.mxu0 0
    %1639 = vmatprep.subr.bf16.mxu0 0
    %1640 = vmatpush2.bf16.msra.mxu0 0
    %1641 = vmatprep.subr.bf16.mxu0 0
    %1642 = vmatpush2.bf16.msra.mxu0 0
    %1643 = vmatprep.mubr.bf16.mxu0 0
    %1644 = vmatmul.mubr.bf16.gmra.mxu0 %v1588
    %v1645 = vpop.f32.mrf.mxu0
    %v1646 = vadd.f32 0.0, %v1645
    %v1647 = vpop.f32.mrf.mxu0
    %v1648 = vpop.f32.mrf.mxu0
    %v1649 = vadd.f32 0.0, %v1648
    %v1650 = vpop.f32.mrf.mxu0
    %1651 = vmatprep.mubr.bf16.mxu0 0
    %1652 = vmatmul.mubr.bf16.gmra.mxu0 %v1591
    %v1653 = vpop.f32.mrf.mxu0
    %v1654 = vadd.f32 0.0, %v1653
    %v1655 = vpop.f32.mrf.mxu0
    %v1656 = vpop.f32.mrf.mxu0
    %v1657 = vadd.f32 0.0, %v1656
    %v1658 = vpop.f32.mrf.mxu0
    %1659 = vmatprep.mubr.bf16.mxu0 0
    %1660 = vmatmul.mubr.bf16.gmra.mxu0 %v1594
    %v1661 = vpop.f32.mrf.mxu0
    %v1662 = vadd.f32 0.0, %v1661
    %v1663 = vpop.f32.mrf.mxu0
    %v1664 = vpop.f32.mrf.mxu0
    %v1665 = vadd.f32 0.0, %v1664
    %v1666 = vpop.f32.mrf.mxu0
    %1667 = vmatprep.mubr.bf16.mxu0 0
    %1668 = vmatmul.mubr.bf16.gmra.mxu0 %v1597
    %v1669 = vpop.f32.mrf.mxu0
    %v1670 = vadd.f32 0.0, %v1669
    %v1671 = vpop.f32.mrf.mxu0
    %v1672 = vpop.f32.mrf.mxu0
    %v1673 = vadd.f32 0.0, %v1672
    %v1674 = vpop.f32.mrf.mxu0
    %1675 = vmatprep.mubr.bf16.mxu0 0
    %1676 = vmatmul.mubr.bf16.gmra.mxu0 %v1600
    %v1677 = vpop.f32.mrf.mxu0
    %v1678 = vadd.f32 0.0, %v1677
    %v1679 = vpop.f32.mrf.mxu0
    %v1680 = vpop.f32.mrf.mxu0
    %v1681 = vadd.f32 0.0, %v1680
    %v1682 = vpop.f32.mrf.mxu0
    %1683 = vmatprep.mubr.bf16.mxu0 0
    %1684 = vmatmul.mubr.bf16.gmra.mxu0 %v1603
    %v1685 = vpop.f32.mrf.mxu0
    %v1686 = vadd.f32 0.0, %v1685
    %v1687 = vpop.f32.mrf.mxu0
    %v1688 = vpop.f32.mrf.mxu0
    %v1689 = vadd.f32 0.0, %v1688
    %v1690 = vpop.f32.mrf.mxu0
    %1691 = vmatprep.mubr.bf16.mxu0 0
    %1692 = vmatmul.mubr.bf16.gmra.mxu0 %v1606
    %v1693 = vpop.f32.mrf.mxu0
    %v1694 = vadd.f32 0.0, %v1693
    %v1695 = vpop.f32.mrf.mxu0
    %v1696 = vpop.f32.mrf.mxu0
    %v1697 = vadd.f32 0.0, %v1696
    %v1698 = vpop.f32.mrf.mxu0
    %1699 = vmatprep.mubr.bf16.mxu0 0
    %1700 = vmatmul.mubr.bf16.gmra.mxu0 %v1609
    %v1701 = vpop.f32.mrf.mxu0
    %v1702 = vadd.f32 0.0, %v1701
    %v1703 = vpop.f32.mrf.mxu0
    %v1704 = vpop.f32.mrf.mxu0
    %v1705 = vadd.f32 0.0, %v1704
    %v1706 = vpop.f32.mrf.mxu0
    %1707 = vdwg.mxu0
    %v1708 = vpack.c.bf16 %v1649, %v1646
    %v1709 = vpack.c.bf16 %v1657, %v1654
    %v1710 = vpack.c.bf16 %v1665, %v1662
    %v1711 = vpack.c.bf16 %v1673, %v1670
    %v1712 = vpack.c.bf16 %v1681, %v1678
    %v1713 = vpack.c.bf16 %v1689, %v1686
    %v1714 = vpack.c.bf16 %v1697, %v1694
    %v1715 = vpack.c.bf16 %v1705, %v1702
    %s1716 = scalar_lea.vmem %s4, 2
    %v1717 = vld [vmem:[%s1716] sm:$0x1]
    %v1719 = vlaneseq
    %v1720 = vshrl.u32 %v1719, 7
    %v1721 = vsub.s32 0, %v1720
    %v1722 = vrot.slane %v1717, %v1721
    %1724 = vmatprep.subr.bf16.mxu0 0
    %1725 = vmatpush1.bf16.msra.mxu0 %v1715
    %1726 = vmatprep.subr.bf16.mxu0 0
    %1727 = vmatpush1.bf16.msra.mxu0 %v1714
    %1728 = vmatprep.subr.bf16.mxu0 0
    %1729 = vmatpush1.bf16.msra.mxu0 %v1713
    %1730 = vmatprep.subr.bf16.mxu0 0
    %1731 = vmatpush1.bf16.msra.mxu0 %v1712
    %1732 = vmatprep.subr.bf16.mxu0 0
    %1733 = vmatpush1.bf16.msra.mxu0 %v1711
    %1734 = vmatprep.subr.bf16.mxu0 0
    %1735 = vmatpush1.bf16.msra.mxu0 %v1710
    %1736 = vmatprep.subr.bf16.mxu0 0
    %1737 = vmatpush1.bf16.msra.mxu0 %v1709
    %1738 = vmatprep.subr.bf16.mxu0 0
    %1739 = vmatpush1.bf16.msra.mxu0 %v1708
    %1740 = vmatprep.subr.bf16.mxu0 0
    %1741 = vmatpush2.bf16.msra.mxu0 0
    %1742 = vmatprep.subr.bf16.mxu0 0
    %1743 = vmatpush2.bf16.msra.mxu0 0
    %1744 = vmatprep.subr.bf16.mxu0 0
    %1745 = vmatpush2.bf16.msra.mxu0 0
    %1746 = vmatprep.subr.bf16.mxu0 0
    %1747 = vmatpush2.bf16.msra.mxu0 0
    %1748 = vmatprep.subr.bf16.mxu0 0
    %1749 = vmatpush2.bf16.msra.mxu0 0
    %1750 = vmatprep.subr.bf16.mxu0 0
    %1751 = vmatpush2.bf16.msra.mxu0 0
    %1752 = vmatprep.subr.bf16.mxu0 0
    %1753 = vmatpush2.bf16.msra.mxu0 0
    %1754 = vmatprep.subr.bf16.mxu0 0
    %1755 = vmatpush2.bf16.msra.mxu0 0
    %1756 = vmatprep.mubr.bf16.mxu0 0
    %1757 = vmatmul.mubr.bf16.gmra.mxu0 %v403
    %v1758 = vpop.f32.mrf.mxu0
    %v1759 = vadd.f32 %v1722, %v1758
    %v1760 = vpop.f32.mrf.mxu0
    %v1761 = vpop.f32.mrf.mxu0
    %v1762 = vadd.f32 %v1722, %v1761
    %v1763 = vpop.f32.mrf.mxu0
    %1764 = vmatprep.mubr.bf16.mxu0 0
    %1765 = vmatmul.mubr.bf16.gmra.mxu0 %v404
    %v1766 = vpop.f32.mrf.mxu0
    %v1767 = vadd.f32 %v1722, %v1766
    %v1768 = vpop.f32.mrf.mxu0
    %v1769 = vpop.f32.mrf.mxu0
    %v1770 = vadd.f32 %v1722, %v1769
    %v1771 = vpop.f32.mrf.mxu0
    %1772 = vmatprep.mubr.bf16.mxu0 0
    %1773 = vmatmul.mubr.bf16.gmra.mxu0 %v405
    %v1774 = vpop.f32.mrf.mxu0
    %v1775 = vadd.f32 %v1722, %v1774
    %v1776 = vpop.f32.mrf.mxu0
    %v1777 = vpop.f32.mrf.mxu0
    %v1778 = vadd.f32 %v1722, %v1777
    %v1779 = vpop.f32.mrf.mxu0
    %1780 = vmatprep.mubr.bf16.mxu0 0
    %1781 = vmatmul.mubr.bf16.gmra.mxu0 %v406
    %v1782 = vpop.f32.mrf.mxu0
    %v1783 = vadd.f32 %v1722, %v1782
    %v1784 = vpop.f32.mrf.mxu0
    %v1785 = vpop.f32.mrf.mxu0
    %v1786 = vadd.f32 %v1722, %v1785
    %v1787 = vpop.f32.mrf.mxu0
    %1788 = vmatprep.mubr.bf16.mxu0 0
    %1789 = vmatmul.mubr.bf16.gmra.mxu0 %v407
    %v1790 = vpop.f32.mrf.mxu0
    %v1791 = vadd.f32 %v1722, %v1790
    %v1792 = vpop.f32.mrf.mxu0
    %v1793 = vpop.f32.mrf.mxu0
    %v1794 = vadd.f32 %v1722, %v1793
    %v1795 = vpop.f32.mrf.mxu0
    %1796 = vmatprep.mubr.bf16.mxu0 0
    %1797 = vmatmul.mubr.bf16.gmra.mxu0 %v408
    %v1798 = vpop.f32.mrf.mxu0
    %v1799 = vadd.f32 %v1722, %v1798
    %v1800 = vpop.f32.mrf.mxu0
    %v1801 = vpop.f32.mrf.mxu0
    %v1802 = vadd.f32 %v1722, %v1801
    %v1803 = vpop.f32.mrf.mxu0
    %1804 = vmatprep.mubr.bf16.mxu0 0
    %1805 = vmatmul.mubr.bf16.gmra.mxu0 %v409
    %v1806 = vpop.f32.mrf.mxu0
    %v1807 = vadd.f32 %v1722, %v1806
    %v1808 = vpop.f32.mrf.mxu0
    %v1809 = vpop.f32.mrf.mxu0
    %v1810 = vadd.f32 %v1722, %v1809
    %v1811 = vpop.f32.mrf.mxu0
    %1812 = vmatprep.mubr.bf16.mxu0 0
    %1813 = vmatmul.mubr.bf16.gmra.mxu0 %v410
    %v1814 = vpop.f32.mrf.mxu0
    %v1815 = vadd.f32 %v1722, %v1814
    %v1816 = vpop.f32.mrf.mxu0
    %v1817 = vpop.f32.mrf.mxu0
    %v1818 = vadd.f32 %v1722, %v1817
    %v1819 = vpop.f32.mrf.mxu0
    %1820 = vdwg.mxu0
    %v1821 = vmax.f32 %v1759, 0.0
    %v1822 = vmax.f32 %v1762, 0.0
    %v1823 = vmax.f32 %v1767, 0.0
    %v1824 = vmax.f32 %v1770, 0.0
    %v1825 = vmax.f32 %v1775, 0.0
    %v1826 = vmax.f32 %v1778, 0.0
    %v1827 = vmax.f32 %v1783, 0.0
    %v1828 = vmax.f32 %v1786, 0.0
    %v1829 = vmax.f32 %v1791, 0.0
    %v1830 = vmax.f32 %v1794, 0.0
    %v1831 = vmax.f32 %v1799, 0.0
    %v1832 = vmax.f32 %v1802, 0.0
    %v1833 = vmax.f32 %v1807, 0.0
    %v1834 = vmax.f32 %v1810, 0.0
    %v1835 = vmax.f32 %v1815, 0.0
    %v1836 = vmax.f32 %v1818, 0.0
    %v1837 = vpack.c.bf16 %v1822, %v1821
    %v1838 = vpack.c.bf16 %v1824, %v1823
    %v1839 = vpack.c.bf16 %v1826, %v1825
    %v1840 = vpack.c.bf16 %v1828, %v1827
    %v1841 = vpack.c.bf16 %v1830, %v1829
    %v1842 = vpack.c.bf16 %v1832, %v1831
    %v1843 = vpack.c.bf16 %v1834, %v1833
    %v1844 = vpack.c.bf16 %v1836, %v1835
    %s1845 = scalar_lea.vmem %s5, 64
    %v1846 = vld [vmem:[%s1845] sm:$0xf]
    %v1847 = vld [vmem:[%s1845 + $0x4] sm:$0xf]
    %v1848 = vld [vmem:[%s1845 + $0x8] sm:$0xf]
    %v1849 = vld [vmem:[%s1845 + $0xc] sm:$0xf]
    %v1850 = vld [vmem:[%s1845 + $0x10] sm:$0xf]
    %v1851 = vld [vmem:[%s1845 + $0x14] sm:$0xf]
    %v1852 = vld [vmem:[%s1845 + $0x18] sm:$0xf]
    %v1853 = vld [vmem:[%s1845 + $0x1c] sm:$0xf]
    %s1854 = scalar_lea.vmem %s6, 2
    %v1855 = vld [vmem:[%s1854] sm:$0x1]
    %v1857 = vlaneseq
    %v1858 = vshrl.u32 %v1857, 7
    %v1859 = vsub.s32 0, %v1858
    %v1860 = vrot.slane %v1855, %v1859
    %v1870 = vunpack.c.l.b16 %v1846
    %v1871 = vunpack.c.l.b16 %v1847
    %v1872 = vunpack.c.l.b16 %v1848
    %v1873 = vunpack.c.l.b16 %v1849
    %v1874 = vunpack.c.l.b16 %v1850
    %v1875 = vunpack.c.l.b16 %v1851
    %v1876 = vunpack.c.l.b16 %v1852
    %v1877 = vunpack.c.l.b16 %v1853
    %v1878 = vpack.c.b16 %v1871, %v1870
    %v1879 = vpack.c.b16 %v1873, %v1872
    %v1880 = vpack.c.b16 %v1875, %v1874
    %v1881 = vpack.c.b16 %v1877, %v1876
    %v1887 = vsel %vm579, %v1837, 0
    %v1890 = vsel %vm579, %v1838, 0
    %v1893 = vsel %vm579, %v1839, 0
    %v1896 = vsel %vm579, %v1840, 0
    %v1899 = vsel %vm579, %v1841, 0
    %v1902 = vsel %vm579, %v1842, 0
    %v1905 = vsel %vm579, %v1843, 0
    %v1908 = vsel %vm579, %v1844, 0
    %1910 = vmatprep.subr.bf16.mxu0 0
    %1911 = vmatpush1.bf16.msra.mxu0 0
    %1912 = vmatprep.subr.bf16.mxu0 0
    %1913 = vmatpush1.bf16.msra.mxu0 0
    %1914 = vmatprep.subr.bf16.mxu0 0
    %1915 = vmatpush1.bf16.msra.mxu0 0
    %1916 = vmatprep.subr.bf16.mxu0 0
    %1917 = vmatpush1.bf16.msra.mxu0 0
    %1918 = vmatprep.subr.bf16.mxu0 0
    %1919 = vmatpush1.bf16.msra.mxu0 %v1881
    %1920 = vmatprep.subr.bf16.mxu0 0
    %1921 = vmatpush1.bf16.msra.mxu0 %v1880
    %1922 = vmatprep.subr.bf16.mxu0 0
    %1923 = vmatpush1.bf16.msra.mxu0 %v1879
    %1924 = vmatprep.subr.bf16.mxu0 0
    %1925 = vmatpush1.bf16.msra.mxu0 %v1878
    %1926 = vmatprep.subr.bf16.mxu0 0
    %1927 = vmatpush2.bf16.msra.mxu0 0
    %1928 = vmatprep.subr.bf16.mxu0 0
    %1929 = vmatpush2.bf16.msra.mxu0 0
    %1930 = vmatprep.subr.bf16.mxu0 0
    %1931 = vmatpush2.bf16.msra.mxu0 0
    %1932 = vmatprep.subr.bf16.mxu0 0
    %1933 = vmatpush2.bf16.msra.mxu0 0
    %1934 = vmatprep.subr.bf16.mxu0 0
    %1935 = vmatpush2.bf16.msra.mxu0 0
    %1936 = vmatprep.subr.bf16.mxu0 0
    %1937 = vmatpush2.bf16.msra.mxu0 0
    %1938 = vmatprep.subr.bf16.mxu0 0
    %1939 = vmatpush2.bf16.msra.mxu0 0
    %1940 = vmatprep.subr.bf16.mxu0 0
    %1941 = vmatpush2.bf16.msra.mxu0 0
    %1942 = vmatprep.mubr.bf16.mxu0 0
    %1943 = vmatmul.mubr.bf16.gmra.mxu0 %v1887
    %v1944 = vpop.f32.mrf.mxu0
    %v1945 = vadd.f32 %v1860, %v1944
    %v1946 = vpop.f32.mrf.mxu0
    %v1947 = vpop.f32.mrf.mxu0
    %v1948 = vadd.f32 %v1860, %v1947
    %v1949 = vpop.f32.mrf.mxu0
    %1950 = vmatprep.mubr.bf16.mxu0 0
    %1951 = vmatmul.mubr.bf16.gmra.mxu0 %v1890
    %v1952 = vpop.f32.mrf.mxu0
    %v1953 = vadd.f32 %v1860, %v1952
    %v1954 = vpop.f32.mrf.mxu0
    %v1955 = vpop.f32.mrf.mxu0
    %v1956 = vadd.f32 %v1860, %v1955
    %v1957 = vpop.f32.mrf.mxu0
    %1958 = vmatprep.mubr.bf16.mxu0 0
    %1959 = vmatmul.mubr.bf16.gmra.mxu0 %v1893
    %v1960 = vpop.f32.mrf.mxu0
    %v1961 = vadd.f32 %v1860, %v1960
    %v1962 = vpop.f32.mrf.mxu0
    %v1963 = vpop.f32.mrf.mxu0
    %v1964 = vadd.f32 %v1860, %v1963
    %v1965 = vpop.f32.mrf.mxu0
    %1966 = vmatprep.mubr.bf16.mxu0 0
    %1967 = vmatmul.mubr.bf16.gmra.mxu0 %v1896
    %v1968 = vpop.f32.mrf.mxu0
    %v1969 = vadd.f32 %v1860, %v1968
    %v1970 = vpop.f32.mrf.mxu0
    %v1971 = vpop.f32.mrf.mxu0
    %v1972 = vadd.f32 %v1860, %v1971
    %v1973 = vpop.f32.mrf.mxu0
    %1974 = vmatprep.mubr.bf16.mxu0 0
    %1975 = vmatmul.mubr.bf16.gmra.mxu0 %v1899
    %v1976 = vpop.f32.mrf.mxu0
    %v1977 = vadd.f32 %v1860, %v1976
    %v1978 = vpop.f32.mrf.mxu0
    %v1979 = vpop.f32.mrf.mxu0
    %v1980 = vadd.f32 %v1860, %v1979
    %v1981 = vpop.f32.mrf.mxu0
    %1982 = vmatprep.mubr.bf16.mxu0 0
    %1983 = vmatmul.mubr.bf16.gmra.mxu0 %v1902
    %v1984 = vpop.f32.mrf.mxu0
    %v1985 = vadd.f32 %v1860, %v1984
    %v1986 = vpop.f32.mrf.mxu0
    %v1987 = vpop.f32.mrf.mxu0
    %v1988 = vadd.f32 %v1860, %v1987
    %v1989 = vpop.f32.mrf.mxu0
    %1990 = vmatprep.mubr.bf16.mxu0 0
    %1991 = vmatmul.mubr.bf16.gmra.mxu0 %v1905
    %v1992 = vpop.f32.mrf.mxu0
    %v1993 = vadd.f32 %v1860, %v1992
    %v1994 = vpop.f32.mrf.mxu0
    %v1995 = vpop.f32.mrf.mxu0
    %v1996 = vadd.f32 %v1860, %v1995
    %v1997 = vpop.f32.mrf.mxu0
    %1998 = vmatprep.mubr.bf16.mxu0 0
    %1999 = vmatmul.mubr.bf16.gmra.mxu0 %v1908
    %v2000 = vpop.f32.mrf.mxu0
    %v2001 = vadd.f32 %v1860, %v2000
    %v2002 = vpop.f32.mrf.mxu0
    %v2003 = vpop.f32.mrf.mxu0
    %v2004 = vadd.f32 %v1860, %v2003
    %v2005 = vpop.f32.mrf.mxu0
    %2006 = vdwg.mxu0
    %v2007 = vmul.f32 %v1945, %v56
    %v2008 = vmul.f32 %v1948, %v61
    %v2009 = vmul.f32 %v1953, %v66
    %v2010 = vmul.f32 %v1956, %v71
    %v2011 = vmul.f32 %v1961, %v76
    %v2012 = vmul.f32 %v1964, %v81
    %v2013 = vmul.f32 %v1969, %v86
    %v2014 = vmul.f32 %v1972, %v91
    %v2015 = vmul.f32 %v1977, %v96
    %v2016 = vmul.f32 %v1980, %v101
    %v2017 = vmul.f32 %v1985, %v106
    %v2018 = vmul.f32 %v1988, %v111
    %v2019 = vmul.f32 %v1993, %v116
    %v2020 = vmul.f32 %v1996, %v121
    %v2021 = vmul.f32 %v2001, %v126
    %v2022 = vmul.f32 %v2004, %v131
    %v2023 = vsel %vm218, %v2007, 0.0
    %v2024 = vsel %vm218, %v2008, 0.0
    %v2025 = vadd.f32 %v2023, %v2024
    %v2026 = vsel %vm218, %v2009, 0.0
    %v2027 = vadd.f32 %v2025, %v2026
    %v2028 = vsel %vm218, %v2010, 0.0
    %v2029 = vadd.f32 %v2027, %v2028
    %v2030 = vsel %vm218, %v2011, 0.0
    %v2031 = vadd.f32 %v2029, %v2030
    %v2032 = vsel %vm218, %v2012, 0.0
    %v2033 = vadd.f32 %v2031, %v2032
    %v2034 = vsel %vm218, %v2013, 0.0
    %v2035 = vadd.f32 %v2033, %v2034
    %v2036 = vsel %vm218, %v2014, 0.0
    %v2037 = vadd.f32 %v2035, %v2036
    %v2038 = vsel %vm218, %v2015, 0.0
    %v2039 = vadd.f32 %v2037, %v2038
    %v2040 = vsel %vm218, %v2016, 0.0
    %v2041 = vadd.f32 %v2039, %v2040
    %v2042 = vsel %vm218, %v2017, 0.0
    %v2043 = vadd.f32 %v2041, %v2042
    %v2044 = vsel %vm218, %v2018, 0.0
    %v2045 = vadd.f32 %v2043, %v2044
    %v2046 = vsel %vm218, %v2019, 0.0
    %v2047 = vadd.f32 %v2045, %v2046
    %v2048 = vsel %vm218, %v2020, 0.0
    %v2049 = vadd.f32 %v2047, %v2048
    %v2050 = vsel %vm218, %v2021, 0.0
    %v2051 = vadd.f32 %v2049, %v2050
    %v2052 = vsel %vm218, %v2022, 0.0
    %v2053 = vadd.f32 %v2051, %v2052
    %v2054 = vrot.slane %v2053, 4
    %v2055 = vadd.f32 %v2053, %v2054
    %v2056 = vrot.slane %v2055, 2
    %v2057 = vadd.f32 %v2055, %v2056
    %v2058 = vrot.slane %v2057, 1
    %v2059 = vadd.f32 %v2057, %v2058
    %v2060 = vmul.f32 %v2059, %v177
    %v2061 = vmul.f32 %v2007, %v1945
    %v2062 = vmul.f32 %v2008, %v1948
    %v2063 = vmul.f32 %v2009, %v1953
    %v2064 = vmul.f32 %v2010, %v1956
    %v2065 = vmul.f32 %v2011, %v1961
    %v2066 = vmul.f32 %v2012, %v1964
    %v2067 = vmul.f32 %v2013, %v1969
    %v2068 = vmul.f32 %v2014, %v1972
    %v2069 = vmul.f32 %v2015, %v1977
    %v2070 = vmul.f32 %v2016, %v1980
    %v2071 = vmul.f32 %v2017, %v1985
    %v2072 = vmul.f32 %v2018, %v1988
    %v2073 = vmul.f32 %v2019, %v1993
    %v2074 = vmul.f32 %v2020, %v1996
    %v2075 = vmul.f32 %v2021, %v2001
    %v2076 = vmul.f32 %v2022, %v2004
    %v2077 = vsel %vm218, %v2061, 0.0
    %v2078 = vsel %vm218, %v2062, 0.0
    %v2079 = vadd.f32 %v2077, %v2078
    %v2080 = vsel %vm218, %v2063, 0.0
    %v2081 = vadd.f32 %v2079, %v2080
    %v2082 = vsel %vm218, %v2064, 0.0
    %v2083 = vadd.f32 %v2081, %v2082
    %v2084 = vsel %vm218, %v2065, 0.0
    %v2085 = vadd.f32 %v2083, %v2084
    %v2086 = vsel %vm218, %v2066, 0.0
    %v2087 = vadd.f32 %v2085, %v2086
    %v2088 = vsel %vm218, %v2067, 0.0
    %v2089 = vadd.f32 %v2087, %v2088
    %v2090 = vsel %vm218, %v2068, 0.0
    %v2091 = vadd.f32 %v2089, %v2090
    %v2092 = vsel %vm218, %v2069, 0.0
    %v2093 = vadd.f32 %v2091, %v2092
    %v2094 = vsel %vm218, %v2070, 0.0
    %v2095 = vadd.f32 %v2093, %v2094
    %v2096 = vsel %vm218, %v2071, 0.0
    %v2097 = vadd.f32 %v2095, %v2096
    %v2098 = vsel %vm218, %v2072, 0.0
    %v2099 = vadd.f32 %v2097, %v2098
    %v2100 = vsel %vm218, %v2073, 0.0
    %v2101 = vadd.f32 %v2099, %v2100
    %v2102 = vsel %vm218, %v2074, 0.0
    %v2103 = vadd.f32 %v2101, %v2102
    %v2104 = vsel %vm218, %v2075, 0.0
    %v2105 = vadd.f32 %v2103, %v2104
    %v2106 = vsel %vm218, %v2076, 0.0
    %v2107 = vadd.f32 %v2105, %v2106
    %v2108 = vrot.slane %v2107, 4
    %v2109 = vadd.f32 %v2107, %v2108
    %v2110 = vrot.slane %v2109, 2
    %v2111 = vadd.f32 %v2109, %v2110
    %v2112 = vrot.slane %v2111, 1
    %v2113 = vadd.f32 %v2111, %v2112
    %v2114 = vmul.f32 %v2113, %v177
    %v2115 = vmul.f32 %v2060, %v2060
    %v2116 = vsub.f32 %v2114, %v2115
    %v2117 = vmax.f32 %v2116, 0.0
    %v2118 = vsub.f32 %v1945, %v2060
    %v2119 = vsub.f32 %v1948, %v2060
    %v2120 = vsub.f32 %v1953, %v2060
    %v2121 = vsub.f32 %v1956, %v2060
    %v2122 = vsub.f32 %v1961, %v2060
    %v2123 = vsub.f32 %v1964, %v2060
    %v2124 = vsub.f32 %v1969, %v2060
    %v2125 = vsub.f32 %v1972, %v2060
    %v2126 = vsub.f32 %v1977, %v2060
    %v2127 = vsub.f32 %v1980, %v2060
    %v2128 = vsub.f32 %v1985, %v2060
    %v2129 = vsub.f32 %v1988, %v2060
    %v2130 = vsub.f32 %v1993, %v2060
    %v2131 = vsub.f32 %v1996, %v2060
    %v2132 = vsub.f32 %v2001, %v2060
    %v2133 = vsub.f32 %v2004, %v2060
    %v2134 = vadd.f32 %v2117, 1e-05
    %v2135 = vrsqrt.pop %v2134
    %v2136 = vmul.f32 %v2118, %v2135
    %v2137 = vmul.f32 %v2119, %v2135
    %v2138 = vmul.f32 %v2120, %v2135
    %v2139 = vmul.f32 %v2121, %v2135
    %v2140 = vmul.f32 %v2122, %v2135
    %v2141 = vmul.f32 %v2123, %v2135
    %v2142 = vmul.f32 %v2124, %v2135
    %v2143 = vmul.f32 %v2125, %v2135
    %v2144 = vmul.f32 %v2126, %v2135
    %v2145 = vmul.f32 %v2127, %v2135
    %v2146 = vmul.f32 %v2128, %v2135
    %v2147 = vmul.f32 %v2129, %v2135
    %v2148 = vmul.f32 %v2130, %v2135
    %v2149 = vmul.f32 %v2131, %v2135
    %v2150 = vmul.f32 %v2132, %v2135
    %v2151 = vmul.f32 %v2133, %v2135
    %s2152 = scalar_lea.vmem %s7, 2
    %v2153 = vld [vmem:[%s2152] sm:$0x1]
    %v2155 = vlaneseq
    %v2156 = vshrl.u32 %v2155, 7
    %v2157 = vsub.s32 0, %v2156
    %v2158 = vrot.slane %v2153, %v2157
    %v2160 = vmul.f32 %v2136, %v2158
    %v2161 = vmul.f32 %v2137, %v2158
    %v2162 = vmul.f32 %v2138, %v2158
    %v2163 = vmul.f32 %v2139, %v2158
    %v2164 = vmul.f32 %v2140, %v2158
    %v2165 = vmul.f32 %v2141, %v2158
    %v2166 = vmul.f32 %v2142, %v2158
    %v2167 = vmul.f32 %v2143, %v2158
    %v2168 = vmul.f32 %v2144, %v2158
    %v2169 = vmul.f32 %v2145, %v2158
    %v2170 = vmul.f32 %v2146, %v2158
    %v2171 = vmul.f32 %v2147, %v2158
    %v2172 = vmul.f32 %v2148, %v2158
    %v2173 = vmul.f32 %v2149, %v2158
    %v2174 = vmul.f32 %v2150, %v2158
    %v2175 = vmul.f32 %v2151, %v2158
    %s2176 = scalar_lea.vmem %s8, 2
    %v2177 = vld [vmem:[%s2176] sm:$0x1]
    %v2179 = vlaneseq
    %v2180 = vshrl.u32 %v2179, 7
    %v2181 = vsub.s32 0, %v2180
    %v2182 = vrot.slane %v2177, %v2181
    %v2184 = vadd.f32 %v2160, %v2182
    %v2185 = vadd.f32 %v2161, %v2182
    %v2186 = vadd.f32 %v2162, %v2182
    %v2187 = vadd.f32 %v2163, %v2182
    %v2188 = vadd.f32 %v2164, %v2182
    %v2189 = vadd.f32 %v2165, %v2182
    %v2190 = vadd.f32 %v2166, %v2182
    %v2191 = vadd.f32 %v2167, %v2182
    %v2192 = vadd.f32 %v2168, %v2182
    %v2193 = vadd.f32 %v2169, %v2182
    %v2194 = vadd.f32 %v2170, %v2182
    %v2195 = vadd.f32 %v2171, %v2182
    %v2196 = vadd.f32 %v2172, %v2182
    %v2197 = vadd.f32 %v2173, %v2182
    %v2198 = vadd.f32 %v2174, %v2182
    %v2199 = vadd.f32 %v2175, %v2182
    %v2200 = vmax.f32 %v2184, 0.0
    %v2201 = vmax.f32 %v2185, 0.0
    %v2202 = vmax.f32 %v2186, 0.0
    %v2203 = vmax.f32 %v2187, 0.0
    %v2204 = vmax.f32 %v2188, 0.0
    %v2205 = vmax.f32 %v2189, 0.0
    %v2206 = vmax.f32 %v2190, 0.0
    %v2207 = vmax.f32 %v2191, 0.0
    %v2208 = vmax.f32 %v2192, 0.0
    %v2209 = vmax.f32 %v2193, 0.0
    %v2210 = vmax.f32 %v2194, 0.0
    %v2211 = vmax.f32 %v2195, 0.0
    %v2212 = vmax.f32 %v2196, 0.0
    %v2213 = vmax.f32 %v2197, 0.0
    %v2214 = vmax.f32 %v2198, 0.0
    %v2215 = vmax.f32 %v2199, 0.0
    %v2216 = vpack.c.bf16 %v2201, %v2200
    %v2217 = vpack.c.bf16 %v2203, %v2202
    %v2218 = vpack.c.bf16 %v2205, %v2204
    %v2219 = vpack.c.bf16 %v2207, %v2206
    %v2220 = vpack.c.bf16 %v2209, %v2208
    %v2221 = vpack.c.bf16 %v2211, %v2210
    %v2222 = vpack.c.bf16 %v2213, %v2212
    %v2223 = vpack.c.bf16 %v2215, %v2214
    %s2224 = scalar_lea.vmem %s3, 48
    %v2225 = vld [vmem:[%s2224] sm:$0xf]
    %v2226 = vld [vmem:[%s2224 + $0x4] sm:$0xf]
    %v2227 = vld [vmem:[%s2224 + $0x8] sm:$0xf]
    %v2228 = vld [vmem:[%s2224 + $0xc] sm:$0xf]
    %v2233 = vunpack.c.l.b16 %v2225
    %v2234 = vunpack.c.l.b16 %v2226
    %v2235 = vunpack.c.l.b16 %v2227
    %v2236 = vunpack.c.l.b16 %v2228
    %v2237 = vpack.c.b16 %v2234, %v2233
    %v2238 = vpack.c.b16 %v2236, %v2235
    %v2242 = vsel %vm218, %v2216, 0
    %v2245 = vsel %vm218, %v2217, 0
    %v2248 = vsel %vm218, %v2218, 0
    %v2251 = vsel %vm218, %v2219, 0
    %v2254 = vsel %vm218, %v2220, 0
    %v2257 = vsel %vm218, %v2221, 0
    %v2260 = vsel %vm218, %v2222, 0
    %v2263 = vsel %vm218, %v2223, 0
    %2265 = vmatprep.subr.bf16.mxu0 0
    %2266 = vmatpush1.bf16.msra.mxu0 0
    %2267 = vmatprep.subr.bf16.mxu0 0
    %2268 = vmatpush1.bf16.msra.mxu0 0
    %2269 = vmatprep.subr.bf16.mxu0 0
    %2270 = vmatpush1.bf16.msra.mxu0 0
    %2271 = vmatprep.subr.bf16.mxu0 0
    %2272 = vmatpush1.bf16.msra.mxu0 0
    %2273 = vmatprep.subr.bf16.mxu0 0
    %2274 = vmatpush1.bf16.msra.mxu0 0
    %2275 = vmatprep.subr.bf16.mxu0 0
    %2276 = vmatpush1.bf16.msra.mxu0 0
    %2277 = vmatprep.subr.bf16.mxu0 0
    %2278 = vmatpush1.bf16.msra.mxu0 %v2238
    %2279 = vmatprep.subr.bf16.mxu0 0
    %2280 = vmatpush1.bf16.msra.mxu0 %v2237
    %2281 = vmatprep.subr.bf16.mxu0 0
    %2282 = vmatpush2.bf16.msra.mxu0 0
    %2283 = vmatprep.subr.bf16.mxu0 0
    %2284 = vmatpush2.bf16.msra.mxu0 0
    %2285 = vmatprep.subr.bf16.mxu0 0
    %2286 = vmatpush2.bf16.msra.mxu0 0
    %2287 = vmatprep.subr.bf16.mxu0 0
    %2288 = vmatpush2.bf16.msra.mxu0 0
    %2289 = vmatprep.subr.bf16.mxu0 0
    %2290 = vmatpush2.bf16.msra.mxu0 0
    %2291 = vmatprep.subr.bf16.mxu0 0
    %2292 = vmatpush2.bf16.msra.mxu0 0
    %2293 = vmatprep.subr.bf16.mxu0 0
    %2294 = vmatpush2.bf16.msra.mxu0 0
    %2295 = vmatprep.subr.bf16.mxu0 0
    %2296 = vmatpush2.bf16.msra.mxu0 0
    %2297 = vmatprep.mubr.bf16.mxu0 0
    %2298 = vmatmul.mubr.bf16.gmra.mxu0 %v2242
    %v2299 = vpop.f32.mrf.mxu0
    %v2300 = vadd.f32 0.0, %v2299
    %v2301 = vpop.f32.mrf.mxu0
    %v2302 = vpop.f32.mrf.mxu0
    %v2303 = vadd.f32 0.0, %v2302
    %v2304 = vpop.f32.mrf.mxu0
    %2305 = vmatprep.mubr.bf16.mxu0 0
    %2306 = vmatmul.mubr.bf16.gmra.mxu0 %v2245
    %v2307 = vpop.f32.mrf.mxu0
    %v2308 = vadd.f32 0.0, %v2307
    %v2309 = vpop.f32.mrf.mxu0
    %v2310 = vpop.f32.mrf.mxu0
    %v2311 = vadd.f32 0.0, %v2310
    %v2312 = vpop.f32.mrf.mxu0
    %2313 = vmatprep.mubr.bf16.mxu0 0
    %2314 = vmatmul.mubr.bf16.gmra.mxu0 %v2248
    %v2315 = vpop.f32.mrf.mxu0
    %v2316 = vadd.f32 0.0, %v2315
    %v2317 = vpop.f32.mrf.mxu0
    %v2318 = vpop.f32.mrf.mxu0
    %v2319 = vadd.f32 0.0, %v2318
    %v2320 = vpop.f32.mrf.mxu0
    %2321 = vmatprep.mubr.bf16.mxu0 0
    %2322 = vmatmul.mubr.bf16.gmra.mxu0 %v2251
    %v2323 = vpop.f32.mrf.mxu0
    %v2324 = vadd.f32 0.0, %v2323
    %v2325 = vpop.f32.mrf.mxu0
    %v2326 = vpop.f32.mrf.mxu0
    %v2327 = vadd.f32 0.0, %v2326
    %v2328 = vpop.f32.mrf.mxu0
    %2329 = vmatprep.mubr.bf16.mxu0 0
    %2330 = vmatmul.mubr.bf16.gmra.mxu0 %v2254
    %v2331 = vpop.f32.mrf.mxu0
    %v2332 = vadd.f32 0.0, %v2331
    %v2333 = vpop.f32.mrf.mxu0
    %v2334 = vpop.f32.mrf.mxu0
    %v2335 = vadd.f32 0.0, %v2334
    %v2336 = vpop.f32.mrf.mxu0
    %2337 = vmatprep.mubr.bf16.mxu0 0
    %2338 = vmatmul.mubr.bf16.gmra.mxu0 %v2257
    %v2339 = vpop.f32.mrf.mxu0
    %v2340 = vadd.f32 0.0, %v2339
    %v2341 = vpop.f32.mrf.mxu0
    %v2342 = vpop.f32.mrf.mxu0
    %v2343 = vadd.f32 0.0, %v2342
    %v2344 = vpop.f32.mrf.mxu0
    %2345 = vmatprep.mubr.bf16.mxu0 0
    %2346 = vmatmul.mubr.bf16.gmra.mxu0 %v2260
    %v2347 = vpop.f32.mrf.mxu0
    %v2348 = vadd.f32 0.0, %v2347
    %v2349 = vpop.f32.mrf.mxu0
    %v2350 = vpop.f32.mrf.mxu0
    %v2351 = vadd.f32 0.0, %v2350
    %v2352 = vpop.f32.mrf.mxu0
    %2353 = vmatprep.mubr.bf16.mxu0 0
    %2354 = vmatmul.mubr.bf16.gmra.mxu0 %v2263
    %v2355 = vpop.f32.mrf.mxu0
    %v2356 = vadd.f32 0.0, %v2355
    %v2357 = vpop.f32.mrf.mxu0
    %v2358 = vpop.f32.mrf.mxu0
    %v2359 = vadd.f32 0.0, %v2358
    %v2360 = vpop.f32.mrf.mxu0
    %2361 = vdwg.mxu0
    %v2362 = vpack.c.bf16 %v2303, %v2300
    %v2363 = vpack.c.bf16 %v2311, %v2308
    %v2364 = vpack.c.bf16 %v2319, %v2316
    %v2365 = vpack.c.bf16 %v2327, %v2324
    %v2366 = vpack.c.bf16 %v2335, %v2332
    %v2367 = vpack.c.bf16 %v2343, %v2340
    %v2368 = vpack.c.bf16 %v2351, %v2348
    %v2369 = vpack.c.bf16 %v2359, %v2356
    %s2370 = scalar_lea.vmem %s4, 3
    %v2371 = vld [vmem:[%s2370] sm:$0x1]
    %v2373 = vlaneseq
    %v2374 = vshrl.u32 %v2373, 7
    %v2375 = vsub.s32 0, %v2374
    %v2376 = vrot.slane %v2371, %v2375
    %2378 = vmatprep.subr.bf16.mxu0 0
    %2379 = vmatpush1.bf16.msra.mxu0 %v2369
    %2380 = vmatprep.subr.bf16.mxu0 0
    %2381 = vmatpush1.bf16.msra.mxu0 %v2368
    %2382 = vmatprep.subr.bf16.mxu0 0
    %2383 = vmatpush1.bf16.msra.mxu0 %v2367
    %2384 = vmatprep.subr.bf16.mxu0 0
    %2385 = vmatpush1.bf16.msra.mxu0 %v2366
    %2386 = vmatprep.subr.bf16.mxu0 0
    %2387 = vmatpush1.bf16.msra.mxu0 %v2365
    %2388 = vmatprep.subr.bf16.mxu0 0
    %2389 = vmatpush1.bf16.msra.mxu0 %v2364
    %2390 = vmatprep.subr.bf16.mxu0 0
    %2391 = vmatpush1.bf16.msra.mxu0 %v2363
    %2392 = vmatprep.subr.bf16.mxu0 0
    %2393 = vmatpush1.bf16.msra.mxu0 %v2362
    %2394 = vmatprep.subr.bf16.mxu0 0
    %2395 = vmatpush2.bf16.msra.mxu0 0
    %2396 = vmatprep.subr.bf16.mxu0 0
    %2397 = vmatpush2.bf16.msra.mxu0 0
    %2398 = vmatprep.subr.bf16.mxu0 0
    %2399 = vmatpush2.bf16.msra.mxu0 0
    %2400 = vmatprep.subr.bf16.mxu0 0
    %2401 = vmatpush2.bf16.msra.mxu0 0
    %2402 = vmatprep.subr.bf16.mxu0 0
    %2403 = vmatpush2.bf16.msra.mxu0 0
    %2404 = vmatprep.subr.bf16.mxu0 0
    %2405 = vmatpush2.bf16.msra.mxu0 0
    %2406 = vmatprep.subr.bf16.mxu0 0
    %2407 = vmatpush2.bf16.msra.mxu0 0
    %2408 = vmatprep.subr.bf16.mxu0 0
    %2409 = vmatpush2.bf16.msra.mxu0 0
    %2410 = vmatprep.mubr.bf16.mxu0 0
    %2411 = vmatmul.mubr.bf16.gmra.mxu0 %v403
    %v2412 = vpop.f32.mrf.mxu0
    %v2413 = vadd.f32 %v2376, %v2412
    %v2414 = vpop.f32.mrf.mxu0
    %v2415 = vpop.f32.mrf.mxu0
    %v2416 = vadd.f32 %v2376, %v2415
    %v2417 = vpop.f32.mrf.mxu0
    %2418 = vmatprep.mubr.bf16.mxu0 0
    %2419 = vmatmul.mubr.bf16.gmra.mxu0 %v404
    %v2420 = vpop.f32.mrf.mxu0
    %v2421 = vadd.f32 %v2376, %v2420
    %v2422 = vpop.f32.mrf.mxu0
    %v2423 = vpop.f32.mrf.mxu0
    %v2424 = vadd.f32 %v2376, %v2423
    %v2425 = vpop.f32.mrf.mxu0
    %2426 = vmatprep.mubr.bf16.mxu0 0
    %2427 = vmatmul.mubr.bf16.gmra.mxu0 %v405
    %v2428 = vpop.f32.mrf.mxu0
    %v2429 = vadd.f32 %v2376, %v2428
    %v2430 = vpop.f32.mrf.mxu0
    %v2431 = vpop.f32.mrf.mxu0
    %v2432 = vadd.f32 %v2376, %v2431
    %v2433 = vpop.f32.mrf.mxu0
    %2434 = vmatprep.mubr.bf16.mxu0 0
    %2435 = vmatmul.mubr.bf16.gmra.mxu0 %v406
    %v2436 = vpop.f32.mrf.mxu0
    %v2437 = vadd.f32 %v2376, %v2436
    %v2438 = vpop.f32.mrf.mxu0
    %v2439 = vpop.f32.mrf.mxu0
    %v2440 = vadd.f32 %v2376, %v2439
    %v2441 = vpop.f32.mrf.mxu0
    %2442 = vmatprep.mubr.bf16.mxu0 0
    %2443 = vmatmul.mubr.bf16.gmra.mxu0 %v407
    %v2444 = vpop.f32.mrf.mxu0
    %v2445 = vadd.f32 %v2376, %v2444
    %v2446 = vpop.f32.mrf.mxu0
    %v2447 = vpop.f32.mrf.mxu0
    %v2448 = vadd.f32 %v2376, %v2447
    %v2449 = vpop.f32.mrf.mxu0
    %2450 = vmatprep.mubr.bf16.mxu0 0
    %2451 = vmatmul.mubr.bf16.gmra.mxu0 %v408
    %v2452 = vpop.f32.mrf.mxu0
    %v2453 = vadd.f32 %v2376, %v2452
    %v2454 = vpop.f32.mrf.mxu0
    %v2455 = vpop.f32.mrf.mxu0
    %v2456 = vadd.f32 %v2376, %v2455
    %v2457 = vpop.f32.mrf.mxu0
    %2458 = vmatprep.mubr.bf16.mxu0 0
    %2459 = vmatmul.mubr.bf16.gmra.mxu0 %v409
    %v2460 = vpop.f32.mrf.mxu0
    %v2461 = vadd.f32 %v2376, %v2460
    %v2462 = vpop.f32.mrf.mxu0
    %v2463 = vpop.f32.mrf.mxu0
    %v2464 = vadd.f32 %v2376, %v2463
    %v2465 = vpop.f32.mrf.mxu0
    %2466 = vmatprep.mubr.bf16.mxu0 0
    %2467 = vmatmul.mubr.bf16.gmra.mxu0 %v410
    %v2468 = vpop.f32.mrf.mxu0
    %v2469 = vadd.f32 %v2376, %v2468
    %v2470 = vpop.f32.mrf.mxu0
    %v2471 = vpop.f32.mrf.mxu0
    %v2472 = vadd.f32 %v2376, %v2471
    %v2473 = vpop.f32.mrf.mxu0
    %2474 = vdwg.mxu0
    %v2475 = vmax.f32 %v2413, 0.0
    %v2476 = vmax.f32 %v2416, 0.0
    %v2477 = vmax.f32 %v2421, 0.0
    %v2478 = vmax.f32 %v2424, 0.0
    %v2479 = vmax.f32 %v2429, 0.0
    %v2480 = vmax.f32 %v2432, 0.0
    %v2481 = vmax.f32 %v2437, 0.0
    %v2482 = vmax.f32 %v2440, 0.0
    %v2483 = vmax.f32 %v2445, 0.0
    %v2484 = vmax.f32 %v2448, 0.0
    %v2485 = vmax.f32 %v2453, 0.0
    %v2486 = vmax.f32 %v2456, 0.0
    %v2487 = vmax.f32 %v2461, 0.0
    %v2488 = vmax.f32 %v2464, 0.0
    %v2489 = vmax.f32 %v2469, 0.0
    %v2490 = vmax.f32 %v2472, 0.0
    %v2491 = vpack.c.bf16 %v2476, %v2475
    %v2492 = vpack.c.bf16 %v2478, %v2477
    %v2493 = vpack.c.bf16 %v2480, %v2479
    %v2494 = vpack.c.bf16 %v2482, %v2481
    %v2495 = vpack.c.bf16 %v2484, %v2483
    %v2496 = vpack.c.bf16 %v2486, %v2485
    %v2497 = vpack.c.bf16 %v2488, %v2487
    %v2498 = vpack.c.bf16 %v2490, %v2489
    %s2499 = scalar_lea.vmem %s5, 96
    %v2500 = vld [vmem:[%s2499] sm:$0xf]
    %v2501 = vld [vmem:[%s2499 + $0x4] sm:$0xf]
    %v2502 = vld [vmem:[%s2499 + $0x8] sm:$0xf]
    %v2503 = vld [vmem:[%s2499 + $0xc] sm:$0xf]
    %v2504 = vld [vmem:[%s2499 + $0x10] sm:$0xf]
    %v2505 = vld [vmem:[%s2499 + $0x14] sm:$0xf]
    %v2506 = vld [vmem:[%s2499 + $0x18] sm:$0xf]
    %v2507 = vld [vmem:[%s2499 + $0x1c] sm:$0xf]
    %s2508 = scalar_lea.vmem %s6, 3
    %v2509 = vld [vmem:[%s2508] sm:$0x1]
    %v2511 = vlaneseq
    %v2512 = vshrl.u32 %v2511, 7
    %v2513 = vsub.s32 0, %v2512
    %v2514 = vrot.slane %v2509, %v2513
    %v2524 = vunpack.c.l.b16 %v2500
    %v2525 = vunpack.c.l.b16 %v2501
    %v2526 = vunpack.c.l.b16 %v2502
    %v2527 = vunpack.c.l.b16 %v2503
    %v2528 = vunpack.c.l.b16 %v2504
    %v2529 = vunpack.c.l.b16 %v2505
    %v2530 = vunpack.c.l.b16 %v2506
    %v2531 = vunpack.c.l.b16 %v2507
    %v2532 = vpack.c.b16 %v2525, %v2524
    %v2533 = vpack.c.b16 %v2527, %v2526
    %v2534 = vpack.c.b16 %v2529, %v2528
    %v2535 = vpack.c.b16 %v2531, %v2530
    %v2541 = vsel %vm579, %v2491, 0
    %v2544 = vsel %vm579, %v2492, 0
    %v2547 = vsel %vm579, %v2493, 0
    %v2550 = vsel %vm579, %v2494, 0
    %v2553 = vsel %vm579, %v2495, 0
    %v2556 = vsel %vm579, %v2496, 0
    %v2559 = vsel %vm579, %v2497, 0
    %v2562 = vsel %vm579, %v2498, 0
    %2564 = vmatprep.subr.bf16.mxu0 0
    %2565 = vmatpush1.bf16.msra.mxu0 0
    %2566 = vmatprep.subr.bf16.mxu0 0
    %2567 = vmatpush1.bf16.msra.mxu0 0
    %2568 = vmatprep.subr.bf16.mxu0 0
    %2569 = vmatpush1.bf16.msra.mxu0 0
    %2570 = vmatprep.subr.bf16.mxu0 0
    %2571 = vmatpush1.bf16.msra.mxu0 0
    %2572 = vmatprep.subr.bf16.mxu0 0
    %2573 = vmatpush1.bf16.msra.mxu0 %v2535
    %2574 = vmatprep.subr.bf16.mxu0 0
    %2575 = vmatpush1.bf16.msra.mxu0 %v2534
    %2576 = vmatprep.subr.bf16.mxu0 0
    %2577 = vmatpush1.bf16.msra.mxu0 %v2533
    %2578 = vmatprep.subr.bf16.mxu0 0
    %2579 = vmatpush1.bf16.msra.mxu0 %v2532
    %2580 = vmatprep.subr.bf16.mxu0 0
    %2581 = vmatpush2.bf16.msra.mxu0 0
    %2582 = vmatprep.subr.bf16.mxu0 0
    %2583 = vmatpush2.bf16.msra.mxu0 0
    %2584 = vmatprep.subr.bf16.mxu0 0
    %2585 = vmatpush2.bf16.msra.mxu0 0
    %2586 = vmatprep.subr.bf16.mxu0 0
    %2587 = vmatpush2.bf16.msra.mxu0 0
    %2588 = vmatprep.subr.bf16.mxu0 0
    %2589 = vmatpush2.bf16.msra.mxu0 0
    %2590 = vmatprep.subr.bf16.mxu0 0
    %2591 = vmatpush2.bf16.msra.mxu0 0
    %2592 = vmatprep.subr.bf16.mxu0 0
    %2593 = vmatpush2.bf16.msra.mxu0 0
    %2594 = vmatprep.subr.bf16.mxu0 0
    %2595 = vmatpush2.bf16.msra.mxu0 0
    %2596 = vmatprep.mubr.bf16.mxu0 0
    %2597 = vmatmul.mubr.bf16.gmra.mxu0 %v2541
    %v2598 = vpop.f32.mrf.mxu0
    %v2599 = vadd.f32 %v2514, %v2598
    %v2600 = vpop.f32.mrf.mxu0
    %v2601 = vpop.f32.mrf.mxu0
    %v2602 = vadd.f32 %v2514, %v2601
    %v2603 = vpop.f32.mrf.mxu0
    %2604 = vmatprep.mubr.bf16.mxu0 0
    %2605 = vmatmul.mubr.bf16.gmra.mxu0 %v2544
    %v2606 = vpop.f32.mrf.mxu0
    %v2607 = vadd.f32 %v2514, %v2606
    %v2608 = vpop.f32.mrf.mxu0
    %v2609 = vpop.f32.mrf.mxu0
    %v2610 = vadd.f32 %v2514, %v2609
    %v2611 = vpop.f32.mrf.mxu0
    %2612 = vmatprep.mubr.bf16.mxu0 0
    %2613 = vmatmul.mubr.bf16.gmra.mxu0 %v2547
    %v2614 = vpop.f32.mrf.mxu0
    %v2615 = vadd.f32 %v2514, %v2614
    %v2616 = vpop.f32.mrf.mxu0
    %v2617 = vpop.f32.mrf.mxu0
    %v2618 = vadd.f32 %v2514, %v2617
    %v2619 = vpop.f32.mrf.mxu0
    %2620 = vmatprep.mubr.bf16.mxu0 0
    %2621 = vmatmul.mubr.bf16.gmra.mxu0 %v2550
    %v2622 = vpop.f32.mrf.mxu0
    %v2623 = vadd.f32 %v2514, %v2622
    %v2624 = vpop.f32.mrf.mxu0
    %v2625 = vpop.f32.mrf.mxu0
    %v2626 = vadd.f32 %v2514, %v2625
    %v2627 = vpop.f32.mrf.mxu0
    %2628 = vmatprep.mubr.bf16.mxu0 0
    %2629 = vmatmul.mubr.bf16.gmra.mxu0 %v2553
    %v2630 = vpop.f32.mrf.mxu0
    %v2631 = vadd.f32 %v2514, %v2630
    %v2632 = vpop.f32.mrf.mxu0
    %v2633 = vpop.f32.mrf.mxu0
    %v2634 = vadd.f32 %v2514, %v2633
    %v2635 = vpop.f32.mrf.mxu0
    %2636 = vmatprep.mubr.bf16.mxu0 0
    %2637 = vmatmul.mubr.bf16.gmra.mxu0 %v2556
    %v2638 = vpop.f32.mrf.mxu0
    %v2639 = vadd.f32 %v2514, %v2638
    %v2640 = vpop.f32.mrf.mxu0
    %v2641 = vpop.f32.mrf.mxu0
    %v2642 = vadd.f32 %v2514, %v2641
    %v2643 = vpop.f32.mrf.mxu0
    %2644 = vmatprep.mubr.bf16.mxu0 0
    %2645 = vmatmul.mubr.bf16.gmra.mxu0 %v2559
    %v2646 = vpop.f32.mrf.mxu0
    %v2647 = vadd.f32 %v2514, %v2646
    %v2648 = vpop.f32.mrf.mxu0
    %v2649 = vpop.f32.mrf.mxu0
    %v2650 = vadd.f32 %v2514, %v2649
    %v2651 = vpop.f32.mrf.mxu0
    %2652 = vmatprep.mubr.bf16.mxu0 0
    %2653 = vmatmul.mubr.bf16.gmra.mxu0 %v2562
    %v2654 = vpop.f32.mrf.mxu0
    %v2655 = vadd.f32 %v2514, %v2654
    %v2656 = vpop.f32.mrf.mxu0
    %v2657 = vpop.f32.mrf.mxu0
    %v2658 = vadd.f32 %v2514, %v2657
    %v2659 = vpop.f32.mrf.mxu0
    %2660 = vdwg.mxu0
    %v2661 = vmul.f32 %v2599, %v56
    %v2662 = vmul.f32 %v2602, %v61
    %v2663 = vmul.f32 %v2607, %v66
    %v2664 = vmul.f32 %v2610, %v71
    %v2665 = vmul.f32 %v2615, %v76
    %v2666 = vmul.f32 %v2618, %v81
    %v2667 = vmul.f32 %v2623, %v86
    %v2668 = vmul.f32 %v2626, %v91
    %v2669 = vmul.f32 %v2631, %v96
    %v2670 = vmul.f32 %v2634, %v101
    %v2671 = vmul.f32 %v2639, %v106
    %v2672 = vmul.f32 %v2642, %v111
    %v2673 = vmul.f32 %v2647, %v116
    %v2674 = vmul.f32 %v2650, %v121
    %v2675 = vmul.f32 %v2655, %v126
    %v2676 = vmul.f32 %v2658, %v131
    %v2677 = vsel %vm218, %v2661, 0.0
    %v2678 = vsel %vm218, %v2662, 0.0
    %v2679 = vadd.f32 %v2677, %v2678
    %v2680 = vsel %vm218, %v2663, 0.0
    %v2681 = vadd.f32 %v2679, %v2680
    %v2682 = vsel %vm218, %v2664, 0.0
    %v2683 = vadd.f32 %v2681, %v2682
    %v2684 = vsel %vm218, %v2665, 0.0
    %v2685 = vadd.f32 %v2683, %v2684
    %v2686 = vsel %vm218, %v2666, 0.0
    %v2687 = vadd.f32 %v2685, %v2686
    %v2688 = vsel %vm218, %v2667, 0.0
    %v2689 = vadd.f32 %v2687, %v2688
    %v2690 = vsel %vm218, %v2668, 0.0
    %v2691 = vadd.f32 %v2689, %v2690
    %v2692 = vsel %vm218, %v2669, 0.0
    %v2693 = vadd.f32 %v2691, %v2692
    %v2694 = vsel %vm218, %v2670, 0.0
    %v2695 = vadd.f32 %v2693, %v2694
    %v2696 = vsel %vm218, %v2671, 0.0
    %v2697 = vadd.f32 %v2695, %v2696
    %v2698 = vsel %vm218, %v2672, 0.0
    %v2699 = vadd.f32 %v2697, %v2698
    %v2700 = vsel %vm218, %v2673, 0.0
    %v2701 = vadd.f32 %v2699, %v2700
    %v2702 = vsel %vm218, %v2674, 0.0
    %v2703 = vadd.f32 %v2701, %v2702
    %v2704 = vsel %vm218, %v2675, 0.0
    %v2705 = vadd.f32 %v2703, %v2704
    %v2706 = vsel %vm218, %v2676, 0.0
    %v2707 = vadd.f32 %v2705, %v2706
    %v2708 = vrot.slane %v2707, 4
    %v2709 = vadd.f32 %v2707, %v2708
    %v2710 = vrot.slane %v2709, 2
    %v2711 = vadd.f32 %v2709, %v2710
    %v2712 = vrot.slane %v2711, 1
    %v2713 = vadd.f32 %v2711, %v2712
    %v2714 = vmul.f32 %v2713, %v177
    %v2715 = vmul.f32 %v2661, %v2599
    %v2716 = vmul.f32 %v2662, %v2602
    %v2717 = vmul.f32 %v2663, %v2607
    %v2718 = vmul.f32 %v2664, %v2610
    %v2719 = vmul.f32 %v2665, %v2615
    %v2720 = vmul.f32 %v2666, %v2618
    %v2721 = vmul.f32 %v2667, %v2623
    %v2722 = vmul.f32 %v2668, %v2626
    %v2723 = vmul.f32 %v2669, %v2631
    %v2724 = vmul.f32 %v2670, %v2634
    %v2725 = vmul.f32 %v2671, %v2639
    %v2726 = vmul.f32 %v2672, %v2642
    %v2727 = vmul.f32 %v2673, %v2647
    %v2728 = vmul.f32 %v2674, %v2650
    %v2729 = vmul.f32 %v2675, %v2655
    %v2730 = vmul.f32 %v2676, %v2658
    %v2731 = vsel %vm218, %v2715, 0.0
    %v2732 = vsel %vm218, %v2716, 0.0
    %v2733 = vadd.f32 %v2731, %v2732
    %v2734 = vsel %vm218, %v2717, 0.0
    %v2735 = vadd.f32 %v2733, %v2734
    %v2736 = vsel %vm218, %v2718, 0.0
    %v2737 = vadd.f32 %v2735, %v2736
    %v2738 = vsel %vm218, %v2719, 0.0
    %v2739 = vadd.f32 %v2737, %v2738
    %v2740 = vsel %vm218, %v2720, 0.0
    %v2741 = vadd.f32 %v2739, %v2740
    %v2742 = vsel %vm218, %v2721, 0.0
    %v2743 = vadd.f32 %v2741, %v2742
    %v2744 = vsel %vm218, %v2722, 0.0
    %v2745 = vadd.f32 %v2743, %v2744
    %v2746 = vsel %vm218, %v2723, 0.0
    %v2747 = vadd.f32 %v2745, %v2746
    %v2748 = vsel %vm218, %v2724, 0.0
    %v2749 = vadd.f32 %v2747, %v2748
    %v2750 = vsel %vm218, %v2725, 0.0
    %v2751 = vadd.f32 %v2749, %v2750
    %v2752 = vsel %vm218, %v2726, 0.0
    %v2753 = vadd.f32 %v2751, %v2752
    %v2754 = vsel %vm218, %v2727, 0.0
    %v2755 = vadd.f32 %v2753, %v2754
    %v2756 = vsel %vm218, %v2728, 0.0
    %v2757 = vadd.f32 %v2755, %v2756
    %v2758 = vsel %vm218, %v2729, 0.0
    %v2759 = vadd.f32 %v2757, %v2758
    %v2760 = vsel %vm218, %v2730, 0.0
    %v2761 = vadd.f32 %v2759, %v2760
    %v2762 = vrot.slane %v2761, 4
    %v2763 = vadd.f32 %v2761, %v2762
    %v2764 = vrot.slane %v2763, 2
    %v2765 = vadd.f32 %v2763, %v2764
    %v2766 = vrot.slane %v2765, 1
    %v2767 = vadd.f32 %v2765, %v2766
    %v2768 = vmul.f32 %v2767, %v177
    %v2769 = vmul.f32 %v2714, %v2714
    %v2770 = vsub.f32 %v2768, %v2769
    %v2771 = vmax.f32 %v2770, 0.0
    %v2772 = vsub.f32 %v2599, %v2714
    %v2773 = vsub.f32 %v2602, %v2714
    %v2774 = vsub.f32 %v2607, %v2714
    %v2775 = vsub.f32 %v2610, %v2714
    %v2776 = vsub.f32 %v2615, %v2714
    %v2777 = vsub.f32 %v2618, %v2714
    %v2778 = vsub.f32 %v2623, %v2714
    %v2779 = vsub.f32 %v2626, %v2714
    %v2780 = vsub.f32 %v2631, %v2714
    %v2781 = vsub.f32 %v2634, %v2714
    %v2782 = vsub.f32 %v2639, %v2714
    %v2783 = vsub.f32 %v2642, %v2714
    %v2784 = vsub.f32 %v2647, %v2714
    %v2785 = vsub.f32 %v2650, %v2714
    %v2786 = vsub.f32 %v2655, %v2714
    %v2787 = vsub.f32 %v2658, %v2714
    %v2788 = vadd.f32 %v2771, 1e-05
    %v2789 = vrsqrt.pop %v2788
    %v2790 = vmul.f32 %v2772, %v2789
    %v2791 = vmul.f32 %v2773, %v2789
    %v2792 = vmul.f32 %v2774, %v2789
    %v2793 = vmul.f32 %v2775, %v2789
    %v2794 = vmul.f32 %v2776, %v2789
    %v2795 = vmul.f32 %v2777, %v2789
    %v2796 = vmul.f32 %v2778, %v2789
    %v2797 = vmul.f32 %v2779, %v2789
    %v2798 = vmul.f32 %v2780, %v2789
    %v2799 = vmul.f32 %v2781, %v2789
    %v2800 = vmul.f32 %v2782, %v2789
    %v2801 = vmul.f32 %v2783, %v2789
    %v2802 = vmul.f32 %v2784, %v2789
    %v2803 = vmul.f32 %v2785, %v2789
    %v2804 = vmul.f32 %v2786, %v2789
    %v2805 = vmul.f32 %v2787, %v2789
    %s2806 = scalar_lea.vmem %s7, 3
    %v2807 = vld [vmem:[%s2806] sm:$0x1]
    %v2809 = vlaneseq
    %v2810 = vshrl.u32 %v2809, 7
    %v2811 = vsub.s32 0, %v2810
    %v2812 = vrot.slane %v2807, %v2811
    %v2814 = vmul.f32 %v2790, %v2812
    %v2815 = vmul.f32 %v2791, %v2812
    %v2816 = vmul.f32 %v2792, %v2812
    %v2817 = vmul.f32 %v2793, %v2812
    %v2818 = vmul.f32 %v2794, %v2812
    %v2819 = vmul.f32 %v2795, %v2812
    %v2820 = vmul.f32 %v2796, %v2812
    %v2821 = vmul.f32 %v2797, %v2812
    %v2822 = vmul.f32 %v2798, %v2812
    %v2823 = vmul.f32 %v2799, %v2812
    %v2824 = vmul.f32 %v2800, %v2812
    %v2825 = vmul.f32 %v2801, %v2812
    %v2826 = vmul.f32 %v2802, %v2812
    %v2827 = vmul.f32 %v2803, %v2812
    %v2828 = vmul.f32 %v2804, %v2812
    %v2829 = vmul.f32 %v2805, %v2812
    %s2830 = scalar_lea.vmem %s8, 3
    %v2831 = vld [vmem:[%s2830] sm:$0x1]
    %v2833 = vlaneseq
    %v2834 = vshrl.u32 %v2833, 7
    %v2835 = vsub.s32 0, %v2834
    %v2836 = vrot.slane %v2831, %v2835
    %v2838 = vadd.f32 %v2814, %v2836
    %v2839 = vadd.f32 %v2815, %v2836
    %v2840 = vadd.f32 %v2816, %v2836
    %v2841 = vadd.f32 %v2817, %v2836
    %v2842 = vadd.f32 %v2818, %v2836
    %v2843 = vadd.f32 %v2819, %v2836
    %v2844 = vadd.f32 %v2820, %v2836
    %v2845 = vadd.f32 %v2821, %v2836
    %v2846 = vadd.f32 %v2822, %v2836
    %v2847 = vadd.f32 %v2823, %v2836
    %v2848 = vadd.f32 %v2824, %v2836
    %v2849 = vadd.f32 %v2825, %v2836
    %v2850 = vadd.f32 %v2826, %v2836
    %v2851 = vadd.f32 %v2827, %v2836
    %v2852 = vadd.f32 %v2828, %v2836
    %v2853 = vadd.f32 %v2829, %v2836
    %v2854 = vmax.f32 %v2838, 0.0
    %v2855 = vmax.f32 %v2839, 0.0
    %v2856 = vmax.f32 %v2840, 0.0
    %v2857 = vmax.f32 %v2841, 0.0
    %v2858 = vmax.f32 %v2842, 0.0
    %v2859 = vmax.f32 %v2843, 0.0
    %v2860 = vmax.f32 %v2844, 0.0
    %v2861 = vmax.f32 %v2845, 0.0
    %v2862 = vmax.f32 %v2846, 0.0
    %v2863 = vmax.f32 %v2847, 0.0
    %v2864 = vmax.f32 %v2848, 0.0
    %v2865 = vmax.f32 %v2849, 0.0
    %v2866 = vmax.f32 %v2850, 0.0
    %v2867 = vmax.f32 %v2851, 0.0
    %v2868 = vmax.f32 %v2852, 0.0
    %v2869 = vmax.f32 %v2853, 0.0
    %v2870 = vpack.c.bf16 %v2855, %v2854
    %v2871 = vpack.c.bf16 %v2857, %v2856
    %v2872 = vpack.c.bf16 %v2859, %v2858
    %v2873 = vpack.c.bf16 %v2861, %v2860
    %v2874 = vpack.c.bf16 %v2863, %v2862
    %v2875 = vpack.c.bf16 %v2865, %v2864
    %v2876 = vpack.c.bf16 %v2867, %v2866
    %v2877 = vpack.c.bf16 %v2869, %v2868
    %s2878 = scalar_lea.vmem %s3, 64
    %v2879 = vld [vmem:[%s2878] sm:$0xf]
    %v2880 = vld [vmem:[%s2878 + $0x4] sm:$0xf]
    %v2881 = vld [vmem:[%s2878 + $0x8] sm:$0xf]
    %v2882 = vld [vmem:[%s2878 + $0xc] sm:$0xf]
    %v2887 = vunpack.c.l.b16 %v2879
    %v2888 = vunpack.c.l.b16 %v2880
    %v2889 = vunpack.c.l.b16 %v2881
    %v2890 = vunpack.c.l.b16 %v2882
    %v2891 = vpack.c.b16 %v2888, %v2887
    %v2892 = vpack.c.b16 %v2890, %v2889
    %v2896 = vsel %vm218, %v2870, 0
    %v2899 = vsel %vm218, %v2871, 0
    %v2902 = vsel %vm218, %v2872, 0
    %v2905 = vsel %vm218, %v2873, 0
    %v2908 = vsel %vm218, %v2874, 0
    %v2911 = vsel %vm218, %v2875, 0
    %v2914 = vsel %vm218, %v2876, 0
    %v2917 = vsel %vm218, %v2877, 0
    %2919 = vmatprep.subr.bf16.mxu0 0
    %2920 = vmatpush1.bf16.msra.mxu0 0
    %2921 = vmatprep.subr.bf16.mxu0 0
    %2922 = vmatpush1.bf16.msra.mxu0 0
    %2923 = vmatprep.subr.bf16.mxu0 0
    %2924 = vmatpush1.bf16.msra.mxu0 0
    %2925 = vmatprep.subr.bf16.mxu0 0
    %2926 = vmatpush1.bf16.msra.mxu0 0
    %2927 = vmatprep.subr.bf16.mxu0 0
    %2928 = vmatpush1.bf16.msra.mxu0 0
    %2929 = vmatprep.subr.bf16.mxu0 0
    %2930 = vmatpush1.bf16.msra.mxu0 0
    %2931 = vmatprep.subr.bf16.mxu0 0
    %2932 = vmatpush1.bf16.msra.mxu0 %v2892
    %2933 = vmatprep.subr.bf16.mxu0 0
    %2934 = vmatpush1.bf16.msra.mxu0 %v2891
    %2935 = vmatprep.subr.bf16.mxu0 0
    %2936 = vmatpush2.bf16.msra.mxu0 0
    %2937 = vmatprep.subr.bf16.mxu0 0
    %2938 = vmatpush2.bf16.msra.mxu0 0
    %2939 = vmatprep.subr.bf16.mxu0 0
    %2940 = vmatpush2.bf16.msra.mxu0 0
    %2941 = vmatprep.subr.bf16.mxu0 0
    %2942 = vmatpush2.bf16.msra.mxu0 0
    %2943 = vmatprep.subr.bf16.mxu0 0
    %2944 = vmatpush2.bf16.msra.mxu0 0
    %2945 = vmatprep.subr.bf16.mxu0 0
    %2946 = vmatpush2.bf16.msra.mxu0 0
    %2947 = vmatprep.subr.bf16.mxu0 0
    %2948 = vmatpush2.bf16.msra.mxu0 0
    %2949 = vmatprep.subr.bf16.mxu0 0
    %2950 = vmatpush2.bf16.msra.mxu0 0
    %2951 = vmatprep.mubr.bf16.mxu0 0
    %2952 = vmatmul.mubr.bf16.gmra.mxu0 %v2896
    %v2953 = vpop.f32.mrf.mxu0
    %v2954 = vadd.f32 0.0, %v2953
    %v2955 = vpop.f32.mrf.mxu0
    %v2956 = vpop.f32.mrf.mxu0
    %v2957 = vadd.f32 0.0, %v2956
    %v2958 = vpop.f32.mrf.mxu0
    %2959 = vmatprep.mubr.bf16.mxu0 0
    %2960 = vmatmul.mubr.bf16.gmra.mxu0 %v2899
    %v2961 = vpop.f32.mrf.mxu0
    %v2962 = vadd.f32 0.0, %v2961
    %v2963 = vpop.f32.mrf.mxu0
    %v2964 = vpop.f32.mrf.mxu0
    %v2965 = vadd.f32 0.0, %v2964
    %v2966 = vpop.f32.mrf.mxu0
    %2967 = vmatprep.mubr.bf16.mxu0 0
    %2968 = vmatmul.mubr.bf16.gmra.mxu0 %v2902
    %v2969 = vpop.f32.mrf.mxu0
    %v2970 = vadd.f32 0.0, %v2969
    %v2971 = vpop.f32.mrf.mxu0
    %v2972 = vpop.f32.mrf.mxu0
    %v2973 = vadd.f32 0.0, %v2972
    %v2974 = vpop.f32.mrf.mxu0
    %2975 = vmatprep.mubr.bf16.mxu0 0
    %2976 = vmatmul.mubr.bf16.gmra.mxu0 %v2905
    %v2977 = vpop.f32.mrf.mxu0
    %v2978 = vadd.f32 0.0, %v2977
    %v2979 = vpop.f32.mrf.mxu0
    %v2980 = vpop.f32.mrf.mxu0
    %v2981 = vadd.f32 0.0, %v2980
    %v2982 = vpop.f32.mrf.mxu0
    %2983 = vmatprep.mubr.bf16.mxu0 0
    %2984 = vmatmul.mubr.bf16.gmra.mxu0 %v2908
    %v2985 = vpop.f32.mrf.mxu0
    %v2986 = vadd.f32 0.0, %v2985
    %v2987 = vpop.f32.mrf.mxu0
    %v2988 = vpop.f32.mrf.mxu0
    %v2989 = vadd.f32 0.0, %v2988
    %v2990 = vpop.f32.mrf.mxu0
    %2991 = vmatprep.mubr.bf16.mxu0 0
    %2992 = vmatmul.mubr.bf16.gmra.mxu0 %v2911
    %v2993 = vpop.f32.mrf.mxu0
    %v2994 = vadd.f32 0.0, %v2993
    %v2995 = vpop.f32.mrf.mxu0
    %v2996 = vpop.f32.mrf.mxu0
    %v2997 = vadd.f32 0.0, %v2996
    %v2998 = vpop.f32.mrf.mxu0
    %2999 = vmatprep.mubr.bf16.mxu0 0
    %3000 = vmatmul.mubr.bf16.gmra.mxu0 %v2914
    %v3001 = vpop.f32.mrf.mxu0
    %v3002 = vadd.f32 0.0, %v3001
    %v3003 = vpop.f32.mrf.mxu0
    %v3004 = vpop.f32.mrf.mxu0
    %v3005 = vadd.f32 0.0, %v3004
    %v3006 = vpop.f32.mrf.mxu0
    %3007 = vmatprep.mubr.bf16.mxu0 0
    %3008 = vmatmul.mubr.bf16.gmra.mxu0 %v2917
    %v3009 = vpop.f32.mrf.mxu0
    %v3010 = vadd.f32 0.0, %v3009
    %v3011 = vpop.f32.mrf.mxu0
    %v3012 = vpop.f32.mrf.mxu0
    %v3013 = vadd.f32 0.0, %v3012
    %v3014 = vpop.f32.mrf.mxu0
    %3015 = vdwg.mxu0
    %v3016 = vpack.c.bf16 %v2957, %v2954
    %v3017 = vpack.c.bf16 %v2965, %v2962
    %v3018 = vpack.c.bf16 %v2973, %v2970
    %v3019 = vpack.c.bf16 %v2981, %v2978
    %v3020 = vpack.c.bf16 %v2989, %v2986
    %v3021 = vpack.c.bf16 %v2997, %v2994
    %v3022 = vpack.c.bf16 %v3005, %v3002
    %v3023 = vpack.c.bf16 %v3013, %v3010
    %s3024 = scalar_lea.vmem %s4, 4
    %v3025 = vld [vmem:[%s3024] sm:$0x1]
    %v3027 = vlaneseq
    %v3028 = vshrl.u32 %v3027, 7
    %v3029 = vsub.s32 0, %v3028
    %v3030 = vrot.slane %v3025, %v3029
    %3032 = vmatprep.subr.bf16.mxu0 0
    %3033 = vmatpush1.bf16.msra.mxu0 %v3023
    %3034 = vmatprep.subr.bf16.mxu0 0
    %3035 = vmatpush1.bf16.msra.mxu0 %v3022
    %3036 = vmatprep.subr.bf16.mxu0 0
    %3037 = vmatpush1.bf16.msra.mxu0 %v3021
    %3038 = vmatprep.subr.bf16.mxu0 0
    %3039 = vmatpush1.bf16.msra.mxu0 %v3020
    %3040 = vmatprep.subr.bf16.mxu0 0
    %3041 = vmatpush1.bf16.msra.mxu0 %v3019
    %3042 = vmatprep.subr.bf16.mxu0 0
    %3043 = vmatpush1.bf16.msra.mxu0 %v3018
    %3044 = vmatprep.subr.bf16.mxu0 0
    %3045 = vmatpush1.bf16.msra.mxu0 %v3017
    %3046 = vmatprep.subr.bf16.mxu0 0
    %3047 = vmatpush1.bf16.msra.mxu0 %v3016
    %3048 = vmatprep.subr.bf16.mxu0 0
    %3049 = vmatpush2.bf16.msra.mxu0 0
    %3050 = vmatprep.subr.bf16.mxu0 0
    %3051 = vmatpush2.bf16.msra.mxu0 0
    %3052 = vmatprep.subr.bf16.mxu0 0
    %3053 = vmatpush2.bf16.msra.mxu0 0
    %3054 = vmatprep.subr.bf16.mxu0 0
    %3055 = vmatpush2.bf16.msra.mxu0 0
    %3056 = vmatprep.subr.bf16.mxu0 0
    %3057 = vmatpush2.bf16.msra.mxu0 0
    %3058 = vmatprep.subr.bf16.mxu0 0
    %3059 = vmatpush2.bf16.msra.mxu0 0
    %3060 = vmatprep.subr.bf16.mxu0 0
    %3061 = vmatpush2.bf16.msra.mxu0 0
    %3062 = vmatprep.subr.bf16.mxu0 0
    %3063 = vmatpush2.bf16.msra.mxu0 0
    %3064 = vmatprep.mubr.bf16.mxu0 0
    %3065 = vmatmul.mubr.bf16.gmra.mxu0 %v403
    %v3066 = vpop.f32.mrf.mxu0
    %v3067 = vadd.f32 %v3030, %v3066
    %v3068 = vpop.f32.mrf.mxu0
    %v3069 = vpop.f32.mrf.mxu0
    %v3070 = vadd.f32 %v3030, %v3069
    %v3071 = vpop.f32.mrf.mxu0
    %3072 = vmatprep.mubr.bf16.mxu0 0
    %3073 = vmatmul.mubr.bf16.gmra.mxu0 %v404
    %v3074 = vpop.f32.mrf.mxu0
    %v3075 = vadd.f32 %v3030, %v3074
    %v3076 = vpop.f32.mrf.mxu0
    %v3077 = vpop.f32.mrf.mxu0
    %v3078 = vadd.f32 %v3030, %v3077
    %v3079 = vpop.f32.mrf.mxu0
    %3080 = vmatprep.mubr.bf16.mxu0 0
    %3081 = vmatmul.mubr.bf16.gmra.mxu0 %v405
    %v3082 = vpop.f32.mrf.mxu0
    %v3083 = vadd.f32 %v3030, %v3082
    %v3084 = vpop.f32.mrf.mxu0
    %v3085 = vpop.f32.mrf.mxu0
    %v3086 = vadd.f32 %v3030, %v3085
    %v3087 = vpop.f32.mrf.mxu0
    %3088 = vmatprep.mubr.bf16.mxu0 0
    %3089 = vmatmul.mubr.bf16.gmra.mxu0 %v406
    %v3090 = vpop.f32.mrf.mxu0
    %v3091 = vadd.f32 %v3030, %v3090
    %v3092 = vpop.f32.mrf.mxu0
    %v3093 = vpop.f32.mrf.mxu0
    %v3094 = vadd.f32 %v3030, %v3093
    %v3095 = vpop.f32.mrf.mxu0
    %3096 = vmatprep.mubr.bf16.mxu0 0
    %3097 = vmatmul.mubr.bf16.gmra.mxu0 %v407
    %v3098 = vpop.f32.mrf.mxu0
    %v3099 = vadd.f32 %v3030, %v3098
    %v3100 = vpop.f32.mrf.mxu0
    %v3101 = vpop.f32.mrf.mxu0
    %v3102 = vadd.f32 %v3030, %v3101
    %v3103 = vpop.f32.mrf.mxu0
    %3104 = vmatprep.mubr.bf16.mxu0 0
    %3105 = vmatmul.mubr.bf16.gmra.mxu0 %v408
    %v3106 = vpop.f32.mrf.mxu0
    %v3107 = vadd.f32 %v3030, %v3106
    %v3108 = vpop.f32.mrf.mxu0
    %v3109 = vpop.f32.mrf.mxu0
    %v3110 = vadd.f32 %v3030, %v3109
    %v3111 = vpop.f32.mrf.mxu0
    %3112 = vmatprep.mubr.bf16.mxu0 0
    %3113 = vmatmul.mubr.bf16.gmra.mxu0 %v409
    %v3114 = vpop.f32.mrf.mxu0
    %v3115 = vadd.f32 %v3030, %v3114
    %v3116 = vpop.f32.mrf.mxu0
    %v3117 = vpop.f32.mrf.mxu0
    %v3118 = vadd.f32 %v3030, %v3117
    %v3119 = vpop.f32.mrf.mxu0
    %3120 = vmatprep.mubr.bf16.mxu0 0
    %3121 = vmatmul.mubr.bf16.gmra.mxu0 %v410
    %v3122 = vpop.f32.mrf.mxu0
    %v3123 = vadd.f32 %v3030, %v3122
    %v3124 = vpop.f32.mrf.mxu0
    %v3125 = vpop.f32.mrf.mxu0
    %v3126 = vadd.f32 %v3030, %v3125
    %v3127 = vpop.f32.mrf.mxu0
    %3128 = vdwg.mxu0
    %v3129 = vmax.f32 %v3067, 0.0
    %v3130 = vmax.f32 %v3070, 0.0
    %v3131 = vmax.f32 %v3075, 0.0
    %v3132 = vmax.f32 %v3078, 0.0
    %v3133 = vmax.f32 %v3083, 0.0
    %v3134 = vmax.f32 %v3086, 0.0
    %v3135 = vmax.f32 %v3091, 0.0
    %v3136 = vmax.f32 %v3094, 0.0
    %v3137 = vmax.f32 %v3099, 0.0
    %v3138 = vmax.f32 %v3102, 0.0
    %v3139 = vmax.f32 %v3107, 0.0
    %v3140 = vmax.f32 %v3110, 0.0
    %v3141 = vmax.f32 %v3115, 0.0
    %v3142 = vmax.f32 %v3118, 0.0
    %v3143 = vmax.f32 %v3123, 0.0
    %v3144 = vmax.f32 %v3126, 0.0
    %v3145 = vpack.c.bf16 %v3130, %v3129
    %v3146 = vpack.c.bf16 %v3132, %v3131
    %v3147 = vpack.c.bf16 %v3134, %v3133
    %v3148 = vpack.c.bf16 %v3136, %v3135
    %v3149 = vpack.c.bf16 %v3138, %v3137
    %v3150 = vpack.c.bf16 %v3140, %v3139
    %v3151 = vpack.c.bf16 %v3142, %v3141
    %v3152 = vpack.c.bf16 %v3144, %v3143
    %s3153 = scalar_lea.vmem %s5, 128
    %v3154 = vld [vmem:[%s3153] sm:$0xf]
    %v3155 = vld [vmem:[%s3153 + $0x4] sm:$0xf]
    %v3156 = vld [vmem:[%s3153 + $0x8] sm:$0xf]
    %v3157 = vld [vmem:[%s3153 + $0xc] sm:$0xf]
    %v3158 = vld [vmem:[%s3153 + $0x10] sm:$0xf]
    %v3159 = vld [vmem:[%s3153 + $0x14] sm:$0xf]
    %v3160 = vld [vmem:[%s3153 + $0x18] sm:$0xf]
    %v3161 = vld [vmem:[%s3153 + $0x1c] sm:$0xf]
    %s3162 = scalar_lea.vmem %s6, 4
    %v3163 = vld [vmem:[%s3162] sm:$0x1]
    %v3165 = vlaneseq
    %v3166 = vshrl.u32 %v3165, 7
    %v3167 = vsub.s32 0, %v3166
    %v3168 = vrot.slane %v3163, %v3167
    %v3178 = vunpack.c.l.b16 %v3154
    %v3179 = vunpack.c.l.b16 %v3155
    %v3180 = vunpack.c.l.b16 %v3156
    %v3181 = vunpack.c.l.b16 %v3157
    %v3182 = vunpack.c.l.b16 %v3158
    %v3183 = vunpack.c.l.b16 %v3159
    %v3184 = vunpack.c.l.b16 %v3160
    %v3185 = vunpack.c.l.b16 %v3161
    %v3186 = vpack.c.b16 %v3179, %v3178
    %v3187 = vpack.c.b16 %v3181, %v3180
    %v3188 = vpack.c.b16 %v3183, %v3182
    %v3189 = vpack.c.b16 %v3185, %v3184
    %v3195 = vsel %vm579, %v3145, 0
    %v3198 = vsel %vm579, %v3146, 0
    %v3201 = vsel %vm579, %v3147, 0
    %v3204 = vsel %vm579, %v3148, 0
    %v3207 = vsel %vm579, %v3149, 0
    %v3210 = vsel %vm579, %v3150, 0
    %v3213 = vsel %vm579, %v3151, 0
    %v3216 = vsel %vm579, %v3152, 0
    %3218 = vmatprep.subr.bf16.mxu0 0
    %3219 = vmatpush1.bf16.msra.mxu0 0
    %3220 = vmatprep.subr.bf16.mxu0 0
    %3221 = vmatpush1.bf16.msra.mxu0 0
    %3222 = vmatprep.subr.bf16.mxu0 0
    %3223 = vmatpush1.bf16.msra.mxu0 0
    %3224 = vmatprep.subr.bf16.mxu0 0
    %3225 = vmatpush1.bf16.msra.mxu0 0
    %3226 = vmatprep.subr.bf16.mxu0 0
    %3227 = vmatpush1.bf16.msra.mxu0 %v3189
    %3228 = vmatprep.subr.bf16.mxu0 0
    %3229 = vmatpush1.bf16.msra.mxu0 %v3188
    %3230 = vmatprep.subr.bf16.mxu0 0
    %3231 = vmatpush1.bf16.msra.mxu0 %v3187
    %3232 = vmatprep.subr.bf16.mxu0 0
    %3233 = vmatpush1.bf16.msra.mxu0 %v3186
    %3234 = vmatprep.subr.bf16.mxu0 0
    %3235 = vmatpush2.bf16.msra.mxu0 0
    %3236 = vmatprep.subr.bf16.mxu0 0
    %3237 = vmatpush2.bf16.msra.mxu0 0
    %3238 = vmatprep.subr.bf16.mxu0 0
    %3239 = vmatpush2.bf16.msra.mxu0 0
    %3240 = vmatprep.subr.bf16.mxu0 0
    %3241 = vmatpush2.bf16.msra.mxu0 0
    %3242 = vmatprep.subr.bf16.mxu0 0
    %3243 = vmatpush2.bf16.msra.mxu0 0
    %3244 = vmatprep.subr.bf16.mxu0 0
    %3245 = vmatpush2.bf16.msra.mxu0 0
    %3246 = vmatprep.subr.bf16.mxu0 0
    %3247 = vmatpush2.bf16.msra.mxu0 0
    %3248 = vmatprep.subr.bf16.mxu0 0
    %3249 = vmatpush2.bf16.msra.mxu0 0
    %3250 = vmatprep.mubr.bf16.mxu0 0
    %3251 = vmatmul.mubr.bf16.gmra.mxu0 %v3195
    %v3252 = vpop.f32.mrf.mxu0
    %v3253 = vadd.f32 %v3168, %v3252
    %v3254 = vpop.f32.mrf.mxu0
    %v3255 = vpop.f32.mrf.mxu0
    %v3256 = vadd.f32 %v3168, %v3255
    %v3257 = vpop.f32.mrf.mxu0
    %3258 = vmatprep.mubr.bf16.mxu0 0
    %3259 = vmatmul.mubr.bf16.gmra.mxu0 %v3198
    %v3260 = vpop.f32.mrf.mxu0
    %v3261 = vadd.f32 %v3168, %v3260
    %v3262 = vpop.f32.mrf.mxu0
    %v3263 = vpop.f32.mrf.mxu0
    %v3264 = vadd.f32 %v3168, %v3263
    %v3265 = vpop.f32.mrf.mxu0
    %3266 = vmatprep.mubr.bf16.mxu0 0
    %3267 = vmatmul.mubr.bf16.gmra.mxu0 %v3201
    %v3268 = vpop.f32.mrf.mxu0
    %v3269 = vadd.f32 %v3168, %v3268
    %v3270 = vpop.f32.mrf.mxu0
    %v3271 = vpop.f32.mrf.mxu0
    %v3272 = vadd.f32 %v3168, %v3271
    %v3273 = vpop.f32.mrf.mxu0
    %3274 = vmatprep.mubr.bf16.mxu0 0
    %3275 = vmatmul.mubr.bf16.gmra.mxu0 %v3204
    %v3276 = vpop.f32.mrf.mxu0
    %v3277 = vadd.f32 %v3168, %v3276
    %v3278 = vpop.f32.mrf.mxu0
    %v3279 = vpop.f32.mrf.mxu0
    %v3280 = vadd.f32 %v3168, %v3279
    %v3281 = vpop.f32.mrf.mxu0
    %3282 = vmatprep.mubr.bf16.mxu0 0
    %3283 = vmatmul.mubr.bf16.gmra.mxu0 %v3207
    %v3284 = vpop.f32.mrf.mxu0
    %v3285 = vadd.f32 %v3168, %v3284
    %v3286 = vpop.f32.mrf.mxu0
    %v3287 = vpop.f32.mrf.mxu0
    %v3288 = vadd.f32 %v3168, %v3287
    %v3289 = vpop.f32.mrf.mxu0
    %3290 = vmatprep.mubr.bf16.mxu0 0
    %3291 = vmatmul.mubr.bf16.gmra.mxu0 %v3210
    %v3292 = vpop.f32.mrf.mxu0
    %v3293 = vadd.f32 %v3168, %v3292
    %v3294 = vpop.f32.mrf.mxu0
    %v3295 = vpop.f32.mrf.mxu0
    %v3296 = vadd.f32 %v3168, %v3295
    %v3297 = vpop.f32.mrf.mxu0
    %3298 = vmatprep.mubr.bf16.mxu0 0
    %3299 = vmatmul.mubr.bf16.gmra.mxu0 %v3213
    %v3300 = vpop.f32.mrf.mxu0
    %v3301 = vadd.f32 %v3168, %v3300
    %v3302 = vpop.f32.mrf.mxu0
    %v3303 = vpop.f32.mrf.mxu0
    %v3304 = vadd.f32 %v3168, %v3303
    %v3305 = vpop.f32.mrf.mxu0
    %3306 = vmatprep.mubr.bf16.mxu0 0
    %3307 = vmatmul.mubr.bf16.gmra.mxu0 %v3216
    %v3308 = vpop.f32.mrf.mxu0
    %v3309 = vadd.f32 %v3168, %v3308
    %v3310 = vpop.f32.mrf.mxu0
    %v3311 = vpop.f32.mrf.mxu0
    %v3312 = vadd.f32 %v3168, %v3311
    %v3313 = vpop.f32.mrf.mxu0
    %3314 = vdwg.mxu0
    %v3315 = vmul.f32 %v3253, %v56
    %v3316 = vmul.f32 %v3256, %v61
    %v3317 = vmul.f32 %v3261, %v66
    %v3318 = vmul.f32 %v3264, %v71
    %v3319 = vmul.f32 %v3269, %v76
    %v3320 = vmul.f32 %v3272, %v81
    %v3321 = vmul.f32 %v3277, %v86
    %v3322 = vmul.f32 %v3280, %v91
    %v3323 = vmul.f32 %v3285, %v96
    %v3324 = vmul.f32 %v3288, %v101
    %v3325 = vmul.f32 %v3293, %v106
    %v3326 = vmul.f32 %v3296, %v111
    %v3327 = vmul.f32 %v3301, %v116
    %v3328 = vmul.f32 %v3304, %v121
    %v3329 = vmul.f32 %v3309, %v126
    %v3330 = vmul.f32 %v3312, %v131
    %v3331 = vsel %vm218, %v3315, 0.0
    %v3332 = vsel %vm218, %v3316, 0.0
    %v3333 = vadd.f32 %v3331, %v3332
    %v3334 = vsel %vm218, %v3317, 0.0
    %v3335 = vadd.f32 %v3333, %v3334
    %v3336 = vsel %vm218, %v3318, 0.0
    %v3337 = vadd.f32 %v3335, %v3336
    %v3338 = vsel %vm218, %v3319, 0.0
    %v3339 = vadd.f32 %v3337, %v3338
    %v3340 = vsel %vm218, %v3320, 0.0
    %v3341 = vadd.f32 %v3339, %v3340
    %v3342 = vsel %vm218, %v3321, 0.0
    %v3343 = vadd.f32 %v3341, %v3342
    %v3344 = vsel %vm218, %v3322, 0.0
    %v3345 = vadd.f32 %v3343, %v3344
    %v3346 = vsel %vm218, %v3323, 0.0
    %v3347 = vadd.f32 %v3345, %v3346
    %v3348 = vsel %vm218, %v3324, 0.0
    %v3349 = vadd.f32 %v3347, %v3348
    %v3350 = vsel %vm218, %v3325, 0.0
    %v3351 = vadd.f32 %v3349, %v3350
    %v3352 = vsel %vm218, %v3326, 0.0
    %v3353 = vadd.f32 %v3351, %v3352
    %v3354 = vsel %vm218, %v3327, 0.0
    %v3355 = vadd.f32 %v3353, %v3354
    %v3356 = vsel %vm218, %v3328, 0.0
    %v3357 = vadd.f32 %v3355, %v3356
    %v3358 = vsel %vm218, %v3329, 0.0
    %v3359 = vadd.f32 %v3357, %v3358
    %v3360 = vsel %vm218, %v3330, 0.0
    %v3361 = vadd.f32 %v3359, %v3360
    %v3362 = vrot.slane %v3361, 4
    %v3363 = vadd.f32 %v3361, %v3362
    %v3364 = vrot.slane %v3363, 2
    %v3365 = vadd.f32 %v3363, %v3364
    %v3366 = vrot.slane %v3365, 1
    %v3367 = vadd.f32 %v3365, %v3366
    %v3368 = vmul.f32 %v3367, %v177
    %v3369 = vmul.f32 %v3315, %v3253
    %v3370 = vmul.f32 %v3316, %v3256
    %v3371 = vmul.f32 %v3317, %v3261
    %v3372 = vmul.f32 %v3318, %v3264
    %v3373 = vmul.f32 %v3319, %v3269
    %v3374 = vmul.f32 %v3320, %v3272
    %v3375 = vmul.f32 %v3321, %v3277
    %v3376 = vmul.f32 %v3322, %v3280
    %v3377 = vmul.f32 %v3323, %v3285
    %v3378 = vmul.f32 %v3324, %v3288
    %v3379 = vmul.f32 %v3325, %v3293
    %v3380 = vmul.f32 %v3326, %v3296
    %v3381 = vmul.f32 %v3327, %v3301
    %v3382 = vmul.f32 %v3328, %v3304
    %v3383 = vmul.f32 %v3329, %v3309
    %v3384 = vmul.f32 %v3330, %v3312
    %v3385 = vsel %vm218, %v3369, 0.0
    %v3386 = vsel %vm218, %v3370, 0.0
    %v3387 = vadd.f32 %v3385, %v3386
    %v3388 = vsel %vm218, %v3371, 0.0
    %v3389 = vadd.f32 %v3387, %v3388
    %v3390 = vsel %vm218, %v3372, 0.0
    %v3391 = vadd.f32 %v3389, %v3390
    %v3392 = vsel %vm218, %v3373, 0.0
    %v3393 = vadd.f32 %v3391, %v3392
    %v3394 = vsel %vm218, %v3374, 0.0
    %v3395 = vadd.f32 %v3393, %v3394
    %v3396 = vsel %vm218, %v3375, 0.0
    %v3397 = vadd.f32 %v3395, %v3396
    %v3398 = vsel %vm218, %v3376, 0.0
    %v3399 = vadd.f32 %v3397, %v3398
    %v3400 = vsel %vm218, %v3377, 0.0
    %v3401 = vadd.f32 %v3399, %v3400
    %v3402 = vsel %vm218, %v3378, 0.0
    %v3403 = vadd.f32 %v3401, %v3402
    %v3404 = vsel %vm218, %v3379, 0.0
    %v3405 = vadd.f32 %v3403, %v3404
    %v3406 = vsel %vm218, %v3380, 0.0
    %v3407 = vadd.f32 %v3405, %v3406
    %v3408 = vsel %vm218, %v3381, 0.0
    %v3409 = vadd.f32 %v3407, %v3408
    %v3410 = vsel %vm218, %v3382, 0.0
    %v3411 = vadd.f32 %v3409, %v3410
    %v3412 = vsel %vm218, %v3383, 0.0
    %v3413 = vadd.f32 %v3411, %v3412
    %v3414 = vsel %vm218, %v3384, 0.0
    %v3415 = vadd.f32 %v3413, %v3414
    %v3416 = vrot.slane %v3415, 4
    %v3417 = vadd.f32 %v3415, %v3416
    %v3418 = vrot.slane %v3417, 2
    %v3419 = vadd.f32 %v3417, %v3418
    %v3420 = vrot.slane %v3419, 1
    %v3421 = vadd.f32 %v3419, %v3420
    %v3422 = vmul.f32 %v3421, %v177
    %v3423 = vmul.f32 %v3368, %v3368
    %v3424 = vsub.f32 %v3422, %v3423
    %v3425 = vmax.f32 %v3424, 0.0
    %v3426 = vsub.f32 %v3253, %v3368
    %v3427 = vsub.f32 %v3256, %v3368
    %v3428 = vsub.f32 %v3261, %v3368
    %v3429 = vsub.f32 %v3264, %v3368
    %v3430 = vsub.f32 %v3269, %v3368
    %v3431 = vsub.f32 %v3272, %v3368
    %v3432 = vsub.f32 %v3277, %v3368
    %v3433 = vsub.f32 %v3280, %v3368
    %v3434 = vsub.f32 %v3285, %v3368
    %v3435 = vsub.f32 %v3288, %v3368
    %v3436 = vsub.f32 %v3293, %v3368
    %v3437 = vsub.f32 %v3296, %v3368
    %v3438 = vsub.f32 %v3301, %v3368
    %v3439 = vsub.f32 %v3304, %v3368
    %v3440 = vsub.f32 %v3309, %v3368
    %v3441 = vsub.f32 %v3312, %v3368
    %v3442 = vadd.f32 %v3425, 1e-05
    %v3443 = vrsqrt.pop %v3442
    %v3444 = vmul.f32 %v3426, %v3443
    %v3445 = vmul.f32 %v3427, %v3443
    %v3446 = vmul.f32 %v3428, %v3443
    %v3447 = vmul.f32 %v3429, %v3443
    %v3448 = vmul.f32 %v3430, %v3443
    %v3449 = vmul.f32 %v3431, %v3443
    %v3450 = vmul.f32 %v3432, %v3443
    %v3451 = vmul.f32 %v3433, %v3443
    %v3452 = vmul.f32 %v3434, %v3443
    %v3453 = vmul.f32 %v3435, %v3443
    %v3454 = vmul.f32 %v3436, %v3443
    %v3455 = vmul.f32 %v3437, %v3443
    %v3456 = vmul.f32 %v3438, %v3443
    %v3457 = vmul.f32 %v3439, %v3443
    %v3458 = vmul.f32 %v3440, %v3443
    %v3459 = vmul.f32 %v3441, %v3443
    %s3460 = scalar_lea.vmem %s7, 4
    %v3461 = vld [vmem:[%s3460] sm:$0x1]
    %v3463 = vlaneseq
    %v3464 = vshrl.u32 %v3463, 7
    %v3465 = vsub.s32 0, %v3464
    %v3466 = vrot.slane %v3461, %v3465
    %v3468 = vmul.f32 %v3444, %v3466
    %v3469 = vmul.f32 %v3445, %v3466
    %v3470 = vmul.f32 %v3446, %v3466
    %v3471 = vmul.f32 %v3447, %v3466
    %v3472 = vmul.f32 %v3448, %v3466
    %v3473 = vmul.f32 %v3449, %v3466
    %v3474 = vmul.f32 %v3450, %v3466
    %v3475 = vmul.f32 %v3451, %v3466
    %v3476 = vmul.f32 %v3452, %v3466
    %v3477 = vmul.f32 %v3453, %v3466
    %v3478 = vmul.f32 %v3454, %v3466
    %v3479 = vmul.f32 %v3455, %v3466
    %v3480 = vmul.f32 %v3456, %v3466
    %v3481 = vmul.f32 %v3457, %v3466
    %v3482 = vmul.f32 %v3458, %v3466
    %v3483 = vmul.f32 %v3459, %v3466
    %s3484 = scalar_lea.vmem %s8, 4
    %v3485 = vld [vmem:[%s3484] sm:$0x1]
    %v3487 = vlaneseq
    %v3488 = vshrl.u32 %v3487, 7
    %v3489 = vsub.s32 0, %v3488
    %v3490 = vrot.slane %v3485, %v3489
    %v3492 = vadd.f32 %v3468, %v3490
    %v3493 = vadd.f32 %v3469, %v3490
    %v3494 = vadd.f32 %v3470, %v3490
    %v3495 = vadd.f32 %v3471, %v3490
    %v3496 = vadd.f32 %v3472, %v3490
    %v3497 = vadd.f32 %v3473, %v3490
    %v3498 = vadd.f32 %v3474, %v3490
    %v3499 = vadd.f32 %v3475, %v3490
    %v3500 = vadd.f32 %v3476, %v3490
    %v3501 = vadd.f32 %v3477, %v3490
    %v3502 = vadd.f32 %v3478, %v3490
    %v3503 = vadd.f32 %v3479, %v3490
    %v3504 = vadd.f32 %v3480, %v3490
    %v3505 = vadd.f32 %v3481, %v3490
    %v3506 = vadd.f32 %v3482, %v3490
    %v3507 = vadd.f32 %v3483, %v3490
    %v3508 = vld [vmem:[%s9] sm:$0x3]
    %3509 = vmatprep.subr.mxu0 0.0
    %3510 = vmatpush1.msra.mxu0 %v3507
    %3511 = vmatprep.subr.mxu0 0.0
    %3512 = vmatpush1.msra.mxu0 %v3506
    %3513 = vmatprep.subr.mxu0 0.0
    %3514 = vmatpush1.msra.mxu0 %v3505
    %3515 = vmatprep.subr.mxu0 0.0
    %3516 = vmatpush1.msra.mxu0 %v3504
    %3517 = vmatprep.subr.mxu0 0.0
    %3518 = vmatpush1.msra.mxu0 %v3503
    %3519 = vmatprep.subr.mxu0 0.0
    %3520 = vmatpush1.msra.mxu0 %v3502
    %3521 = vmatprep.subr.mxu0 0.0
    %3522 = vmatpush1.msra.mxu0 %v3501
    %3523 = vmatprep.subr.mxu0 0.0
    %3524 = vmatpush1.msra.mxu0 %v3500
    %3525 = vmatprep.subr.mxu0 0.0
    %3526 = vmatpush1.msra.mxu0 %v3499
    %3527 = vmatprep.subr.mxu0 0.0
    %3528 = vmatpush1.msra.mxu0 %v3498
    %3529 = vmatprep.subr.mxu0 0.0
    %3530 = vmatpush1.msra.mxu0 %v3497
    %3531 = vmatprep.subr.mxu0 0.0
    %3532 = vmatpush1.msra.mxu0 %v3496
    %3533 = vmatprep.subr.mxu0 0.0
    %3534 = vmatpush1.msra.mxu0 %v3495
    %3535 = vmatprep.subr.mxu0 0.0
    %3536 = vmatpush1.msra.mxu0 %v3494
    %3537 = vmatprep.subr.mxu0 0.0
    %3538 = vmatpush1.msra.mxu0 %v3493
    %3539 = vmatprep.subr.mxu0 0.0
    %3540 = vmatpush1.msra.mxu0 %v3492
    %3541 = vmatprep.subr.mxu0 0.0
    %3542 = vmatpush2.msra.mxu0 0.0
    %3543 = vmatprep.subr.mxu0 0.0
    %3544 = vmatpush2.msra.mxu0 0.0
    %3545 = vmatprep.subr.mxu0 0.0
    %3546 = vmatpush2.msra.mxu0 0.0
    %3547 = vmatprep.subr.mxu0 0.0
    %3548 = vmatpush2.msra.mxu0 0.0
    %3549 = vmatprep.subr.mxu0 0.0
    %3550 = vmatpush2.msra.mxu0 0.0
    %3551 = vmatprep.subr.mxu0 0.0
    %3552 = vmatpush2.msra.mxu0 0.0
    %3553 = vmatprep.subr.mxu0 0.0
    %3554 = vmatpush2.msra.mxu0 0.0
    %3555 = vmatprep.subr.mxu0 0.0
    %3556 = vmatpush2.msra.mxu0 0.0
    %3557 = vmatprep.subr.mxu0 0.0
    %3558 = vmatpush2.msra.mxu0 0.0
    %3559 = vmatprep.subr.mxu0 0.0
    %3560 = vmatpush2.msra.mxu0 0.0
    %3561 = vmatprep.subr.mxu0 0.0
    %3562 = vmatpush2.msra.mxu0 0.0
    %3563 = vmatprep.subr.mxu0 0.0
    %3564 = vmatpush2.msra.mxu0 0.0
    %3565 = vmatprep.subr.mxu0 0.0
    %3566 = vmatpush2.msra.mxu0 0.0
    %3567 = vmatprep.subr.mxu0 0.0
    %3568 = vmatpush2.msra.mxu0 0.0
    %3569 = vmatprep.subr.mxu0 0.0
    %3570 = vmatpush2.msra.mxu0 0.0
    %3571 = vmatprep.subr.mxu0 0.0
    %3572 = vmatpush2.msra.mxu0 0.0
    %3573 = vmatprep.mubr.f32.mxu0 0.0
    %3574 = vmatmul.mubr.f32.gmra.mxu0 %v3508
    %v3575 = vpop.f32.mrf.mxu0
    %v3576 = vadd.f32 0.0, %v3575
    %v3577 = vpop.f32.mrf.mxu0
    %3578 = vdwg.mxu0
    %vm3579 = vcmask 254976
    %3580 = vst.msk [vmem:[#allocation2] sm:$0x3] %vm3579, %v3576
    // Predicated region
    $region42: #{tpu_custom_call.1} parent=1 // pred_check
      _
    $region43: #{tpu_custom_call.1} parent=1 // pred_check_branch
      %3582 = sbr.rel (0) target = $region45
    $region44: #{tpu_custom_call.1} parent=1 // pred_region
      %s3584 = ssub.s32 32, 32
      %3585 = vsyncadd [#allocation3], %s3584
      %s3587 = sshll.u32 [#allocation2], 4
      %s3588 = int_to_ptr.vmem [resolvable:$true] %s3587
      %3590 = dma.vmem_to_hbm [thread:$0]  %s3588, 32, %s10, [#allocation3]
    $region45: #{tpu_custom_call.1} parent=1 // pred_fallthru
      _
    // Predicated region
    $region46: #{tpu_custom_call.1} parent=1 // pred_check
      _
    $region47: #{tpu_custom_call.1} parent=1 // pred_check_branch
      %3592 = sbr.rel (0) target = $region49
    $region48: #{tpu_custom_call.1} parent=1 // pred_region
      %3593 = dma.done [#allocation3], 32
    $region49: #{tpu_custom_call.1} parent=1 // pred_fallthru
      _
    %3594 = vsyncpa [#allocation3], 1

</llo_original>
